<compile_context>
chip_gen: v5e
topology: v5e:2x2
jax: 0.10.0
libtpu: 0.0.40
codegen_flags: <defaults>
</compile_context>

<pallas_src>
import jax
import jax.numpy as jnp
import numpy as np
from jax import lax
from jax.experimental import pallas as pl
from jax.experimental.pallas import tpu as pltpu

EPS = 1e-5
_PARALLEL = pltpu.CompilerParams(dimension_semantics=("parallel",))


# ----------------------------------------------------------------------------------------------
# Stage 1: BN1 (precomputed scale/shift) -> ReLU -> 1x1 conv (Cin -> Ch); emits moments for BN2.
# ----------------------------------------------------------------------------------------------
def _stage1_kernel(x_ref, sc1_ref, sh1_ref, w1_ref, b1_ref, y1_ref, mom_ref):
    _, H, W, Cin = x_ref.shape
    Ch = w1_ref.shape[1]
    HW = H * W
    x = x_ref[...].reshape(HW, Cin)
    h = jnp.maximum(x * sc1_ref[...] + sh1_ref[...], 0.0)
    y = jnp.dot(h, w1_ref[...], preferred_element_type=jnp.float32) + b1_ref[...]
    y1_ref[...] = y.reshape(y1_ref.shape)
    mom_ref[0:1, 0:1, :] = jnp.sum(y, axis=0, keepdims=True).reshape(1, 1, Ch)
    mom_ref[0:1, 1:2, :] = jnp.sum(y * y, axis=0, keepdims=True).reshape(1, 1, Ch)


# ----------------------------------------------------------------------------------------------
# Stage 2: BN2 -> ReLU fused into the im2col gather, then the 3x3 conv as ONE matmul;
#          emits moments for BN3.
# ----------------------------------------------------------------------------------------------
def _stage2_kernel(y1_ref, sc2_ref, sh2_ref, w2_ref, b2_ref, y2_ref, mom_ref, col_ref):
    _, H, W, Ch = y1_ref.shape
    HW = H * W
    # Build (H, W, 9*Ch) im2col block in VMEM.  BN+ReLU is recomputed per tap (cheap VPU filler);
    # only the halo strips of each tap column are zeroed, every step (safe under parallel grids).
    for dy in range(3):
        for dx in range(3):
            t = dy * 3 + dx
            c0, c1 = t * Ch, (t + 1) * Ch
            r0, r1 = max(0, 1 - dy), min(H, H + 1 - dy)   # valid output rows for this tap
            s0, s1 = max(0, 1 - dx), min(W, W + 1 - dx)   # valid output cols for this tap
            if r0 > 0:
                col_ref[0:r0, :, c0:c1] = jnp.zeros((r0, W, Ch), jnp.float32)
            if r1 < H:
                col_ref[r1:H, :, c0:c1] = jnp.zeros((H - r1, W, Ch), jnp.float32)
            if s0 > 0:
                col_ref[:, 0:s0, c0:c1] = jnp.zeros((H, s0, Ch), jnp.float32)
            if s1 < W:
                col_ref[:, s1:W, c0:c1] = jnp.zeros((H, W - s1, Ch), jnp.float32)
            win = y1_ref[0, r0 + dy - 1:r1 + dy - 1, s0 + dx - 1:s1 + dx - 1, :]
            col_ref[r0:r1, s0:s1, c0:c1] = jnp.maximum(
                win * sc2_ref[...] + sh2_ref[...], 0.0)
    col = col_ref[...].reshape(HW, 9 * Ch)
    y = jnp.dot(col, w2_ref[...], preferred_element_type=jnp.float32) + b2_ref[...]
    y2_ref[...] = y.reshape(y2_ref.shape)
    mom_ref[0:1, 0:1, :] = jnp.sum(y, axis=0, keepdims=True).reshape(1, 1, Ch)
    mom_ref[0:1, 1:2, :] = jnp.sum(y * y, axis=0, keepdims=True).reshape(1, 1, Ch)


# ----------------------------------------------------------------------------------------------
# Stage 3: BN3 -> ReLU -> 1x1 conv (Ch -> Cout), fused with the 1x1 skip conv on x; single write.
# ----------------------------------------------------------------------------------------------
def _stage3_kernel(y2_ref, x_ref, sc3_ref, sh3_ref, w3_ref, ws_ref, b_ref, out_ref):
    _, H, W, Ch = y2_ref.shape
    Cin = x_ref.shape[3]
    HW = H * W
    h = jnp.maximum(y2_ref[...].reshape(HW, Ch) * sc3_ref[...] + sh3_ref[...], 0.0)
    xf = x_ref[...].reshape(HW, Cin)
    out = (jnp.dot(h, w3_ref[...], preferred_element_type=jnp.float32)
           + jnp.dot(xf, ws_ref[...], preferred_element_type=jnp.float32)
           + b_ref[...])
    out_ref[...] = out.reshape(out_ref.shape)


# ----------------------------------------------------------------------------------------------
# Wrapper
# ----------------------------------------------------------------------------------------------
def _scale_shift(s, sq, count, gamma, beta):
    """Fold training-mode (biased) batch stats + affine params into per-channel scale/shift."""
    mean = s / count
    var = jnp.maximum(sq / count - mean * mean, 0.0)
    scale = gamma * lax.rsqrt(var + EPS)
    return scale, beta - mean * scale


def _full(shape):
    zeros = (0,) * len(shape)
    return pl.BlockSpec(shape, lambda n: zeros)


@jax.jit
def residual_forward_nhwc(x, p):
    """Native channels-last path: (N, H, W, Cin) f32 -> (N, H, W, Cout) f32."""
    x = x.astype(jnp.float32)
    N, H, W, Cin = x.shape
    Ch = p["w1"].shape[-1]
    Cout = p["w3"].shape[-1]
    R = N * H * W

    def img(c):
        return pl.BlockSpec((1, H, W, c), lambda n: (n, 0, 0, 0))

    mom_spec = pl.BlockSpec((1, 2, Ch), lambda n: (n, 0, 0))
    mom_shape = jax.ShapeDtypeStruct((N, 2, Ch), jnp.float32)

    # BN1 stats: one tiny reduction over the input, hoisted out of the kernels.
    s1 = jnp.sum(x, axis=(0, 1, 2))[None, :]
    sq1 = jnp.sum(x * x, axis=(0, 1, 2))[None, :]
    sc1, sh1 = _scale_shift(s1, sq1, R, p["bn1_g"], p["bn1_b"])

    # ---- stage 1
    y1, mom2 = pl.pallas_call(
        _stage1_kernel,
        grid=(N,),
        in_specs=[img(Cin), _full((1, Cin)), _full((1, Cin)),
                  _full((Cin, Ch)), _full((1, Ch))],
        out_specs=(img(Ch), mom_spec),
        out_shape=(jax.ShapeDtypeStruct((N, H, W, Ch), jnp.float32), mom_shape),
        compiler_params=_PARALLEL,
    )(x, sc1, sh1, p["w1"], p["b1"])
    sc2, sh2 = _scale_shift(mom2[:, 0].sum(0, keepdims=True),
                            mom2[:, 1].sum(0, keepdims=True),
                            R, p["bn2_g"], p["bn2_b"])

    # ---- stage 2 (3x3 conv as one im2col matmul)
    w2r = p["w2"].reshape(9 * Ch, Ch)          # HWIO (3,3,Ch,Ch) -> (9*Ch, Ch), tap-major
    y2, mom3 = pl.pallas_call(
        _stage2_kernel,
        grid=(N,),
        in_specs=[img(Ch), _full((1, Ch)), _full((1, Ch)),
                  _full((9 * Ch, Ch)), _full((1, Ch))],
        out_specs=(img(Ch), mom_spec),
        out_shape=(jax.ShapeDtypeStruct((N, H, W, Ch), jnp.float32), mom_shape),
        scratch_shapes=[pltpu.VMEM((H, W, 9 * Ch), jnp.float32)],
        compiler_params=_PARALLEL,
    )(y1, sc2, sh2, w2r, p["b2"])
    sc3, sh3 = _scale_shift(mom3[:, 0].sum(0, keepdims=True),
                            mom3[:, 1].sum(0, keepdims=True),
                            R, p["bn3_g"], p["bn3_b"])

    # ---- stage 3 (main 1x1 conv fused with skip 1x1 conv)
    return pl.pallas_call(
        _stage3_kernel,
        grid=(N,),
        in_specs=[img(Ch), img(Cin), _full((1, Ch)), _full((1, Ch)),
                  _full((Ch, Cout)), _full((Cin, Cout)), _full((1, Cout))],
        out_specs=img(Cout),
        out_shape=jax.ShapeDtypeStruct((N, H, W, Cout), jnp.float32),
        compiler_params=_PARALLEL,
    )(y2, x, sc3, sh3, p["w3"], p["ws"], p["b3"] + p["bs"])


def residual_forward(x_nchw, p):
    """PyTorch-layout adapter: (N, Cin, H, W) -> (N, Cout, H, W) (transposes only at the boundary)."""
    out = residual_forward_nhwc(jnp.transpose(x_nchw, (0, 2, 3, 1)), p)
    return jnp.transpose(out, (0, 3, 1, 2))


# ----------------------------------------------------------------------------------------------
# Pure-JAX reference (training-mode BN, matches the PyTorch module right after __init__()).
# ----------------------------------------------------------------------------------------------
def residual_reference(x_nchw, p):
    x = jnp.transpose(x_nchw, (0, 2, 3, 1)).astype(jnp.float32)

    def bn_relu(t, g, b):
        m = t.mean(axis=(0, 1, 2), keepdims=True)
        v = ((t - m) ** 2).mean(axis=(0, 1, 2), keepdims=True)
        return jnp.maximum((t - m) / jnp.sqrt(v + EPS) * g + b, 0.0)

    h = bn_relu(x, p["bn1_g"], p["bn1_b"])
    h = jnp.einsum("nhwc,cd->nhwd", h, p["w1"]) + p["b1"]
    h = bn_relu(h, p["bn2_g"], p["bn2_b"])
    h = lax.conv_general_dilated(h, p["w2"], (1, 1), "SAME",
                                 dimension_numbers=("NHWC", "HWIO", "NHWC")) + p["b2"]
    h = bn_relu(h, p["bn3_g"], p["bn3_b"])
    h = jnp.einsum("nhwc,cd->nhwd", h, p["w3"]) + p["b3"]
    skip = jnp.einsum("nhwc,cd->nhwd", x, p["ws"]) + p["bs"]
    return jnp.transpose(h + skip, (0, 3, 1, 2))


def init_params(key, num_in, num_out):
    half = num_out // 2
    ks = jax.random.split(key, 16)

    def w(k, shape, scale=0.1):
        return (scale * jax.random.normal(k, shape)).astype(jnp.float32)

    return {
        "bn1_g": 1.0 + w(ks[0], (1, num_in)), "bn1_b": w(ks[1], (1, num_in)),
        "bn2_g": 1.0 + w(ks[2], (1, half)),   "bn2_b": w(ks[3], (1, half)),
        "bn3_g": 1.0 + w(ks[4], (1, half)),   "bn3_b": w(ks[5], (1, half)),
        "w1": w(ks[6], (num_in, half)),       "b1": w(ks[7], (1, half)),
        "w2": w(ks[8], (3, 3, half, half)),   "b2": w(ks[9], (1, half)),
        "w3": w(ks[10], (half, num_out)),     "b3": w(ks[11], (1, num_out)),
        "ws": w(ks[12], (num_in, num_out)),   "bs": w(ks[13], (1, num_out)),
    }


if __name__ == "__main__":
    NUM_IN, NUM_OUT = 4, 8           # numIn != numOut -> skipLayer uses its 1x1 conv
    N, H, W = 2, 16, 16

    key = jax.random.PRNGKey(0)
    kx, kp = jax.random.split(key)
    x = jax.random.normal(kx, (N, NUM_IN, H, W), dtype=jnp.float32)   # NCHW, PyTorch-style
    params = init_params(kp, NUM_IN, NUM_OUT)

    out = jax.block_until_ready(residual_forward(x, params))
    ref = jax.block_until_ready(residual_reference(x, params))

    assert out.shape == (N, NUM_OUT, H, W)
    np.testing.assert_allclose(np.asarray(out), np.asarray(ref), rtol=2e-3, atol=2e-3)

    print("KERNEL_OK")
</pallas_src>

<mosaic_0001>
module attributes {stable_mosaic.version = 11 : i64} {
  func.func @_stage1_kernel(%arg0: i32, %arg1: memref<1x16x16x4xf32, #tpu.memory_space<vmem>>, %arg2: memref<1x4xf32, #tpu.memory_space<vmem>>, %arg3: memref<1x4xf32, #tpu.memory_space<vmem>>, %arg4: memref<4x4xf32, #tpu.memory_space<vmem>>, %arg5: memref<1x4xf32, #tpu.memory_space<vmem>>, %arg6: memref<1x16x16x4xf32, #tpu.memory_space<vmem>>, %arg7: memref<1x2x4xf32, #tpu.memory_space<vmem>>) attributes {dimension_semantics = [#tpu.dimension_semantics<parallel>], iteration_bounds = array<i64: 2>, scalar_prefetch = 0 : i64, scratch_operands = 0 : i64, tpu.core_type = #tpu.core_type<tc>, window_params = [{transform_indices = @transform_0, window_bounds = array<i64: 1, 16, 16, 4>}, {pipeline_mode = #tpu.pipeline_mode<synchronous>, transform_indices = @transform_1, window_bounds = array<i64: 1, 4>}, {pipeline_mode = #tpu.pipeline_mode<synchronous>, transform_indices = @transform_2, window_bounds = array<i64: 1, 4>}, {pipeline_mode = #tpu.pipeline_mode<synchronous>, transform_indices = @transform_3, window_bounds = array<i64: 4, 4>}, {pipeline_mode = #tpu.pipeline_mode<synchronous>, transform_indices = @transform_4, window_bounds = array<i64: 1, 4>}, {transform_indices = @transform_5, window_bounds = array<i64: 1, 16, 16, 4>}, {transform_indices = @transform_6, window_bounds = array<i64: 1, 2, 4>}]} {
    %c0 = arith.constant 0 : index
    %c0_0 = arith.constant 0 : index
    %c0_1 = arith.constant 0 : index
    %c0_2 = arith.constant 0 : index
    %0 = vector.load %arg1[%c0, %c0_0, %c0_1, %c0_2] : memref<1x16x16x4xf32, #tpu.memory_space<vmem>>, vector<1x16x16x4xf32>
    %1 = vector.shape_cast %0 : vector<1x16x16x4xf32> to vector<256x4xf32>
    %c0_3 = arith.constant 0 : index
    %c0_4 = arith.constant 0 : index
    %2 = vector.load %arg2[%c0_3, %c0_4] : memref<1x4xf32, #tpu.memory_space<vmem>>, vector<1x4xf32>
    %3 = vector.broadcast %2 : vector<1x4xf32> to vector<256x4xf32>
    %4 = arith.mulf %1, %3 : vector<256x4xf32>
    %c0_5 = arith.constant 0 : index
    %c0_6 = arith.constant 0 : index
    %5 = vector.load %arg3[%c0_5, %c0_6] : memref<1x4xf32, #tpu.memory_space<vmem>>, vector<1x4xf32>
    %6 = vector.broadcast %5 : vector<1x4xf32> to vector<256x4xf32>
    %7 = arith.addf %4, %6 : vector<256x4xf32>
    %cst = arith.constant 0.000000e+00 : f32
    %8 = vector.broadcast %cst : f32 to vector<256x4xf32>
    %9 = arith.maximumf %7, %8 : vector<256x4xf32>
    %c0_7 = arith.constant 0 : index
    %c0_8 = arith.constant 0 : index
    %10 = vector.load %arg4[%c0_7, %c0_8] : memref<4x4xf32, #tpu.memory_space<vmem>>, vector<4x4xf32>
    %cst_9 = arith.constant dense<0.000000e+00> : vector<256x4xf32>
    %11 = tpu.matmul %9, %10, %cst_9 {dimension_numbers = #tpu.dot_dimension_numbers<[1], [0], [0], [1], [0, 0, 1, 1], [], []>} : vector<256x4xf32>, vector<4x4xf32>, vector<256x4xf32> -> vector<256x4xf32>
    %c0_10 = arith.constant 0 : index
    %c0_11 = arith.constant 0 : index
    %12 = vector.load %arg5[%c0_10, %c0_11] : memref<1x4xf32, #tpu.memory_space<vmem>>, vector<1x4xf32>
    %13 = vector.broadcast %12 : vector<1x4xf32> to vector<256x4xf32>
    %14 = arith.addf %11, %13 : vector<256x4xf32>
    %15 = vector.shape_cast %14 : vector<256x4xf32> to vector<1x16x16x4xf32>
    %c0_12 = arith.constant 0 : index
    %c0_13 = arith.constant 0 : index
    %c0_14 = arith.constant 0 : index
    %c0_15 = arith.constant 0 : index
    %16 = vector.load %arg6[%c0_12, %c0_13, %c0_14, %c0_15] : memref<1x16x16x4xf32, #tpu.memory_space<vmem>>, vector<1x16x16x4xf32>
    tpu.vector_store %arg6[%c0_12, %c0_13, %c0_14, %c0_15], %15 {strides = array<i32>} : memref<1x16x16x4xf32, #tpu.memory_space<vmem>>, vector<1x16x16x4xf32>,
    %cst_16 = arith.constant dense<0.000000e+00> : vector<4xf32>
    %17 = vector.multi_reduction <add>, %14, %cst_16 [0] : vector<256x4xf32> to vector<4xf32>
    %18 = vector.shape_cast %17 : vector<4xf32> to vector<1x4xf32>
    %19 = vector.shape_cast %18 : vector<1x4xf32> to vector<1x1x4xf32>
    %c0_17 = arith.constant 0 : index
    %c0_18 = arith.constant 0 : index
    %c0_19 = arith.constant 0 : index
    %20 = vector.load %arg7[%c0_17, %c0_18, %c0_19] : memref<1x2x4xf32, #tpu.memory_space<vmem>>, vector<1x1x4xf32>
    tpu.vector_store %arg7[%c0_17, %c0_18, %c0_19], %19 {strides = array<i32>} : memref<1x2x4xf32, #tpu.memory_space<vmem>>, vector<1x1x4xf32>,
    %21 = arith.mulf %14, %14 : vector<256x4xf32>
    %cst_20 = arith.constant dense<0.000000e+00> : vector<4xf32>
    %22 = vector.multi_reduction <add>, %21, %cst_20 [0] : vector<256x4xf32> to vector<4xf32>
    %23 = vector.shape_cast %22 : vector<4xf32> to vector<1x4xf32>
    %24 = vector.shape_cast %23 : vector<1x4xf32> to vector<1x1x4xf32>
    %c0_21 = arith.constant 0 : index
    %c1 = arith.constant 1 : index
    %c0_22 = arith.constant 0 : index
    %25 = vector.load %arg7[%c0_21, %c1, %c0_22] : memref<1x2x4xf32, #tpu.memory_space<vmem>>, vector<1x1x4xf32>
    tpu.vector_store %arg7[%c0_21, %c1, %c0_22], %24 {strides = array<i32>} : memref<1x2x4xf32, #tpu.memory_space<vmem>>, vector<1x1x4xf32>,
    return
  }
  func.func @transform_0(%arg0: i32) -> (i32, i32, i32, i32) {
    %c0_i32 = arith.constant 0 : i32
    %c0_i32_0 = arith.constant 0 : i32
    %c0_i32_1 = arith.constant 0 : i32
    %c0_i32_2 = arith.constant 0 : i32
    return %arg0, %c0_i32, %c0_i32_0, %c0_i32_1 : i32, i32, i32, i32
  }
  func.func @transform_1(%arg0: i32) -> (i32, i32) {
    %c0_i32 = arith.constant 0 : i32
    %c0_i32_0 = arith.constant 0 : i32
    %c0_i32_1 = arith.constant 0 : i32
    return %c0_i32, %c0_i32_0 : i32, i32
  }
  func.func @transform_2(%arg0: i32) -> (i32, i32) {
    %c0_i32 = arith.constant 0 : i32
    %c0_i32_0 = arith.constant 0 : i32
    %c0_i32_1 = arith.constant 0 : i32
    return %c0_i32, %c0_i32_0 : i32, i32
  }
  func.func @transform_3(%arg0: i32) -> (i32, i32) {
    %c0_i32 = arith.constant 0 : i32
    %c0_i32_0 = arith.constant 0 : i32
    %c0_i32_1 = arith.constant 0 : i32
    return %c0_i32, %c0_i32_0 : i32, i32
  }
  func.func @transform_4(%arg0: i32) -> (i32, i32) {
    %c0_i32 = arith.constant 0 : i32
    %c0_i32_0 = arith.constant 0 : i32
    %c0_i32_1 = arith.constant 0 : i32
    return %c0_i32, %c0_i32_0 : i32, i32
  }
  func.func @transform_5(%arg0: i32) -> (i32, i32, i32, i32) {
    %c0_i32 = arith.constant 0 : i32
    %c0_i32_0 = arith.constant 0 : i32
    %c0_i32_1 = arith.constant 0 : i32
    %c0_i32_2 = arith.constant 0 : i32
    return %arg0, %c0_i32, %c0_i32_0, %c0_i32_1 : i32, i32, i32, i32
  }
  func.func @transform_6(%arg0: i32) -> (i32, i32, i32) {
    %c0_i32 = arith.constant 0 : i32
    %c0_i32_0 = arith.constant 0 : i32
    %c0_i32_1 = arith.constant 0 : i32
    return %arg0, %c0_i32, %c0_i32_0 : i32, i32, i32
  }
}

module attributes {stable_mosaic.version = 11 : i64} {
  func.func @_stage3_kernel(%arg0: i32, %arg1: memref<1x16x16x4xf32, #tpu.memory_space<vmem>>, %arg2: memref<1x16x16x4xf32, #tpu.memory_space<vmem>>, %arg3: memref<1x4xf32, #tpu.memory_space<vmem>>, %arg4: memref<1x4xf32, #tpu.memory_space<vmem>>, %arg5: memref<4x8xf32, #tpu.memory_space<vmem>>, %arg6: memref<4x8xf32, #tpu.memory_space<vmem>>, %arg7: memref<1x8xf32, #tpu.memory_space<vmem>>, %arg8: memref<1x16x16x8xf32, #tpu.memory_space<vmem>>) attributes {dimension_semantics = [#tpu.dimension_semantics<parallel>], iteration_bounds = array<i64: 2>, scalar_prefetch = 0 : i64, scratch_operands = 0 : i64, tpu.core_type = #tpu.core_type<tc>, window_params = [{transform_indices = @transform_0, window_bounds = array<i64: 1, 16, 16, 4>}, {transform_indices = @transform_1, window_bounds = array<i64: 1, 16, 16, 4>}, {pipeline_mode = #tpu.pipeline_mode<synchronous>, transform_indices = @transform_2, window_bounds = array<i64: 1, 4>}, {pipeline_mode = #tpu.pipeline_mode<synchronous>, transform_indices = @transform_3, window_bounds = array<i64: 1, 4>}, {pipeline_mode = #tpu.pipeline_mode<synchronous>, transform_indices = @transform_4, window_bounds = array<i64: 4, 8>}, {pipeline_mode = #tpu.pipeline_mode<synchronous>, transform_indices = @transform_5, window_bounds = array<i64: 4, 8>}, {pipeline_mode = #tpu.pipeline_mode<synchronous>, transform_indices = @transform_6, window_bounds = array<i64: 1, 8>}, {transform_indices = @transform_7, window_bounds = array<i64: 1, 16, 16, 8>}]} {
    %c0 = arith.constant 0 : index
    %c0_0 = arith.constant 0 : index
    %c0_1 = arith.constant 0 : index
    %c0_2 = arith.constant 0 : index
    %0 = vector.load %arg1[%c0, %c0_0, %c0_1, %c0_2] : memref<1x16x16x4xf32, #tpu.memory_space<vmem>>, vector<1x16x16x4xf32>
    %1 = vector.shape_cast %0 : vector<1x16x16x4xf32> to vector<256x4xf32>
    %c0_3 = arith.constant 0 : index
    %c0_4 = arith.constant 0 : index
    %2 = vector.load %arg3[%c0_3, %c0_4] : memref<1x4xf32, #tpu.memory_space<vmem>>, vector<1x4xf32>
    %3 = vector.broadcast %2 : vector<1x4xf32> to vector<256x4xf32>
    %4 = arith.mulf %1, %3 : vector<256x4xf32>
    %c0_5 = arith.constant 0 : index
    %c0_6 = arith.constant 0 : index
    %5 = vector.load %arg4[%c0_5, %c0_6] : memref<1x4xf32, #tpu.memory_space<vmem>>, vector<1x4xf32>
    %6 = vector.broadcast %5 : vector<1x4xf32> to vector<256x4xf32>
    %7 = arith.addf %4, %6 : vector<256x4xf32>
    %cst = arith.constant 0.000000e+00 : f32
    %8 = vector.broadcast %cst : f32 to vector<256x4xf32>
    %9 = arith.maximumf %7, %8 : vector<256x4xf32>
    %c0_7 = arith.constant 0 : index
    %c0_8 = arith.constant 0 : index
    %c0_9 = arith.constant 0 : index
    %c0_10 = arith.constant 0 : index
    %10 = vector.load %arg2[%c0_7, %c0_8, %c0_9, %c0_10] : memref<1x16x16x4xf32, #tpu.memory_space<vmem>>, vector<1x16x16x4xf32>
    %11 = vector.shape_cast %10 : vector<1x16x16x4xf32> to vector<256x4xf32>
    %c0_11 = arith.constant 0 : index
    %c0_12 = arith.constant 0 : index
    %12 = vector.load %arg5[%c0_11, %c0_12] : memref<4x8xf32, #tpu.memory_space<vmem>>, vector<4x8xf32>
    %cst_13 = arith.constant dense<0.000000e+00> : vector<256x8xf32>
    %13 = tpu.matmul %9, %12, %cst_13 {dimension_numbers = #tpu.dot_dimension_numbers<[1], [0], [0], [1], [0, 0, 1, 1], [], []>} : vector<256x4xf32>, vector<4x8xf32>, vector<256x8xf32> -> vector<256x8xf32>
    %c0_14 = arith.constant 0 : index
    %c0_15 = arith.constant 0 : index
    %14 = vector.load %arg6[%c0_14, %c0_15] : memref<4x8xf32, #tpu.memory_space<vmem>>, vector<4x8xf32>
    %cst_16 = arith.constant dense<0.000000e+00> : vector<256x8xf32>
    %15 = tpu.matmul %11, %14, %cst_16 {dimension_numbers = #tpu.dot_dimension_numbers<[1], [0], [0], [1], [0, 0, 1, 1], [], []>} : vector<256x4xf32>, vector<4x8xf32>, vector<256x8xf32> -> vector<256x8xf32>
    %16 = arith.addf %13, %15 : vector<256x8xf32>
    %c0_17 = arith.constant 0 : index
    %c0_18 = arith.constant 0 : index
    %17 = vector.load %arg7[%c0_17, %c0_18] : memref<1x8xf32, #tpu.memory_space<vmem>>, vector<1x8xf32>
    %18 = vector.broadcast %17 : vector<1x8xf32> to vector<256x8xf32>
    %19 = arith.addf %16, %18 : vector<256x8xf32>
    %20 = vector.shape_cast %19 : vector<256x8xf32> to vector<1x16x16x8xf32>
    %c0_19 = arith.constant 0 : index
    %c0_20 = arith.constant 0 : index
    %c0_21 = arith.constant 0 : index
    %c0_22 = arith.constant 0 : index
    %21 = vector.load %arg8[%c0_19, %c0_20, %c0_21, %c0_22] : memref<1x16x16x8xf32, #tpu.memory_space<vmem>>, vector<1x16x16x8xf32>
    tpu.vector_store %arg8[%c0_19, %c0_20, %c0_21, %c0_22], %20 {strides = array<i32>} : memref<1x16x16x8xf32, #tpu.memory_space<vmem>>, vector<1x16x16x8xf32>,
    return
  }
  func.func @transform_0(%arg0: i32) -> (i32, i32, i32, i32) {
    %c0_i32 = arith.constant 0 : i32
    %c0_i32_0 = arith.constant 0 : i32
    %c0_i32_1 = arith.constant 0 : i32
    %c0_i32_2 = arith.constant 0 : i32
    return %arg0, %c0_i32, %c0_i32_0, %c0_i32_1 : i32, i32, i32, i32
  }
  func.func @transform_1(%arg0: i32) -> (i32, i32, i32, i32) {
    %c0_i32 = arith.constant 0 : i32
    %c0_i32_0 = arith.constant 0 : i32
    %c0_i32_1 = arith.constant 0 : i32
    %c0_i32_2 = arith.constant 0 : i32
    return %arg0, %c0_i32, %c0_i32_0, %c0_i32_1 : i32, i32, i32, i32
  }
  func.func @transform_2(%arg0: i32) -> (i32, i32) {
    %c0_i32 = arith.constant 0 : i32
    %c0_i32_0 = arith.constant 0 : i32
    %c0_i32_1 = arith.constant 0 : i32
    return %c0_i32, %c0_i32_0 : i32, i32
  }
  func.func @transform_3(%arg0: i32) -> (i32, i32) {
    %c0_i32 = arith.constant 0 : i32
    %c0_i32_0 = arith.constant 0 : i32
    %c0_i32_1 = arith.constant 0 : i32
    return %c0_i32, %c0_i32_0 : i32, i32
  }
  func.func @transform_4(%arg0: i32) -> (i32, i32) {
    %c0_i32 = arith.constant 0 : i32
    %c0_i32_0 = arith.constant 0 : i32
    %c0_i32_1 = arith.constant 0 : i32
    return %c0_i32, %c0_i32_0 : i32, i32
  }
  func.func @transform_5(%arg0: i32) -> (i32, i32) {
    %c0_i32 = arith.constant 0 : i32
    %c0_i32_0 = arith.constant 0 : i32
    %c0_i32_1 = arith.constant 0 : i32
    return %c0_i32, %c0_i32_0 : i32, i32
  }
  func.func @transform_6(%arg0: i32) -> (i32, i32) {
    %c0_i32 = arith.constant 0 : i32
    %c0_i32_0 = arith.constant 0 : i32
    %c0_i32_1 = arith.constant 0 : i32
    return %c0_i32, %c0_i32_0 : i32, i32
  }
  func.func @transform_7(%arg0: i32) -> (i32, i32, i32, i32) {
    %c0_i32 = arith.constant 0 : i32
    %c0_i32_0 = arith.constant 0 : i32
    %c0_i32_1 = arith.constant 0 : i32
    %c0_i32_2 = arith.constant 0 : i32
    return %arg0, %c0_i32, %c0_i32_0, %c0_i32_1 : i32, i32, i32, i32
  }
}

module attributes {stable_mosaic.version = 11 : i64} {
  func.func @_stage2_kernel(%arg0: i32, %arg1: memref<1x16x16x4xf32, #tpu.memory_space<vmem>>, %arg2: memref<1x4xf32, #tpu.memory_space<vmem>>, %arg3: memref<1x4xf32, #tpu.memory_space<vmem>>, %arg4: memref<36x4xf32, #tpu.memory_space<vmem>>, %arg5: memref<1x4xf32, #tpu.memory_space<vmem>>, %arg6: memref<1x16x16x4xf32, #tpu.memory_space<vmem>>, %arg7: memref<1x2x4xf32, #tpu.memory_space<vmem>>, %arg8: memref<16x16x36xf32, #tpu.memory_space<vmem>>) attributes {dimension_semantics = [#tpu.dimension_semantics<parallel>], iteration_bounds = array<i64: 2>, scalar_prefetch = 0 : i64, scratch_operands = 1 : i64, tpu.core_type = #tpu.core_type<tc>, window_params = [{transform_indices = @transform_0, window_bounds = array<i64: 1, 16, 16, 4>}, {pipeline_mode = #tpu.pipeline_mode<synchronous>, transform_indices = @transform_1, window_bounds = array<i64: 1, 4>}, {pipeline_mode = #tpu.pipeline_mode<synchronous>, transform_indices = @transform_2, window_bounds = array<i64: 1, 4>}, {pipeline_mode = #tpu.pipeline_mode<synchronous>, transform_indices = @transform_3, window_bounds = array<i64: 36, 4>}, {pipeline_mode = #tpu.pipeline_mode<synchronous>, transform_indices = @transform_4, window_bounds = array<i64: 1, 4>}, {transform_indices = @transform_5, window_bounds = array<i64: 1, 16, 16, 4>}, {transform_indices = @transform_6, window_bounds = array<i64: 1, 2, 4>}]} {
    %cst = arith.constant 0.000000e+00 : f32
    %0 = vector.broadcast %cst : f32 to vector<1x16x4xf32>
    %c0 = arith.constant 0 : index
    %c0_0 = arith.constant 0 : index
    %c0_1 = arith.constant 0 : index
    %1 = vector.load %arg8[%c0, %c0_0, %c0_1] : memref<16x16x36xf32, #tpu.memory_space<vmem>>, vector<1x16x4xf32>
    tpu.vector_store %arg8[%c0, %c0_0, %c0_1], %0 {strides = array<i32>} : memref<16x16x36xf32, #tpu.memory_space<vmem>>, vector<1x16x4xf32>,
    %cst_2 = arith.constant 0.000000e+00 : f32
    %2 = vector.broadcast %cst_2 : f32 to vector<16x1x4xf32>
    %c0_3 = arith.constant 0 : index
    %c0_4 = arith.constant 0 : index
    %c0_5 = arith.constant 0 : index
    %3 = vector.load %arg8[%c0_3, %c0_4, %c0_5] : memref<16x16x36xf32, #tpu.memory_space<vmem>>, vector<16x1x4xf32>
    tpu.vector_store %arg8[%c0_3, %c0_4, %c0_5], %2 {strides = array<i32>} : memref<16x16x36xf32, #tpu.memory_space<vmem>>, vector<16x1x4xf32>,
    %c0_6 = arith.constant 0 : index
    %c0_7 = arith.constant 0 : index
    %c0_8 = arith.constant 0 : index
    %c0_9 = arith.constant 0 : index
    %4 = vector.load %arg1[%c0_6, %c0_7, %c0_8, %c0_9] : memref<1x16x16x4xf32, #tpu.memory_space<vmem>>, vector<1x15x15x4xf32>
    %5 = vector.shape_cast %4 : vector<1x15x15x4xf32> to vector<15x15x4xf32>
    %c0_10 = arith.constant 0 : index
    %c0_11 = arith.constant 0 : index
    %6 = vector.load %arg2[%c0_10, %c0_11] : memref<1x4xf32, #tpu.memory_space<vmem>>, vector<1x4xf32>
    %7 = vector.shape_cast %6 : vector<1x4xf32> to vector<1x1x4xf32>
    %8 = vector.broadcast %7 : vector<1x1x4xf32> to vector<15x15x4xf32>
    %9 = arith.mulf %5, %8 : vector<15x15x4xf32>
    %c0_12 = arith.constant 0 : index
    %c0_13 = arith.constant 0 : index
    %10 = vector.load %arg3[%c0_12, %c0_13] : memref<1x4xf32, #tpu.memory_space<vmem>>, vector<1x4xf32>
    %11 = vector.shape_cast %10 : vector<1x4xf32> to vector<1x1x4xf32>
    %12 = vector.broadcast %11 : vector<1x1x4xf32> to vector<15x15x4xf32>
    %13 = arith.addf %9, %12 : vector<15x15x4xf32>
    %cst_14 = arith.constant 0.000000e+00 : f32
    %14 = vector.broadcast %cst_14 : f32 to vector<15x15x4xf32>
    %15 = arith.maximumf %13, %14 : vector<15x15x4xf32>
    %c1 = arith.constant 1 : index
    %c1_15 = arith.constant 1 : index
    %c0_16 = arith.constant 0 : index
    %16 = vector.load %arg8[%c1, %c1_15, %c0_16] : memref<16x16x36xf32, #tpu.memory_space<vmem>>, vector<15x15x4xf32>
    tpu.vector_store %arg8[%c1, %c1_15, %c0_16], %15 {strides = array<i32>} : memref<16x16x36xf32, #tpu.memory_space<vmem>>, vector<15x15x4xf32>,
    %cst_17 = arith.constant 0.000000e+00 : f32
    %17 = vector.broadcast %cst_17 : f32 to vector<1x16x4xf32>
    %c0_18 = arith.constant 0 : index
    %c0_19 = arith.constant 0 : index
    %c4 = arith.constant 4 : index
    %18 = vector.load %arg8[%c0_18, %c0_19, %c4] : memref<16x16x36xf32, #tpu.memory_space<vmem>>, vector<1x16x4xf32>
    tpu.vector_store %arg8[%c0_18, %c0_19, %c4], %17 {strides = array<i32>} : memref<16x16x36xf32, #tpu.memory_space<vmem>>, vector<1x16x4xf32>,
    %c0_20 = arith.constant 0 : index
    %c0_21 = arith.constant 0 : index
    %c0_22 = arith.constant 0 : index
    %c0_23 = arith.constant 0 : index
    %19 = vector.load %arg1[%c0_20, %c0_21, %c0_22, %c0_23] : memref<1x16x16x4xf32, #tpu.memory_space<vmem>>, vector<1x15x16x4xf32>
    %20 = vector.shape_cast %19 : vector<1x15x16x4xf32> to vector<15x16x4xf32>
    %c0_24 = arith.constant 0 : index
    %c0_25 = arith.constant 0 : index
    %21 = vector.load %arg2[%c0_24, %c0_25] : memref<1x4xf32, #tpu.memory_space<vmem>>, vector<1x4xf32>
    %22 = vector.shape_cast %21 : vector<1x4xf32> to vector<1x1x4xf32>
    %23 = vector.broadcast %22 : vector<1x1x4xf32> to vector<15x16x4xf32>
    %24 = arith.mulf %20, %23 : vector<15x16x4xf32>
    %c0_26 = arith.constant 0 : index
    %c0_27 = arith.constant 0 : index
    %25 = vector.load %arg3[%c0_26, %c0_27] : memref<1x4xf32, #tpu.memory_space<vmem>>, vector<1x4xf32>
    %26 = vector.shape_cast %25 : vector<1x4xf32> to vector<1x1x4xf32>
    %27 = vector.broadcast %26 : vector<1x1x4xf32> to vector<15x16x4xf32>
    %28 = arith.addf %24, %27 : vector<15x16x4xf32>
    %cst_28 = arith.constant 0.000000e+00 : f32
    %29 = vector.broadcast %cst_28 : f32 to vector<15x16x4xf32>
    %30 = arith.maximumf %28, %29 : vector<15x16x4xf32>
    %c1_29 = arith.constant 1 : index
    %c0_30 = arith.constant 0 : index
    %c4_31 = arith.constant 4 : index
    %31 = vector.load %arg8[%c1_29, %c0_30, %c4_31] : memref<16x16x36xf32, #tpu.memory_space<vmem>>, vector<15x16x4xf32>
    tpu.vector_store %arg8[%c1_29, %c0_30, %c4_31], %30 {strides = array<i32>} : memref<16x16x36xf32, #tpu.memory_space<vmem>>, vector<15x16x4xf32>,
    %cst_32 = arith.constant 0.000000e+00 : f32
    %32 = vector.broadcast %cst_32 : f32 to vector<1x16x4xf32>
    %c0_33 = arith.constant 0 : index
    %c0_34 = arith.constant 0 : index
    %c8 = arith.constant 8 : index
    %33 = vector.load %arg8[%c0_33, %c0_34, %c8] : memref<16x16x36xf32, #tpu.memory_space<vmem>>, vector<1x16x4xf32>
    tpu.vector_store %arg8[%c0_33, %c0_34, %c8], %32 {strides = array<i32>} : memref<16x16x36xf32, #tpu.memory_space<vmem>>, vector<1x16x4xf32>,
    %cst_35 = arith.constant 0.000000e+00 : f32
    %34 = vector.broadcast %cst_35 : f32 to vector<16x1x4xf32>
    %c0_36 = arith.constant 0 : index
    %c15 = arith.constant 15 : index
    %c8_37 = arith.constant 8 : index
    %35 = vector.load %arg8[%c0_36, %c15, %c8_37] : memref<16x16x36xf32, #tpu.memory_space<vmem>>, vector<16x1x4xf32>
    tpu.vector_store %arg8[%c0_36, %c15, %c8_37], %34 {strides = array<i32>} : memref<16x16x36xf32, #tpu.memory_space<vmem>>, vector<16x1x4xf32>,
    %c0_38 = arith.constant 0 : index
    %c0_39 = arith.constant 0 : index
    %c1_40 = arith.constant 1 : index
    %c0_41 = arith.constant 0 : index
    %36 = vector.load %arg1[%c0_38, %c0_39, %c1_40, %c0_41] : memref<1x16x16x4xf32, #tpu.memory_space<vmem>>, vector<1x15x15x4xf32>
    %37 = vector.shape_cast %36 : vector<1x15x15x4xf32> to vector<15x15x4xf32>
    %c0_42 = arith.constant 0 : index
    %c0_43 = arith.constant 0 : index
    %38 = vector.load %arg2[%c0_42, %c0_43] : memref<1x4xf32, #tpu.memory_space<vmem>>, vector<1x4xf32>
    %39 = vector.shape_cast %38 : vector<1x4xf32> to vector<1x1x4xf32>
    %40 = vector.broadcast %39 : vector<1x1x4xf32> to vector<15x15x4xf32>
    %41 = arith.mulf %37, %40 : vector<15x15x4xf32>
    %c0_44 = arith.constant 0 : index
    %c0_45 = arith.constant 0 : index
    %42 = vector.load %arg3[%c0_44, %c0_45] : memref<1x4xf32, #tpu.memory_space<vmem>>, vector<1x4xf32>
    %43 = vector.shape_cast %42 : vector<1x4xf32> to vector<1x1x4xf32>
    %44 = vector.broadcast %43 : vector<1x1x4xf32> to vector<15x15x4xf32>
    %45 = arith.addf %41, %44 : vector<15x15x4xf32>
    %cst_46 = arith.constant 0.000000e+00 : f32
    %46 = vector.broadcast %cst_46 : f32 to vector<15x15x4xf32>
    %47 = arith.maximumf %45, %46 : vector<15x15x4xf32>
    %c1_47 = arith.constant 1 : index
    %c0_48 = arith.constant 0 : index
    %c8_49 = arith.constant 8 : index
    %48 = vector.load %arg8[%c1_47, %c0_48, %c8_49] : memref<16x16x36xf32, #tpu.memory_space<vmem>>, vector<15x15x4xf32>
    tpu.vector_store %arg8[%c1_47, %c0_48, %c8_49], %47 {strides = array<i32>} : memref<16x16x36xf32, #tpu.memory_space<vmem>>, vector<15x15x4xf32>,
    %cst_50 = arith.constant 0.000000e+00 : f32
    %49 = vector.broadcast %cst_50 : f32 to vector<16x1x4xf32>
    %c0_51 = arith.constant 0 : index
    %c0_52 = arith.constant 0 : index
    %c12 = arith.constant 12 : index
    %50 = vector.load %arg8[%c0_51, %c0_52, %c12] : memref<16x16x36xf32, #tpu.memory_space<vmem>>, vector<16x1x4xf32>
    tpu.vector_store %arg8[%c0_51, %c0_52, %c12], %49 {strides = array<i32>} : memref<16x16x36xf32, #tpu.memory_space<vmem>>, vector<16x1x4xf32>,
    %c0_53 = arith.constant 0 : index
    %c0_54 = arith.constant 0 : index
    %c0_55 = arith.constant 0 : index
    %c0_56 = arith.constant 0 : index
    %51 = vector.load %arg1[%c0_53, %c0_54, %c0_55, %c0_56] : memref<1x16x16x4xf32, #tpu.memory_space<vmem>>, vector<1x16x15x4xf32>
    %52 = vector.shape_cast %51 : vector<1x16x15x4xf32> to vector<16x15x4xf32>
    %c0_57 = arith.constant 0 : index
    %c0_58 = arith.constant 0 : index
    %53 = vector.load %arg2[%c0_57, %c0_58] : memref<1x4xf32, #tpu.memory_space<vmem>>, vector<1x4xf32>
    %54 = vector.shape_cast %53 : vector<1x4xf32> to vector<1x1x4xf32>
    %55 = vector.broadcast %54 : vector<1x1x4xf32> to vector<16x15x4xf32>
    %56 = arith.mulf %52, %55 : vector<16x15x4xf32>
    %c0_59 = arith.constant 0 : index
    %c0_60 = arith.constant 0 : index
    %57 = vector.load %arg3[%c0_59, %c0_60] : memref<1x4xf32, #tpu.memory_space<vmem>>, vector<1x4xf32>
    %58 = vector.shape_cast %57 : vector<1x4xf32> to vector<1x1x4xf32>
    %59 = vector.broadcast %58 : vector<1x1x4xf32> to vector<16x15x4xf32>
    %60 = arith.addf %56, %59 : vector<16x15x4xf32>
    %cst_61 = arith.constant 0.000000e+00 : f32
    %61 = vector.broadcast %cst_61 : f32 to vector<16x15x4xf32>
    %62 = arith.maximumf %60, %61 : vector<16x15x4xf32>
    %c0_62 = arith.constant 0 : index
    %c1_63 = arith.constant 1 : index
    %c12_64 = arith.constant 12 : index
    %63 = vector.load %arg8[%c0_62, %c1_63, %c12_64] : memref<16x16x36xf32, #tpu.memory_space<vmem>>, vector<16x15x4xf32>
    tpu.vector_store %arg8[%c0_62, %c1_63, %c12_64], %62 {strides = array<i32>} : memref<16x16x36xf32, #tpu.memory_space<vmem>>, vector<16x15x4xf32>,
    %c0_65 = arith.constant 0 : index
    %c0_66 = arith.constant 0 : index
    %c0_67 = arith.constant 0 : index
    %c0_68 = arith.constant 0 : index
    %64 = vector.load %arg1[%c0_65, %c0_66, %c0_67, %c0_68] : memref<1x16x16x4xf32, #tpu.memory_space<vmem>>, vector<1x16x16x4xf32>
    %65 = vector.shape_cast %64 : vector<1x16x16x4xf32> to vector<16x16x4xf32>
    %c0_69 = arith.constant 0 : index
    %c0_70 = arith.constant 0 : index
    %66 = vector.load %arg2[%c0_69, %c0_70] : memref<1x4xf32, #tpu.memory_space<vmem>>, vector<1x4xf32>
    %67 = vector.shape_cast %66 : vector<1x4xf32> to vector<1x1x4xf32>
    %68 = vector.broadcast %67 : vector<1x1x4xf32> to vector<16x16x4xf32>
    %69 = arith.mulf %65, %68 : vector<16x16x4xf32>
    %c0_71 = arith.constant 0 : index
    %c0_72 = arith.constant 0 : index
    %70 = vector.load %arg3[%c0_71, %c0_72] : memref<1x4xf32, #tpu.memory_space<vmem>>, vector<1x4xf32>
    %71 = vector.shape_cast %70 : vector<1x4xf32> to vector<1x1x4xf32>
    %72 = vector.broadcast %71 : vector<1x1x4xf32> to vector<16x16x4xf32>
    %73 = arith.addf %69, %72 : vector<16x16x4xf32>
    %cst_73 = arith.constant 0.000000e+00 : f32
    %74 = vector.broadcast %cst_73 : f32 to vector<16x16x4xf32>
    %75 = arith.maximumf %73, %74 : vector<16x16x4xf32>
    %c0_74 = arith.constant 0 : index
    %c0_75 = arith.constant 0 : index
    %c16 = arith.constant 16 : index
    %76 = vector.load %arg8[%c0_74, %c0_75, %c16] : memref<16x16x36xf32, #tpu.memory_space<vmem>>, vector<16x16x4xf32>
    tpu.vector_store %arg8[%c0_74, %c0_75, %c16], %75 {strides = array<i32>} : memref<16x16x36xf32, #tpu.memory_space<vmem>>, vector<16x16x4xf32>,
    %cst_76 = arith.constant 0.000000e+00 : f32
    %77 = vector.broadcast %cst_76 : f32 to vector<16x1x4xf32>
    %c0_77 = arith.constant 0 : index
    %c15_78 = arith.constant 15 : index
    %c20 = arith.constant 20 : index
    %78 = vector.load %arg8[%c0_77, %c15_78, %c20] : memref<16x16x36xf32, #tpu.memory_space<vmem>>, vector<16x1x4xf32>
    tpu.vector_store %arg8[%c0_77, %c15_78, %c20], %77 {strides = array<i32>} : memref<16x16x36xf32, #tpu.memory_space<vmem>>, vector<16x1x4xf32>,
    %c0_79 = arith.constant 0 : index
    %c0_80 = arith.constant 0 : index
    %c1_81 = arith.constant 1 : index
    %c0_82 = arith.constant 0 : index
    %79 = vector.load %arg1[%c0_79, %c0_80, %c1_81, %c0_82] : memref<1x16x16x4xf32, #tpu.memory_space<vmem>>, vector<1x16x15x4xf32>
    %80 = vector.shape_cast %79 : vector<1x16x15x4xf32> to vector<16x15x4xf32>
    %c0_83 = arith.constant 0 : index
    %c0_84 = arith.constant 0 : index
    %81 = vector.load %arg2[%c0_83, %c0_84] : memref<1x4xf32, #tpu.memory_space<vmem>>, vector<1x4xf32>
    %82 = vector.shape_cast %81 : vector<1x4xf32> to vector<1x1x4xf32>
    %83 = vector.broadcast %82 : vector<1x1x4xf32> to vector<16x15x4xf32>
    %84 = arith.mulf %80, %83 : vector<16x15x4xf32>
    %c0_85 = arith.constant 0 : index
    %c0_86 = arith.constant 0 : index
    %85 = vector.load %arg3[%c0_85, %c0_86] : memref<1x4xf32, #tpu.memory_space<vmem>>, vector<1x4xf32>
    %86 = vector.shape_cast %85 : vector<1x4xf32> to vector<1x1x4xf32>
    %87 = vector.broadcast %86 : vector<1x1x4xf32> to vector<16x15x4xf32>
    %88 = arith.addf %84, %87 : vector<16x15x4xf32>
    %cst_87 = arith.constant 0.000000e+00 : f32
    %89 = vector.broadcast %cst_87 : f32 to vector<16x15x4xf32>
    %90 = arith.maximumf %88, %89 : vector<16x15x4xf32>
    %c0_88 = arith.constant 0 : index
    %c0_89 = arith.constant 0 : index
    %c20_90 = arith.constant 20 : index
    %91 = vector.load %arg8[%c0_88, %c0_89, %c20_90] : memref<16x16x36xf32, #tpu.memory_space<vmem>>, vector<16x15x4xf32>
    tpu.vector_store %arg8[%c0_88, %c0_89, %c20_90], %90 {strides = array<i32>} : memref<16x16x36xf32, #tpu.memory_space<vmem>>, vector<16x15x4xf32>,
    %cst_91 = arith.constant 0.000000e+00 : f32
    %92 = vector.broadcast %cst_91 : f32 to vector<1x16x4xf32>
    %c15_92 = arith.constant 15 : index
    %c0_93 = arith.constant 0 : index
    %c24 = arith.constant 24 : index
    %93 = vector.load %arg8[%c15_92, %c0_93, %c24] : memref<16x16x36xf32, #tpu.memory_space<vmem>>, vector<1x16x4xf32>
    tpu.vector_store %arg8[%c15_92, %c0_93, %c24], %92 {strides = array<i32>} : memref<16x16x36xf32, #tpu.memory_space<vmem>>, vector<1x16x4xf32>,
    %cst_94 = arith.constant 0.000000e+00 : f32
    %94 = vector.broadcast %cst_94 : f32 to vector<16x1x4xf32>
    %c0_95 = arith.constant 0 : index
    %c0_96 = arith.constant 0 : index
    %c24_97 = arith.constant 24 : index
    %95 = vector.load %arg8[%c0_95, %c0_96, %c24_97] : memref<16x16x36xf32, #tpu.memory_space<vmem>>, vector<16x1x4xf32>
    tpu.vector_store %arg8[%c0_95, %c0_96, %c24_97], %94 {strides = array<i32>} : memref<16x16x36xf32, #tpu.memory_space<vmem>>, vector<16x1x4xf32>,
    %c0_98 = arith.constant 0 : index
    %c1_99 = arith.constant 1 : index
    %c0_100 = arith.constant 0 : index
    %c0_101 = arith.constant 0 : index
    %96 = vector.load %arg1[%c0_98, %c1_99, %c0_100, %c0_101] : memref<1x16x16x4xf32, #tpu.memory_space<vmem>>, vector<1x15x15x4xf32>
    %97 = vector.shape_cast %96 : vector<1x15x15x4xf32> to vector<15x15x4xf32>
    %c0_102 = arith.constant 0 : index
    %c0_103 = arith.constant 0 : index
    %98 = vector.load %arg2[%c0_102, %c0_103] : memref<1x4xf32, #tpu.memory_space<vmem>>, vector<1x4xf32>
    %99 = vector.shape_cast %98 : vector<1x4xf32> to vector<1x1x4xf32>
    %100 = vector.broadcast %99 : vector<1x1x4xf32> to vector<15x15x4xf32>
    %101 = arith.mulf %97, %100 : vector<15x15x4xf32>
    %c0_104 = arith.constant 0 : index
    %c0_105 = arith.constant 0 : index
    %102 = vector.load %arg3[%c0_104, %c0_105] : memref<1x4xf32, #tpu.memory_space<vmem>>, vector<1x4xf32>
    %103 = vector.shape_cast %102 : vector<1x4xf32> to vector<1x1x4xf32>
    %104 = vector.broadcast %103 : vector<1x1x4xf32> to vector<15x15x4xf32>
    %105 = arith.addf %101, %104 : vector<15x15x4xf32>
    %cst_106 = arith.constant 0.000000e+00 : f32
    %106 = vector.broadcast %cst_106 : f32 to vector<15x15x4xf32>
    %107 = arith.maximumf %105, %106 : vector<15x15x4xf32>
    %c0_107 = arith.constant 0 : index
    %c1_108 = arith.constant 1 : index
    %c24_109 = arith.constant 24 : index
    %108 = vector.load %arg8[%c0_107, %c1_108, %c24_109] : memref<16x16x36xf32, #tpu.memory_space<vmem>>, vector<15x15x4xf32>
    tpu.vector_store %arg8[%c0_107, %c1_108, %c24_109], %107 {strides = array<i32>} : memref<16x16x36xf32, #tpu.memory_space<vmem>>, vector<15x15x4xf32>,
    %cst_110 = arith.constant 0.000000e+00 : f32
    %109 = vector.broadcast %cst_110 : f32 to vector<1x16x4xf32>
    %c15_111 = arith.constant 15 : index
    %c0_112 = arith.constant 0 : index
    %c28 = arith.constant 28 : index
    %110 = vector.load %arg8[%c15_111, %c0_112, %c28] : memref<16x16x36xf32, #tpu.memory_space<vmem>>, vector<1x16x4xf32>
    tpu.vector_store %arg8[%c15_111, %c0_112, %c28], %109 {strides = array<i32>} : memref<16x16x36xf32, #tpu.memory_space<vmem>>, vector<1x16x4xf32>,
    %c0_113 = arith.constant 0 : index
    %c1_114 = arith.constant 1 : index
    %c0_115 = arith.constant 0 : index
    %c0_116 = arith.constant 0 : index
    %111 = vector.load %arg1[%c0_113, %c1_114, %c0_115, %c0_116] : memref<1x16x16x4xf32, #tpu.memory_space<vmem>>, vector<1x15x16x4xf32>
    %112 = vector.shape_cast %111 : vector<1x15x16x4xf32> to vector<15x16x4xf32>
    %c0_117 = arith.constant 0 : index
    %c0_118 = arith.constant 0 : index
    %113 = vector.load %arg2[%c0_117, %c0_118] : memref<1x4xf32, #tpu.memory_space<vmem>>, vector<1x4xf32>
    %114 = vector.shape_cast %113 : vector<1x4xf32> to vector<1x1x4xf32>
    %115 = vector.broadcast %114 : vector<1x1x4xf32> to vector<15x16x4xf32>
    %116 = arith.mulf %112, %115 : vector<15x16x4xf32>
    %c0_119 = arith.constant 0 : index
    %c0_120 = arith.constant 0 : index
    %117 = vector.load %arg3[%c0_119, %c0_120] : memref<1x4xf32, #tpu.memory_space<vmem>>, vector<1x4xf32>
    %118 = vector.shape_cast %117 : vector<1x4xf32> to vector<1x1x4xf32>
    %119 = vector.broadcast %118 : vector<1x1x4xf32> to vector<15x16x4xf32>
    %120 = arith.addf %116, %119 : vector<15x16x4xf32>
    %cst_121 = arith.constant 0.000000e+00 : f32
    %121 = vector.broadcast %cst_121 : f32 to vector<15x16x4xf32>
    %122 = arith.maximumf %120, %121 : vector<15x16x4xf32>
    %c0_122 = arith.constant 0 : index
    %c0_123 = arith.constant 0 : index
    %c28_124 = arith.constant 28 : index
    %123 = vector.load %arg8[%c0_122, %c0_123, %c28_124] : memref<16x16x36xf32, #tpu.memory_space<vmem>>, vector<15x16x4xf32>
    tpu.vector_store %arg8[%c0_122, %c0_123, %c28_124], %122 {strides = array<i32>} : memref<16x16x36xf32, #tpu.memory_space<vmem>>, vector<15x16x4xf32>,
    %cst_125 = arith.constant 0.000000e+00 : f32
    %124 = vector.broadcast %cst_125 : f32 to vector<1x16x4xf32>
    %c15_126 = arith.constant 15 : index
    %c0_127 = arith.constant 0 : index
    %c32 = arith.constant 32 : index
    %125 = vector.load %arg8[%c15_126, %c0_127, %c32] : memref<16x16x36xf32, #tpu.memory_space<vmem>>, vector<1x16x4xf32>
    tpu.vector_store %arg8[%c15_126, %c0_127, %c32], %124 {strides = array<i32>} : memref<16x16x36xf32, #tpu.memory_space<vmem>>, vector<1x16x4xf32>,
    %cst_128 = arith.constant 0.000000e+00 : f32
    %126 = vector.broadcast %cst_128 : f32 to vector<16x1x4xf32>
    %c0_129 = arith.constant 0 : index
    %c15_130 = arith.constant 15 : index
    %c32_131 = arith.constant 32 : index
    %127 = vector.load %arg8[%c0_129, %c15_130, %c32_131] : memref<16x16x36xf32, #tpu.memory_space<vmem>>, vector<16x1x4xf32>
    tpu.vector_store %arg8[%c0_129, %c15_130, %c32_131], %126 {strides = array<i32>} : memref<16x16x36xf32, #tpu.memory_space<vmem>>, vector<16x1x4xf32>,
    %c0_132 = arith.constant 0 : index
    %c1_133 = arith.constant 1 : index
    %c1_134 = arith.constant 1 : index
    %c0_135 = arith.constant 0 : index
    %128 = vector.load %arg1[%c0_132, %c1_133, %c1_134, %c0_135] : memref<1x16x16x4xf32, #tpu.memory_space<vmem>>, vector<1x15x15x4xf32>
    %129 = vector.shape_cast %128 : vector<1x15x15x4xf32> to vector<15x15x4xf32>
    %c0_136 = arith.constant 0 : index
    %c0_137 = arith.constant 0 : index
    %130 = vector.load %arg2[%c0_136, %c0_137] : memref<1x4xf32, #tpu.memory_space<vmem>>, vector<1x4xf32>
    %131 = vector.shape_cast %130 : vector<1x4xf32> to vector<1x1x4xf32>
    %132 = vector.broadcast %131 : vector<1x1x4xf32> to vector<15x15x4xf32>
    %133 = arith.mulf %129, %132 : vector<15x15x4xf32>
    %c0_138 = arith.constant 0 : index
    %c0_139 = arith.constant 0 : index
    %134 = vector.load %arg3[%c0_138, %c0_139] : memref<1x4xf32, #tpu.memory_space<vmem>>, vector<1x4xf32>
    %135 = vector.shape_cast %134 : vector<1x4xf32> to vector<1x1x4xf32>
    %136 = vector.broadcast %135 : vector<1x1x4xf32> to vector<15x15x4xf32>
    %137 = arith.addf %133, %136 : vector<15x15x4xf32>
    %cst_140 = arith.constant 0.000000e+00 : f32
    %138 = vector.broadcast %cst_140 : f32 to vector<15x15x4xf32>
    %139 = arith.maximumf %137, %138 : vector<15x15x4xf32>
    %c0_141 = arith.constant 0 : index
    %c0_142 = arith.constant 0 : index
    %c32_143 = arith.constant 32 : index
    %140 = vector.load %arg8[%c0_141, %c0_142, %c32_143] : memref<16x16x36xf32, #tpu.memory_space<vmem>>, vector<15x15x4xf32>
    tpu.vector_store %arg8[%c0_141, %c0_142, %c32_143], %139 {strides = array<i32>} : memref<16x16x36xf32, #tpu.memory_space<vmem>>, vector<15x15x4xf32>,
    %c0_144 = arith.constant 0 : index
    %c0_145 = arith.constant 0 : index
    %c0_146 = arith.constant 0 : index
    %141 = vector.load %arg8[%c0_144, %c0_145, %c0_146] : memref<16x16x36xf32, #tpu.memory_space<vmem>>, vector<16x16x36xf32>
    %142 = vector.shape_cast %141 : vector<16x16x36xf32> to vector<256x36xf32>
    %c0_147 = arith.constant 0 : index
    %c0_148 = arith.constant 0 : index
    %143 = vector.load %arg4[%c0_147, %c0_148] : memref<36x4xf32, #tpu.memory_space<vmem>>, vector<36x4xf32>
    %cst_149 = arith.constant dense<0.000000e+00> : vector<256x4xf32>
    %144 = tpu.matmul %142, %143, %cst_149 {dimension_numbers = #tpu.dot_dimension_numbers<[1], [0], [0], [1], [0, 0, 1, 1], [], []>} : vector<256x36xf32>, vector<36x4xf32>, vector<256x4xf32> -> vector<256x4xf32>
    %c0_150 = arith.constant 0 : index
    %c0_151 = arith.constant 0 : index
    %145 = vector.load %arg5[%c0_150, %c0_151] : memref<1x4xf32, #tpu.memory_space<vmem>>, vector<1x4xf32>
    %146 = vector.broadcast %145 : vector<1x4xf32> to vector<256x4xf32>
    %147 = arith.addf %144, %146 : vector<256x4xf32>
    %148 = vector.shape_cast %147 : vector<256x4xf32> to vector<1x16x16x4xf32>
    %c0_152 = arith.constant 0 : index
    %c0_153 = arith.constant 0 : index
    %c0_154 = arith.constant 0 : index
    %c0_155 = arith.constant 0 : index
    %149 = vector.load %arg6[%c0_152, %c0_153, %c0_154, %c0_155] : memref<1x16x16x4xf32, #tpu.memory_space<vmem>>, vector<1x16x16x4xf32>
    tpu.vector_store %arg6[%c0_152, %c0_153, %c0_154, %c0_155], %148 {strides = array<i32>} : memref<1x16x16x4xf32, #tpu.memory_space<vmem>>, vector<1x16x16x4xf32>,
    %cst_156 = arith.constant dense<0.000000e+00> : vector<4xf32>
    %150 = vector.multi_reduction <add>, %147, %cst_156 [0] : vector<256x4xf32> to vector<4xf32>
    %151 = vector.shape_cast %150 : vector<4xf32> to vector<1x4xf32>
    %152 = vector.shape_cast %151 : vector<1x4xf32> to vector<1x1x4xf32>
    %c0_157 = arith.constant 0 : index
    %c0_158 = arith.constant 0 : index
    %c0_159 = arith.constant 0 : index
    %153 = vector.load %arg7[%c0_157, %c0_158, %c0_159] : memref<1x2x4xf32, #tpu.memory_space<vmem>>, vector<1x1x4xf32>
    tpu.vector_store %arg7[%c0_157, %c0_158, %c0_159], %152 {strides = array<i32>} : memref<1x2x4xf32, #tpu.memory_space<vmem>>, vector<1x1x4xf32>,
    %154 = arith.mulf %147, %147 : vector<256x4xf32>
    %cst_160 = arith.constant dense<0.000000e+00> : vector<4xf32>
    %155 = vector.multi_reduction <add>, %154, %cst_160 [0] : vector<256x4xf32> to vector<4xf32>
    %156 = vector.shape_cast %155 : vector<4xf32> to vector<1x4xf32>
    %157 = vector.shape_cast %156 : vector<1x4xf32> to vector<1x1x4xf32>
    %c0_161 = arith.constant 0 : index
    %c1_162 = arith.constant 1 : index
    %c0_163 = arith.constant 0 : index
    %158 = vector.load %arg7[%c0_161, %c1_162, %c0_163] : memref<1x2x4xf32, #tpu.memory_space<vmem>>, vector<1x1x4xf32>
    tpu.vector_store %arg7[%c0_161, %c1_162, %c0_163], %157 {strides = array<i32>} : memref<1x2x4xf32, #tpu.memory_space<vmem>>, vector<1x1x4xf32>,
    return
  }
  func.func @transform_0(%arg0: i32) -> (i32, i32, i32, i32) {
    %c0_i32 = arith.constant 0 : i32
    %c0_i32_0 = arith.constant 0 : i32
    %c0_i32_1 = arith.constant 0 : i32
    %c0_i32_2 = arith.constant 0 : i32
    return %arg0, %c0_i32, %c0_i32_0, %c0_i32_1 : i32, i32, i32, i32
  }
  func.func @transform_1(%arg0: i32) -> (i32, i32) {
    %c0_i32 = arith.constant 0 : i32
    %c0_i32_0 = arith.constant 0 : i32
    %c0_i32_1 = arith.constant 0 : i32
    return %c0_i32, %c0_i32_0 : i32, i32
  }
  func.func @transform_2(%arg0: i32) -> (i32, i32) {
    %c0_i32 = arith.constant 0 : i32
    %c0_i32_0 = arith.constant 0 : i32
    %c0_i32_1 = arith.constant 0 : i32
    return %c0_i32, %c0_i32_0 : i32, i32
  }
  func.func @transform_3(%arg0: i32) -> (i32, i32) {
    %c0_i32 = arith.constant 0 : i32
    %c0_i32_0 = arith.constant 0 : i32
    %c0_i32_1 = arith.constant 0 : i32
    return %c0_i32, %c0_i32_0 : i32, i32
  }
  func.func @transform_4(%arg0: i32) -> (i32, i32) {
    %c0_i32 = arith.constant 0 : i32
    %c0_i32_0 = arith.constant 0 : i32
    %c0_i32_1 = arith.constant 0 : i32
    return %c0_i32, %c0_i32_0 : i32, i32
  }
  func.func @transform_5(%arg0: i32) -> (i32, i32, i32, i32) {
    %c0_i32 = arith.constant 0 : i32
    %c0_i32_0 = arith.constant 0 : i32
    %c0_i32_1 = arith.constant 0 : i32
    %c0_i32_2 = arith.constant 0 : i32
    return %arg0, %c0_i32, %c0_i32_0, %c0_i32_1 : i32, i32, i32, i32
  }
  func.func @transform_6(%arg0: i32) -> (i32, i32, i32) {
    %c0_i32 = arith.constant 0 : i32
    %c0_i32_0 = arith.constant 0 : i32
    %c0_i32_1 = arith.constant 0 : i32
    return %arg0, %c0_i32, %c0_i32_0 : i32, i32, i32
  }
}

</mosaic_0001>

<llo_original>
// kernel: residual_forward_nhwc.3
$region0: #{residual_forward_nhwc.3}
  #allocation0 [shape = 'u32[]', space=smem, size = 0x4, offset = 0x4, fixed_abs, tag = 'smem constant byte address 0x4 - core index']
  #allocation1 [shape = 'u32[72,128]{1,0:T(1,128)}', space=vmem, size = 0x9000, scoped, tag = 'internal scratch']
  %s0 = inlined_call_operand.vmem [shape: f32[2,16,16,4], index: 0, kind: input, shape index: {}]
  %s1 = inlined_call_operand.vmem [shape: f32[1,4], index: 1, kind: input, shape index: {}]
  %s2 = inlined_call_operand.vmem [shape: f32[1,4], index: 2, kind: input, shape index: {}]
  %s3 = inlined_call_operand.vmem [shape: f32[4,4], index: 3, kind: input, shape index: {}]
  %s4 = inlined_call_operand.vmem [shape: f32[1,4], index: 4, kind: input, shape index: {}]
  %s5 = inlined_call_operand.vmem [shape: f32[2,16,16,4], index: 5, kind: output, shape index: {0}]
  %s6 = inlined_call_operand.vmem [shape: f32[2,2,4], index: 6, kind: output, shape index: {1}]
  %7 = xla_tuple %s5, %s6
  %s8 = sld [smem:[#allocation0]]
  $region61: #{residual_forward_nhwc.3} parent=0
    _
  %s10 = ssub.s32 1, %s8
  %s11 = scalar_select 0, %s10, %s8
  loop: start=0, step=1, limit=4
  $region2: #{residual_forward_nhwc.3} parent=0 // loop_pre_header
    _
  $region3: #{residual_forward_nhwc.3} parent=0 // loop_header
    %s13 = sphi 0, %s17
    %p14 = scmp.ge.s32.totalorder %s13, 4
    %s23 = sphi 0, %s25
    %s26 = sphi 0, %s23
    %s27 = sphi 0, %s26
    %s43 = sphi 0, %s27
    %s47 = sphi 0, %s47
    %s49 = sphi 0, %s47
    %s50 = sphi 0, %s49
    %s64 = sphi 0, %s50
    %s68 = sphi 0, %s68
    %s70 = sphi 0, %s68
    %s71 = sphi 0, %s70
    %s85 = sphi 0, %s71
    %s89 = sphi 0, %s89
    %s91 = sphi 0, %s89
    %s92 = sphi 0, %s91
    %s106 = sphi 0, %s92
    %s110 = sphi 0, %s110
    %s112 = sphi 0, %s110
    %s113 = sphi 0, %s112
    %s127 = sphi 0, %s113
    %s133 = sphi 0, %s135
    %s136 = sphi 0, %s133
    %s137 = sphi 0, %s136
    %s153 = sphi 0, %s137
    %s159 = sphi 0, %s161
    %s162 = sphi 0, %s159
    %s163 = sphi 0, %s162
    %s179 = sphi 0, %s163
  $region4: #{residual_forward_nhwc.3} parent=0 // loop_header_branch
    %16 = sbr.rel (%p14) target = $region8
  $region5: #{residual_forward_nhwc.3} parent=0 // loop_body
    %s18 = ssub.s32 %s13, 1
    %s19 = ssub.s32 %s13, 2
    %s20 = sadd.s32 %s13, 1
    %s21 = ssub.s32 %s13, %s20
    %p22 = scmp.eq.s32.totalorder %s21, 0
    %s24 = sadd.s32 %s23, 1
    %s25 = scalar_select %p22, %s23, %s24
    %p28 = pneg %p22
    %p29 = scmp.eq.s32.totalorder %s13, 1
    %p30 = por %p28, %p29
    %p31 = scmp.ne.s32.totalorder %s23, %s26
    %p32 = scmp.eq.s32.totalorder %s13, 0
    %p33 = por %p31, %p32
    %p34 = scmp.ne.s32.totalorder %s23, %s26
    %p35 = scmp.eq.s32.totalorder %s18, 1
    %p36 = por %p34, %p35
    %p37 = scmp.ne.s32.totalorder %s26, %s27
    %p38 = scmp.eq.s32.totalorder %s18, 0
    %p39 = por %p37, %p38
    %p40 = scmp.ne.s32.totalorder %s26, %s27
    %p41 = scmp.eq.s32.totalorder %s19, 1
    %p42 = por %p40, %p41
    %p44 = scmp.ne.s32.totalorder %s27, %s43
    %p45 = scmp.eq.s32.totalorder %s19, 0
    %p46 = por %p44, %p45
    %s48 = sadd.s32 %s47, 1
    %p51 = scmp.eq.s32.totalorder %s13, 1
    %p52 = scmp.ne.s32.totalorder %s47, %s49
    %p53 = scmp.eq.s32.totalorder %s13, 0
    %p54 = por %p52, %p53
    %p55 = scmp.ne.s32.totalorder %s47, %s49
    %p56 = scmp.eq.s32.totalorder %s18, 1
    %p57 = por %p55, %p56
    %p58 = scmp.ne.s32.totalorder %s49, %s50
    %p59 = scmp.eq.s32.totalorder %s18, 0
    %p60 = por %p58, %p59
    %p61 = scmp.ne.s32.totalorder %s49, %s50
    %p62 = scmp.eq.s32.totalorder %s19, 1
    %p63 = por %p61, %p62
    %p65 = scmp.ne.s32.totalorder %s50, %s64
    %p66 = scmp.eq.s32.totalorder %s19, 0
    %p67 = por %p65, %p66
    %s69 = sadd.s32 %s68, 1
    %p72 = scmp.eq.s32.totalorder %s13, 1
    %p73 = scmp.ne.s32.totalorder %s68, %s70
    %p74 = scmp.eq.s32.totalorder %s13, 0
    %p75 = por %p73, %p74
    %p76 = scmp.ne.s32.totalorder %s68, %s70
    %p77 = scmp.eq.s32.totalorder %s18, 1
    %p78 = por %p76, %p77
    %p79 = scmp.ne.s32.totalorder %s70, %s71
    %p80 = scmp.eq.s32.totalorder %s18, 0
    %p81 = por %p79, %p80
    %p82 = scmp.ne.s32.totalorder %s70, %s71
    %p83 = scmp.eq.s32.totalorder %s19, 1
    %p84 = por %p82, %p83
    %p86 = scmp.ne.s32.totalorder %s71, %s85
    %p87 = scmp.eq.s32.totalorder %s19, 0
    %p88 = por %p86, %p87
    %s90 = sadd.s32 %s89, 1
    %p93 = scmp.eq.s32.totalorder %s13, 1
    %p94 = scmp.ne.s32.totalorder %s89, %s91
    %p95 = scmp.eq.s32.totalorder %s13, 0
    %p96 = por %p94, %p95
    %p97 = scmp.ne.s32.totalorder %s89, %s91
    %p98 = scmp.eq.s32.totalorder %s18, 1
    %p99 = por %p97, %p98
    %p100 = scmp.ne.s32.totalorder %s91, %s92
    %p101 = scmp.eq.s32.totalorder %s18, 0
    %p102 = por %p100, %p101
    %p103 = scmp.ne.s32.totalorder %s91, %s92
    %p104 = scmp.eq.s32.totalorder %s19, 1
    %p105 = por %p103, %p104
    %p107 = scmp.ne.s32.totalorder %s92, %s106
    %p108 = scmp.eq.s32.totalorder %s19, 0
    %p109 = por %p107, %p108
    %s111 = sadd.s32 %s110, 1
    %p114 = scmp.eq.s32.totalorder %s13, 1
    %p115 = scmp.ne.s32.totalorder %s110, %s112
    %p116 = scmp.eq.s32.totalorder %s13, 0
    %p117 = por %p115, %p116
    %p118 = scmp.ne.s32.totalorder %s110, %s112
    %p119 = scmp.eq.s32.totalorder %s18, 1
    %p120 = por %p118, %p119
    %p121 = scmp.ne.s32.totalorder %s112, %s113
    %p122 = scmp.eq.s32.totalorder %s18, 0
    %p123 = por %p121, %p122
    %p124 = scmp.ne.s32.totalorder %s112, %s113
    %p125 = scmp.eq.s32.totalorder %s19, 1
    %p126 = por %p124, %p125
    %p128 = scmp.ne.s32.totalorder %s113, %s127
    %p129 = scmp.eq.s32.totalorder %s19, 0
    %p130 = por %p128, %p129
    %s131 = ssub.s32 %s13, %s20
    %p132 = scmp.eq.s32.totalorder %s131, 0
    %s134 = sadd.s32 %s133, 1
    %s135 = scalar_select %p132, %s133, %s134
    %p138 = pneg %p132
    %p139 = scmp.eq.s32.totalorder %s13, 1
    %p140 = por %p138, %p139
    %p141 = scmp.ne.s32.totalorder %s133, %s136
    %p142 = scmp.eq.s32.totalorder %s13, 0
    %p143 = por %p141, %p142
    %p144 = scmp.ne.s32.totalorder %s133, %s136
    %p145 = scmp.eq.s32.totalorder %s18, 1
    %p146 = por %p144, %p145
    %p147 = scmp.ne.s32.totalorder %s136, %s137
    %p148 = scmp.eq.s32.totalorder %s18, 0
    %p149 = por %p147, %p148
    %p150 = scmp.ne.s32.totalorder %s136, %s137
    %p151 = scmp.eq.s32.totalorder %s19, 1
    %p152 = por %p150, %p151
    %p154 = scmp.ne.s32.totalorder %s137, %s153
    %p155 = scmp.eq.s32.totalorder %s19, 0
    %p156 = por %p154, %p155
    %s157 = ssub.s32 %s13, %s20
    %p158 = scmp.eq.s32.totalorder %s157, 0
    %s160 = sadd.s32 %s159, 1
    %s161 = scalar_select %p158, %s159, %s160
    %p164 = pneg %p158
    %p165 = scmp.eq.s32.totalorder %s13, 1
    %p166 = por %p164, %p165
    %p167 = scmp.ne.s32.totalorder %s159, %s162
    %p168 = scmp.eq.s32.totalorder %s13, 0
    %p169 = por %p167, %p168
    %p170 = scmp.ne.s32.totalorder %s159, %s162
    %p171 = scmp.eq.s32.totalorder %s18, 1
    %p172 = por %p170, %p171
    %p173 = scmp.ne.s32.totalorder %s162, %s163
    %p174 = scmp.eq.s32.totalorder %s18, 0
    %p175 = por %p173, %p174
    %p176 = scmp.ne.s32.totalorder %s162, %s163
    %p177 = scmp.eq.s32.totalorder %s19, 1
    %p178 = por %p176, %p177
    %p180 = scmp.ne.s32.totalorder %s163, %s179
    %p181 = scmp.eq.s32.totalorder %s19, 0
    %p182 = por %p180, %p181
    %p183 = scmp.le.s32.totalorder 1, %s13
    %p184 = scmp.lt.s32.totalorder %s13, 3
    %p185 = pnand %p183, %p184
    %p186 = pneg %p185
    // Predicated region
    $region9: #{residual_forward_nhwc.3} parent=5 // pred_check
      _
    $region10: #{residual_forward_nhwc.3} parent=5 // pred_check_branch
      %188 = sbr.rel (%p185) target = $region12
    $region11: #{residual_forward_nhwc.3} parent=5 // pred_region
      %s189 = ssub.s32 %s13, 1
      // Predicated region
      $region13: #{residual_forward_nhwc.3} parent=11 // pred_check
        %p190 = pneg %p60
      $region14: #{residual_forward_nhwc.3} parent=11 // pred_check_branch
        %192 = sbr.rel (%p190) target = $region16
      $region15: #{residual_forward_nhwc.3} parent=11 // pred_region
        _
      $region16: #{residual_forward_nhwc.3} parent=11 // pred_fallthru
        _
      // Predicated region
      $region17: #{residual_forward_nhwc.3} parent=11 // pred_check
        %p193 = pneg %p81
      $region18: #{residual_forward_nhwc.3} parent=11 // pred_check_branch
        %195 = sbr.rel (%p193) target = $region20
      $region19: #{residual_forward_nhwc.3} parent=11 // pred_region
        _
      $region20: #{residual_forward_nhwc.3} parent=11 // pred_fallthru
        _
      // Predicated region
      $region21: #{residual_forward_nhwc.3} parent=11 // pred_check
        %p196 = pneg %p102
      $region22: #{residual_forward_nhwc.3} parent=11 // pred_check_branch
        %198 = sbr.rel (%p196) target = $region24
      $region23: #{residual_forward_nhwc.3} parent=11 // pred_region
        _
      $region24: #{residual_forward_nhwc.3} parent=11 // pred_fallthru
        _
      // Predicated region
      $region25: #{residual_forward_nhwc.3} parent=11 // pred_check
        %p199 = pneg %p123
      $region26: #{residual_forward_nhwc.3} parent=11 // pred_check_branch
        %201 = sbr.rel (%p199) target = $region28
      $region27: #{residual_forward_nhwc.3} parent=11 // pred_region
        _
      $region28: #{residual_forward_nhwc.3} parent=11 // pred_fallthru
        _
    $region12: #{residual_forward_nhwc.3} parent=5 // pred_fallthru
      _
    %p202 = scmp.lt.s32.totalorder %s13, 2
    // Predicated region
    $region29: #{residual_forward_nhwc.3} parent=5 // pred_check
      %p203 = pneg %p202
    $region30: #{residual_forward_nhwc.3} parent=5 // pred_check_branch
      %205 = sbr.rel (%p203) target = $region32
    $region31: #{residual_forward_nhwc.3} parent=5 // pred_region
      // Predicated region
      $region33: #{residual_forward_nhwc.3} parent=31 // pred_check
        %p206 = pneg %p33
      $region34: #{residual_forward_nhwc.3} parent=31 // pred_check_branch
        %208 = sbr.rel (%p206) target = $region36
      $region35: #{residual_forward_nhwc.3} parent=31 // pred_region
        %p209 = scmp.lt.s32.totalorder %s13, 1
        %s210 = scalar_select %p209, %s13, 1
        %s211 = smul.addr %s210, 32
        %s212 = smul.addr %s211, 8
        %s213 = scalar_lea.vmem %s0, %s212
      $region36: #{residual_forward_nhwc.3} parent=31 // pred_fallthru
        _
    $region32: #{residual_forward_nhwc.3} parent=5 // pred_fallthru
      _
    %p214 = scmp.le.s32.totalorder 1, %s13
    %p215 = scmp.lt.s32.totalorder %s13, 3
    %p216 = pnand %p214, %p215
    %p217 = pneg %p216
    // Predicated region
    $region37: #{residual_forward_nhwc.3} parent=5 // pred_check
      _
    $region38: #{residual_forward_nhwc.3} parent=5 // pred_check_branch
      %219 = sbr.rel (%p216) target = $region40
    $region39: #{residual_forward_nhwc.3} parent=5 // pred_region
      %s220 = ssub.s32 %s13, 1
      %p221 = scmp.lt.s32.totalorder %s18, 1
      %s222 = scalar_select %p221, %s18, 1
      %s223 = smul.addr %s222, 32
      %s224 = smul.addr %s223, 8
      %s225 = scalar_lea.vmem %s0, %s224
      %p226 = pneg %p39
      %p227 = pneg %p36
      %p228 = pneg %p60
      %p229 = pneg %p57
      %p230 = pneg %p81
      %p231 = pneg %p78
      %p232 = pneg %p102
      %p233 = pneg %p99
      %p234 = pneg %p123
      %p235 = pneg %p120
      %p236 = pneg %p149
      %p237 = pneg %p146
      %p238 = scmp.lt.s32.totalorder %s18, 1
      %s239 = scalar_select %p238, %s18, 1
      %s240 = smul.addr %s239, 32
      %s241 = smul.addr %s240, 8
      %s242 = scalar_lea.vmem %s5, %s241
      %p243 = pneg %p175
      %p244 = pneg %p172
      %p245 = scmp.lt.s32.totalorder %s18, 1
      %s246 = scalar_select %p245, %s18, 1
      %s247 = smul.addr %s246, 2
      %s248 = scalar_lea.vmem %s6, %s247
      %p249 = scmp.lt.s32.totalorder %s18, 1
      %s250 = scalar_select %p249, %s18, 1
      %s251 = smul.addr %s250, 32
      %s252 = smul.addr %s251, 8
      %s253 = scalar_lea.vmem %s0, %s252
      %p254 = scmp.lt.s32.totalorder %s18, 1
      %s255 = scalar_select %p254, %s18, 1
      %s256 = smul.addr %s255, 32
      %s257 = smul.addr %s256, 8
      %s258 = scalar_lea.vmem %s5, %s257
      %p259 = scmp.lt.s32.totalorder %s18, 1
      %s260 = scalar_select %p259, %s18, 1
      %s261 = smul.addr %s260, 2
      %s262 = scalar_lea.vmem %s6, %s261
      %v263 = vld [vmem:[%s253] sm:$0xff]
      %v264 = vld [vmem:[%s253 + $0x8] sm:$0xff]
      %v265 = vld [vmem:[%s253 + $0x10] sm:$0xff]
      %v266 = vld [vmem:[%s253 + $0x18] sm:$0xff]
      %v267 = vld [vmem:[%s253 + $0x20] sm:$0xff]
      %v268 = vld [vmem:[%s253 + $0x28] sm:$0xff]
      %v269 = vld [vmem:[%s253 + $0x30] sm:$0xff]
      %v270 = vld [vmem:[%s253 + $0x38] sm:$0xff]
      %v271 = vld [vmem:[%s253 + $0x40] sm:$0xff]
      %v272 = vld [vmem:[%s253 + $0x48] sm:$0xff]
      %v273 = vld [vmem:[%s253 + $0x50] sm:$0xff]
      %v274 = vld [vmem:[%s253 + $0x58] sm:$0xff]
      %v275 = vld [vmem:[%s253 + $0x60] sm:$0xff]
      %v276 = vld [vmem:[%s253 + $0x68] sm:$0xff]
      %v277 = vld [vmem:[%s253 + $0x70] sm:$0xff]
      %v278 = vld [vmem:[%s253 + $0x78] sm:$0xff]
      %v279 = vld [vmem:[%s253 + $0x80] sm:$0xff]
      %v280 = vld [vmem:[%s253 + $0x88] sm:$0xff]
      %v281 = vld [vmem:[%s253 + $0x90] sm:$0xff]
      %v282 = vld [vmem:[%s253 + $0x98] sm:$0xff]
      %v283 = vld [vmem:[%s253 + $0xa0] sm:$0xff]
      %v284 = vld [vmem:[%s253 + $0xa8] sm:$0xff]
      %v285 = vld [vmem:[%s253 + $0xb0] sm:$0xff]
      %v286 = vld [vmem:[%s253 + $0xb8] sm:$0xff]
      %v287 = vld [vmem:[%s253 + $0xc0] sm:$0xff]
      %v288 = vld [vmem:[%s253 + $0xc8] sm:$0xff]
      %v289 = vld [vmem:[%s253 + $0xd0] sm:$0xff]
      %v290 = vld [vmem:[%s253 + $0xd8] sm:$0xff]
      %v291 = vld [vmem:[%s253 + $0xe0] sm:$0xff]
      %v292 = vld [vmem:[%s253 + $0xe8] sm:$0xff]
      %v293 = vld [vmem:[%s253 + $0xf0] sm:$0xff]
      %v294 = vld [vmem:[%s253 + $0xf8] sm:$0xff]
      %v295 = vld [vmem:[%s1] sm:$0x1]
      %v297 = vperm.slane %v295, 0
      %v299 = vmul.f32 %v263, %v297
      %v300 = vmul.f32 %v264, %v297
      %v301 = vmul.f32 %v265, %v297
      %v302 = vmul.f32 %v266, %v297
      %v303 = vmul.f32 %v267, %v297
      %v304 = vmul.f32 %v268, %v297
      %v305 = vmul.f32 %v269, %v297
      %v306 = vmul.f32 %v270, %v297
      %v307 = vmul.f32 %v271, %v297
      %v308 = vmul.f32 %v272, %v297
      %v309 = vmul.f32 %v273, %v297
      %v310 = vmul.f32 %v274, %v297
      %v311 = vmul.f32 %v275, %v297
      %v312 = vmul.f32 %v276, %v297
      %v313 = vmul.f32 %v277, %v297
      %v314 = vmul.f32 %v278, %v297
      %v315 = vmul.f32 %v279, %v297
      %v316 = vmul.f32 %v280, %v297
      %v317 = vmul.f32 %v281, %v297
      %v318 = vmul.f32 %v282, %v297
      %v319 = vmul.f32 %v283, %v297
      %v320 = vmul.f32 %v284, %v297
      %v321 = vmul.f32 %v285, %v297
      %v322 = vmul.f32 %v286, %v297
      %v323 = vmul.f32 %v287, %v297
      %v324 = vmul.f32 %v288, %v297
      %v325 = vmul.f32 %v289, %v297
      %v326 = vmul.f32 %v290, %v297
      %v327 = vmul.f32 %v291, %v297
      %v328 = vmul.f32 %v292, %v297
      %v329 = vmul.f32 %v293, %v297
      %v330 = vmul.f32 %v294, %v297
      %v331 = vld [vmem:[%s2] sm:$0x1]
      %v333 = vperm.slane %v331, 0
      %v335 = vadd.f32 %v299, %v333
      %v336 = vadd.f32 %v300, %v333
      %v337 = vadd.f32 %v301, %v333
      %v338 = vadd.f32 %v302, %v333
      %v339 = vadd.f32 %v303, %v333
      %v340 = vadd.f32 %v304, %v333
      %v341 = vadd.f32 %v305, %v333
      %v342 = vadd.f32 %v306, %v333
      %v343 = vadd.f32 %v307, %v333
      %v344 = vadd.f32 %v308, %v333
      %v345 = vadd.f32 %v309, %v333
      %v346 = vadd.f32 %v310, %v333
      %v347 = vadd.f32 %v311, %v333
      %v348 = vadd.f32 %v312, %v333
      %v349 = vadd.f32 %v313, %v333
      %v350 = vadd.f32 %v314, %v333
      %v351 = vadd.f32 %v315, %v333
      %v352 = vadd.f32 %v316, %v333
      %v353 = vadd.f32 %v317, %v333
      %v354 = vadd.f32 %v318, %v333
      %v355 = vadd.f32 %v319, %v333
      %v356 = vadd.f32 %v320, %v333
      %v357 = vadd.f32 %v321, %v333
      %v358 = vadd.f32 %v322, %v333
      %v359 = vadd.f32 %v323, %v333
      %v360 = vadd.f32 %v324, %v333
      %v361 = vadd.f32 %v325, %v333
      %v362 = vadd.f32 %v326, %v333
      %v363 = vadd.f32 %v327, %v333
      %v364 = vadd.f32 %v328, %v333
      %v365 = vadd.f32 %v329, %v333
      %v366 = vadd.f32 %v330, %v333
      %v367 = vmax.f32 %v335, 0.0
      %v368 = vmax.f32 %v336, 0.0
      %v369 = vmax.f32 %v337, 0.0
      %v370 = vmax.f32 %v338, 0.0
      %v371 = vmax.f32 %v339, 0.0
      %v372 = vmax.f32 %v340, 0.0
      %v373 = vmax.f32 %v341, 0.0
      %v374 = vmax.f32 %v342, 0.0
      %v375 = vmax.f32 %v343, 0.0
      %v376 = vmax.f32 %v344, 0.0
      %v377 = vmax.f32 %v345, 0.0
      %v378 = vmax.f32 %v346, 0.0
      %v379 = vmax.f32 %v347, 0.0
      %v380 = vmax.f32 %v348, 0.0
      %v381 = vmax.f32 %v349, 0.0
      %v382 = vmax.f32 %v350, 0.0
      %v383 = vmax.f32 %v351, 0.0
      %v384 = vmax.f32 %v352, 0.0
      %v385 = vmax.f32 %v353, 0.0
      %v386 = vmax.f32 %v354, 0.0
      %v387 = vmax.f32 %v355, 0.0
      %v388 = vmax.f32 %v356, 0.0
      %v389 = vmax.f32 %v357, 0.0
      %v390 = vmax.f32 %v358, 0.0
      %v391 = vmax.f32 %v359, 0.0
      %v392 = vmax.f32 %v360, 0.0
      %v393 = vmax.f32 %v361, 0.0
      %v394 = vmax.f32 %v362, 0.0
      %v395 = vmax.f32 %v363, 0.0
      %v396 = vmax.f32 %v364, 0.0
      %v397 = vmax.f32 %v365, 0.0
      %v398 = vmax.f32 %v366, 0.0
      %v399 = vld [vmem:[%s3] sm:$0xf]
      %v400 = vld [vmem:[%s4] sm:$0x1]
      %v402 = vperm.slane %v400, 0
      %vm404 = vcmask 31744
      %v406 = vsel %vm404, %v367, 0
      %v409 = vsel %vm404, %v368, 0
      %v412 = vsel %vm404, %v369, 0
      %v415 = vsel %vm404, %v370, 0
      %v418 = vsel %vm404, %v371, 0
      %v421 = vsel %vm404, %v372, 0
      %v424 = vsel %vm404, %v373, 0
      %v427 = vsel %vm404, %v374, 0
      %v430 = vsel %vm404, %v375, 0
      %v433 = vsel %vm404, %v376, 0
      %v436 = vsel %vm404, %v377, 0
      %v439 = vsel %vm404, %v378, 0
      %v442 = vsel %vm404, %v379, 0
      %v445 = vsel %vm404, %v380, 0
      %v448 = vsel %vm404, %v381, 0
      %v451 = vsel %vm404, %v382, 0
      %v454 = vsel %vm404, %v383, 0
      %v457 = vsel %vm404, %v384, 0
      %v460 = vsel %vm404, %v385, 0
      %v463 = vsel %vm404, %v386, 0
      %v466 = vsel %vm404, %v387, 0
      %v469 = vsel %vm404, %v388, 0
      %v472 = vsel %vm404, %v389, 0
      %v475 = vsel %vm404, %v390, 0
      %v478 = vsel %vm404, %v391, 0
      %v481 = vsel %vm404, %v392, 0
      %v484 = vsel %vm404, %v393, 0
      %v487 = vsel %vm404, %v394, 0
      %v490 = vsel %vm404, %v395, 0
      %v493 = vsel %vm404, %v396, 0
      %v496 = vsel %vm404, %v397, 0
      %v499 = vsel %vm404, %v398, 0
      %vm501 = vcmask 1043456
      %v503 = vsel %vm501, %v399, 0
      %505 = vmatpush.msra.mxu0 0.0
      %506 = vmatpush.msra.mxu0 0.0
      %507 = vmatpush.msra.mxu0 0.0
      %508 = vmatpush.msra.mxu0 0.0
      %509 = vmatpush.msra.mxu0 0.0
      %510 = vmatpush.msra.mxu0 0.0
      %511 = vmatpush.msra.mxu0 0.0
      %512 = vmatpush.msra.mxu0 0.0
      %513 = vmatpush.msra.mxu0 0.0
      %514 = vmatpush.msra.mxu0 0.0
      %515 = vmatpush.msra.mxu0 0.0
      %516 = vmatpush.msra.mxu0 0.0
      %517 = vmatpush.msra.mxu0 0.0
      %518 = vmatpush.msra.mxu0 0.0
      %519 = vmatpush.msra.mxu0 0.0
      %520 = vmatpush.msra.mxu0 %v503
      %521 = vmatmul.f32.gmra.mxu0 %v406
      %v522 = vpop.f32.mrf.mxu0
      %v523 = vadd.f32 %v402, %v522
      %524 = vmatmul.f32.gmra.mxu0 %v409
      %v525 = vpop.f32.mrf.mxu0
      %v526 = vadd.f32 %v402, %v525
      %527 = vmatmul.f32.gmra.mxu0 %v412
      %v528 = vpop.f32.mrf.mxu0
      %v529 = vadd.f32 %v402, %v528
      %530 = vmatmul.f32.gmra.mxu0 %v415
      %v531 = vpop.f32.mrf.mxu0
      %v532 = vadd.f32 %v402, %v531
      %533 = vmatmul.f32.gmra.mxu0 %v418
      %v534 = vpop.f32.mrf.mxu0
      %v535 = vadd.f32 %v402, %v534
      %536 = vmatmul.f32.gmra.mxu0 %v421
      %v537 = vpop.f32.mrf.mxu0
      %v538 = vadd.f32 %v402, %v537
      %539 = vmatmul.f32.gmra.mxu0 %v424
      %v540 = vpop.f32.mrf.mxu0
      %v541 = vadd.f32 %v402, %v540
      %542 = vmatmul.f32.gmra.mxu0 %v427
      %v543 = vpop.f32.mrf.mxu0
      %v544 = vadd.f32 %v402, %v543
      %545 = vmatmul.f32.gmra.mxu0 %v430
      %v546 = vpop.f32.mrf.mxu0
      %v547 = vadd.f32 %v402, %v546
      %548 = vmatmul.f32.gmra.mxu0 %v433
      %v549 = vpop.f32.mrf.mxu0
      %v550 = vadd.f32 %v402, %v549
      %551 = vmatmul.f32.gmra.mxu0 %v436
      %v552 = vpop.f32.mrf.mxu0
      %v553 = vadd.f32 %v402, %v552
      %554 = vmatmul.f32.gmra.mxu0 %v439
      %v555 = vpop.f32.mrf.mxu0
      %v556 = vadd.f32 %v402, %v555
      %557 = vmatmul.f32.gmra.mxu0 %v442
      %v558 = vpop.f32.mrf.mxu0
      %v559 = vadd.f32 %v402, %v558
      %560 = vmatmul.f32.gmra.mxu0 %v445
      %v561 = vpop.f32.mrf.mxu0
      %v562 = vadd.f32 %v402, %v561
      %563 = vmatmul.f32.gmra.mxu0 %v448
      %v564 = vpop.f32.mrf.mxu0
      %v565 = vadd.f32 %v402, %v564
      %566 = vmatmul.f32.gmra.mxu0 %v451
      %v567 = vpop.f32.mrf.mxu0
      %v568 = vadd.f32 %v402, %v567
      %569 = vmatmul.f32.gmra.mxu0 %v454
      %v570 = vpop.f32.mrf.mxu0
      %v571 = vadd.f32 %v402, %v570
      %572 = vmatmul.f32.gmra.mxu0 %v457
      %v573 = vpop.f32.mrf.mxu0
      %v574 = vadd.f32 %v402, %v573
      %575 = vmatmul.f32.gmra.mxu0 %v460
      %v576 = vpop.f32.mrf.mxu0
      %v577 = vadd.f32 %v402, %v576
      %578 = vmatmul.f32.gmra.mxu0 %v463
      %v579 = vpop.f32.mrf.mxu0
      %v580 = vadd.f32 %v402, %v579
      %581 = vmatmul.f32.gmra.mxu0 %v466
      %v582 = vpop.f32.mrf.mxu0
      %v583 = vadd.f32 %v402, %v582
      %584 = vmatmul.f32.gmra.mxu0 %v469
      %v585 = vpop.f32.mrf.mxu0
      %v586 = vadd.f32 %v402, %v585
      %587 = vmatmul.f32.gmra.mxu0 %v472
      %v588 = vpop.f32.mrf.mxu0
      %v589 = vadd.f32 %v402, %v588
      %590 = vmatmul.f32.gmra.mxu0 %v475
      %v591 = vpop.f32.mrf.mxu0
      %v592 = vadd.f32 %v402, %v591
      %593 = vmatmul.f32.gmra.mxu0 %v478
      %v594 = vpop.f32.mrf.mxu0
      %v595 = vadd.f32 %v402, %v594
      %596 = vmatmul.f32.gmra.mxu0 %v481
      %v597 = vpop.f32.mrf.mxu0
      %v598 = vadd.f32 %v402, %v597
      %599 = vmatmul.f32.gmra.mxu0 %v484
      %v600 = vpop.f32.mrf.mxu0
      %v601 = vadd.f32 %v402, %v600
      %602 = vmatmul.f32.gmra.mxu0 %v487
      %v603 = vpop.f32.mrf.mxu0
      %v604 = vadd.f32 %v402, %v603
      %605 = vmatmul.f32.gmra.mxu0 %v490
      %v606 = vpop.f32.mrf.mxu0
      %v607 = vadd.f32 %v402, %v606
      %608 = vmatmul.f32.gmra.mxu0 %v493
      %v609 = vpop.f32.mrf.mxu0
      %v610 = vadd.f32 %v402, %v609
      %611 = vmatmul.f32.gmra.mxu0 %v496
      %v612 = vpop.f32.mrf.mxu0
      %v613 = vadd.f32 %v402, %v612
      %614 = vmatmul.f32.gmra.mxu0 %v499
      %v615 = vpop.f32.mrf.mxu0
      %v616 = vadd.f32 %v402, %v615
      %617 = vdwg.mxu0
      %618 = vst.msk [vmem:[%s258] sm:$0xff] %vm404, %v523
      %619 = vst.msk [vmem:[%s258 + $0x8] sm:$0xff] %vm404, %v526
      %620 = vst.msk [vmem:[%s258 + $0x10] sm:$0xff] %vm404, %v529
      %621 = vst.msk [vmem:[%s258 + $0x18] sm:$0xff] %vm404, %v532
      %622 = vst.msk [vmem:[%s258 + $0x20] sm:$0xff] %vm404, %v535
      %623 = vst.msk [vmem:[%s258 + $0x28] sm:$0xff] %vm404, %v538
      %624 = vst.msk [vmem:[%s258 + $0x30] sm:$0xff] %vm404, %v541
      %625 = vst.msk [vmem:[%s258 + $0x38] sm:$0xff] %vm404, %v544
      %626 = vst.msk [vmem:[%s258 + $0x40] sm:$0xff] %vm404, %v547
      %627 = vst.msk [vmem:[%s258 + $0x48] sm:$0xff] %vm404, %v550
      %628 = vst.msk [vmem:[%s258 + $0x50] sm:$0xff] %vm404, %v553
      %629 = vst.msk [vmem:[%s258 + $0x58] sm:$0xff] %vm404, %v556
      %630 = vst.msk [vmem:[%s258 + $0x60] sm:$0xff] %vm404, %v559
      %631 = vst.msk [vmem:[%s258 + $0x68] sm:$0xff] %vm404, %v562
      %632 = vst.msk [vmem:[%s258 + $0x70] sm:$0xff] %vm404, %v565
      %633 = vst.msk [vmem:[%s258 + $0x78] sm:$0xff] %vm404, %v568
      %634 = vst.msk [vmem:[%s258 + $0x80] sm:$0xff] %vm404, %v571
      %635 = vst.msk [vmem:[%s258 + $0x88] sm:$0xff] %vm404, %v574
      %636 = vst.msk [vmem:[%s258 + $0x90] sm:$0xff] %vm404, %v577
      %637 = vst.msk [vmem:[%s258 + $0x98] sm:$0xff] %vm404, %v580
      %638 = vst.msk [vmem:[%s258 + $0xa0] sm:$0xff] %vm404, %v583
      %639 = vst.msk [vmem:[%s258 + $0xa8] sm:$0xff] %vm404, %v586
      %640 = vst.msk [vmem:[%s258 + $0xb0] sm:$0xff] %vm404, %v589
      %641 = vst.msk [vmem:[%s258 + $0xb8] sm:$0xff] %vm404, %v592
      %642 = vst.msk [vmem:[%s258 + $0xc0] sm:$0xff] %vm404, %v595
      %643 = vst.msk [vmem:[%s258 + $0xc8] sm:$0xff] %vm404, %v598
      %644 = vst.msk [vmem:[%s258 + $0xd0] sm:$0xff] %vm404, %v601
      %645 = vst.msk [vmem:[%s258 + $0xd8] sm:$0xff] %vm404, %v604
      %646 = vst.msk [vmem:[%s258 + $0xe0] sm:$0xff] %vm404, %v607
      %647 = vst.msk [vmem:[%s258 + $0xe8] sm:$0xff] %vm404, %v610
      %648 = vst.msk [vmem:[%s258 + $0xf0] sm:$0xff] %vm404, %v613
      %649 = vst.msk [vmem:[%s258 + $0xf8] sm:$0xff] %vm404, %v616
      %v650 = vsel %vm404, %v523, 0.0
      %v651 = vsel %vm404, %v526, 0.0
      %v652 = vadd.f32 %v650, %v651
      %v653 = vsel %vm404, %v529, 0.0
      %v654 = vadd.f32 %v652, %v653
      %v655 = vsel %vm404, %v532, 0.0
      %v656 = vadd.f32 %v654, %v655
      %v657 = vsel %vm404, %v535, 0.0
      %v658 = vadd.f32 %v656, %v657
      %v659 = vsel %vm404, %v538, 0.0
      %v660 = vadd.f32 %v658, %v659
      %v661 = vsel %vm404, %v541, 0.0
      %v662 = vadd.f32 %v660, %v661
      %v663 = vsel %vm404, %v544, 0.0
      %v664 = vadd.f32 %v662, %v663
      %v665 = vsel %vm404, %v547, 0.0
      %v666 = vadd.f32 %v664, %v665
      %v667 = vsel %vm404, %v550, 0.0
      %v668 = vadd.f32 %v666, %v667
      %v669 = vsel %vm404, %v553, 0.0
      %v670 = vadd.f32 %v668, %v669
      %v671 = vsel %vm404, %v556, 0.0
      %v672 = vadd.f32 %v670, %v671
      %v673 = vsel %vm404, %v559, 0.0
      %v674 = vadd.f32 %v672, %v673
      %v675 = vsel %vm404, %v562, 0.0
      %v676 = vadd.f32 %v674, %v675
      %v677 = vsel %vm404, %v565, 0.0
      %v678 = vadd.f32 %v676, %v677
      %v679 = vsel %vm404, %v568, 0.0
      %v680 = vadd.f32 %v678, %v679
      %v681 = vsel %vm404, %v571, 0.0
      %v682 = vadd.f32 %v680, %v681
      %v683 = vsel %vm404, %v574, 0.0
      %v684 = vadd.f32 %v682, %v683
      %v685 = vsel %vm404, %v577, 0.0
      %v686 = vadd.f32 %v684, %v685
      %v687 = vsel %vm404, %v580, 0.0
      %v688 = vadd.f32 %v686, %v687
      %v689 = vsel %vm404, %v583, 0.0
      %v690 = vadd.f32 %v688, %v689
      %v691 = vsel %vm404, %v586, 0.0
      %v692 = vadd.f32 %v690, %v691
      %v693 = vsel %vm404, %v589, 0.0
      %v694 = vadd.f32 %v692, %v693
      %v695 = vsel %vm404, %v592, 0.0
      %v696 = vadd.f32 %v694, %v695
      %v697 = vsel %vm404, %v595, 0.0
      %v698 = vadd.f32 %v696, %v697
      %v699 = vsel %vm404, %v598, 0.0
      %v700 = vadd.f32 %v698, %v699
      %v701 = vsel %vm404, %v601, 0.0
      %v702 = vadd.f32 %v700, %v701
      %v703 = vsel %vm404, %v604, 0.0
      %v704 = vadd.f32 %v702, %v703
      %v705 = vsel %vm404, %v607, 0.0
      %v706 = vadd.f32 %v704, %v705
      %v707 = vsel %vm404, %v610, 0.0
      %v708 = vadd.f32 %v706, %v707
      %v709 = vsel %vm404, %v613, 0.0
      %v710 = vadd.f32 %v708, %v709
      %v711 = vsel %vm404, %v616, 0.0
      %v712 = vadd.f32 %v710, %v711
      %v713 = vrot.slane %v712, 4
      %v714 = vadd.f32 %v712, %v713
      %v715 = vrot.slane %v714, 2
      %v716 = vadd.f32 %v714, %v715
      %v717 = vrot.slane %v716, 1
      %v718 = vadd.f32 %v716, %v717
      %vm719 = vcmask 24576
      %720 = vst.msk [vmem:[%s262] sm:$0x1] %vm719, %v718
      %v721 = vmul.f32 %v523, %v523
      %v722 = vmul.f32 %v526, %v526
      %v723 = vmul.f32 %v529, %v529
      %v724 = vmul.f32 %v532, %v532
      %v725 = vmul.f32 %v535, %v535
      %v726 = vmul.f32 %v538, %v538
      %v727 = vmul.f32 %v541, %v541
      %v728 = vmul.f32 %v544, %v544
      %v729 = vmul.f32 %v547, %v547
      %v730 = vmul.f32 %v550, %v550
      %v731 = vmul.f32 %v553, %v553
      %v732 = vmul.f32 %v556, %v556
      %v733 = vmul.f32 %v559, %v559
      %v734 = vmul.f32 %v562, %v562
      %v735 = vmul.f32 %v565, %v565
      %v736 = vmul.f32 %v568, %v568
      %v737 = vmul.f32 %v571, %v571
      %v738 = vmul.f32 %v574, %v574
      %v739 = vmul.f32 %v577, %v577
      %v740 = vmul.f32 %v580, %v580
      %v741 = vmul.f32 %v583, %v583
      %v742 = vmul.f32 %v586, %v586
      %v743 = vmul.f32 %v589, %v589
      %v744 = vmul.f32 %v592, %v592
      %v745 = vmul.f32 %v595, %v595
      %v746 = vmul.f32 %v598, %v598
      %v747 = vmul.f32 %v601, %v601
      %v748 = vmul.f32 %v604, %v604
      %v749 = vmul.f32 %v607, %v607
      %v750 = vmul.f32 %v610, %v610
      %v751 = vmul.f32 %v613, %v613
      %v752 = vmul.f32 %v616, %v616
      %v753 = vsel %vm404, %v721, 0.0
      %v754 = vsel %vm404, %v722, 0.0
      %v755 = vadd.f32 %v753, %v754
      %v756 = vsel %vm404, %v723, 0.0
      %v757 = vadd.f32 %v755, %v756
      %v758 = vsel %vm404, %v724, 0.0
      %v759 = vadd.f32 %v757, %v758
      %v760 = vsel %vm404, %v725, 0.0
      %v761 = vadd.f32 %v759, %v760
      %v762 = vsel %vm404, %v726, 0.0
      %v763 = vadd.f32 %v761, %v762
      %v764 = vsel %vm404, %v727, 0.0
      %v765 = vadd.f32 %v763, %v764
      %v766 = vsel %vm404, %v728, 0.0
      %v767 = vadd.f32 %v765, %v766
      %v768 = vsel %vm404, %v729, 0.0
      %v769 = vadd.f32 %v767, %v768
      %v770 = vsel %vm404, %v730, 0.0
      %v771 = vadd.f32 %v769, %v770
      %v772 = vsel %vm404, %v731, 0.0
      %v773 = vadd.f32 %v771, %v772
      %v774 = vsel %vm404, %v732, 0.0
      %v775 = vadd.f32 %v773, %v774
      %v776 = vsel %vm404, %v733, 0.0
      %v777 = vadd.f32 %v775, %v776
      %v778 = vsel %vm404, %v734, 0.0
      %v779 = vadd.f32 %v777, %v778
      %v780 = vsel %vm404, %v735, 0.0
      %v781 = vadd.f32 %v779, %v780
      %v782 = vsel %vm404, %v736, 0.0
      %v783 = vadd.f32 %v781, %v782
      %v784 = vsel %vm404, %v737, 0.0
      %v785 = vadd.f32 %v783, %v784
      %v786 = vsel %vm404, %v738, 0.0
      %v787 = vadd.f32 %v785, %v786
      %v788 = vsel %vm404, %v739, 0.0
      %v789 = vadd.f32 %v787, %v788
      %v790 = vsel %vm404, %v740, 0.0
      %v791 = vadd.f32 %v789, %v790
      %v792 = vsel %vm404, %v741, 0.0
      %v793 = vadd.f32 %v791, %v792
      %v794 = vsel %vm404, %v742, 0.0
      %v795 = vadd.f32 %v793, %v794
      %v796 = vsel %vm404, %v743, 0.0
      %v797 = vadd.f32 %v795, %v796
      %v798 = vsel %vm404, %v744, 0.0
      %v799 = vadd.f32 %v797, %v798
      %v800 = vsel %vm404, %v745, 0.0
      %v801 = vadd.f32 %v799, %v800
      %v802 = vsel %vm404, %v746, 0.0
      %v803 = vadd.f32 %v801, %v802
      %v804 = vsel %vm404, %v747, 0.0
      %v805 = vadd.f32 %v803, %v804
      %v806 = vsel %vm404, %v748, 0.0
      %v807 = vadd.f32 %v805, %v806
      %v808 = vsel %vm404, %v749, 0.0
      %v809 = vadd.f32 %v807, %v808
      %v810 = vsel %vm404, %v750, 0.0
      %v811 = vadd.f32 %v809, %v810
      %v812 = vsel %vm404, %v751, 0.0
      %v813 = vadd.f32 %v811, %v812
      %v814 = vsel %vm404, %v752, 0.0
      %v815 = vadd.f32 %v813, %v814
      %v816 = vrot.slane %v815, 4
      %v817 = vadd.f32 %v815, %v816
      %v818 = vrot.slane %v817, 2
      %v819 = vadd.f32 %v817, %v818
      %v820 = vrot.slane %v819, 1
      %v821 = vadd.f32 %v819, %v820
      %822 = vst.msk [vmem:[%s262 + $0x1] sm:$0x1] %vm719, %v821
      %p823 = scmp.lt.s32.totalorder %s18, 1
      %s824 = scalar_select %p823, %s18, 1
      %s825 = smul.addr %s824, 32
      %s826 = smul.addr %s825, 8
      %s827 = scalar_lea.vmem %s5, %s826
      %p828 = scmp.lt.s32.totalorder %s18, 1
      %s829 = scalar_select %p828, %s18, 1
      %s830 = smul.addr %s829, 2
      %s831 = scalar_lea.vmem %s6, %s830
      // Predicated region
      $region41: #{residual_forward_nhwc.3} parent=39 // pred_check
        %p832 = pneg %p146
      $region42: #{residual_forward_nhwc.3} parent=39 // pred_check_branch
        %834 = sbr.rel (%p832) target = $region44
      $region43: #{residual_forward_nhwc.3} parent=39 // pred_region
        _
      $region44: #{residual_forward_nhwc.3} parent=39 // pred_fallthru
        _
      // Predicated region
      $region45: #{residual_forward_nhwc.3} parent=39 // pred_check
        %p835 = pneg %p172
      $region46: #{residual_forward_nhwc.3} parent=39 // pred_check_branch
        %837 = sbr.rel (%p835) target = $region48
      $region47: #{residual_forward_nhwc.3} parent=39 // pred_region
        _
      $region48: #{residual_forward_nhwc.3} parent=39 // pred_fallthru
        _
    $region40: #{residual_forward_nhwc.3} parent=5 // pred_fallthru
      _
    %p838 = scmp.le.s32.totalorder 2, %s13
    // Predicated region
    $region49: #{residual_forward_nhwc.3} parent=5 // pred_check
      %p839 = pneg %p838
    $region50: #{residual_forward_nhwc.3} parent=5 // pred_check_branch
      %841 = sbr.rel (%p839) target = $region52
    $region51: #{residual_forward_nhwc.3} parent=5 // pred_region
      %s842 = ssub.s32 %s13, 2
      // Predicated region
      $region53: #{residual_forward_nhwc.3} parent=51 // pred_check
        %p843 = pneg %p152
      $region54: #{residual_forward_nhwc.3} parent=51 // pred_check_branch
        %845 = sbr.rel (%p843) target = $region56
      $region55: #{residual_forward_nhwc.3} parent=51 // pred_region
        %p846 = scmp.lt.s32.totalorder %s19, 1
        %s847 = scalar_select %p846, %s19, 1
        %s848 = smul.addr %s847, 32
        %s849 = smul.addr %s848, 8
        %s850 = scalar_lea.vmem %s5, %s849
      $region56: #{residual_forward_nhwc.3} parent=51 // pred_fallthru
        _
      // Predicated region
      $region57: #{residual_forward_nhwc.3} parent=51 // pred_check
        %p851 = pneg %p178
      $region58: #{residual_forward_nhwc.3} parent=51 // pred_check_branch
        %853 = sbr.rel (%p851) target = $region60
      $region59: #{residual_forward_nhwc.3} parent=51 // pred_region
        %p854 = scmp.lt.s32.totalorder %s19, 1
        %s855 = scalar_select %p854, %s19, 1
        %s856 = smul.addr %s855, 2
        %s857 = scalar_lea.vmem %s6, %s856
      $region60: #{residual_forward_nhwc.3} parent=51 // pred_fallthru
        _
    $region52: #{residual_forward_nhwc.3} parent=5 // pred_fallthru
      _
  $region6: #{residual_forward_nhwc.3} parent=0 // loop_footer
    %s17 = sadd.s32 1, %s13
  $region7: #{residual_forward_nhwc.3} parent=0 // loop_footer_branch
    %12 = sbr.rel target = $region3
  $region8: #{residual_forward_nhwc.3} parent=0 // loop_exit
    _

// kernel: residual_forward_nhwc.5
$region0: #{residual_forward_nhwc.5}
  #allocation0 [shape = 'u32[]', space=smem, size = 0x4, offset = 0x4, fixed_abs, tag = 'smem constant byte address 0x4 - core index']
  #allocation1 [shape = 'u32[72,128]{1,0:T(1,128)}', space=vmem, size = 0x9000, scoped, tag = 'internal scratch']
  %s0 = inlined_call_operand.vmem [shape: f32[2,16,16,4], index: 0, kind: input, shape index: {}]
  %s1 = inlined_call_operand.vmem [shape: f32[2,16,16,4], index: 1, kind: input, shape index: {}]
  %s2 = inlined_call_operand.vmem [shape: f32[1,4], index: 2, kind: input, shape index: {}]
  %s3 = inlined_call_operand.vmem [shape: f32[1,4], index: 3, kind: input, shape index: {}]
  %s4 = inlined_call_operand.vmem [shape: f32[4,8], index: 4, kind: input, shape index: {}]
  %s5 = inlined_call_operand.vmem [shape: f32[4,8], index: 5, kind: input, shape index: {}]
  %s6 = inlined_call_operand.vmem [shape: f32[1,8], index: 6, kind: input, shape index: {}]
  %s7 = inlined_call_operand.vmem [shape: f32[2,16,16,8], index: 7, kind: output, shape index: {}]
  %s8 = sld [smem:[#allocation0]]
  $region61: #{residual_forward_nhwc.5} parent=0
    _
  %s10 = ssub.s32 1, %s8
  %s11 = scalar_select 0, %s10, %s8
  loop: start=0, step=1, limit=4
  $region2: #{residual_forward_nhwc.5} parent=0 // loop_pre_header
    _
  $region3: #{residual_forward_nhwc.5} parent=0 // loop_header
    %s13 = sphi 0, %s17
    %p14 = scmp.ge.s32.totalorder %s13, 4
    %s23 = sphi 0, %s25
    %s26 = sphi 0, %s23
    %s27 = sphi 0, %s26
    %s43 = sphi 0, %s27
    %s49 = sphi 0, %s51
    %s52 = sphi 0, %s49
    %s53 = sphi 0, %s52
    %s69 = sphi 0, %s53
    %s73 = sphi 0, %s73
    %s75 = sphi 0, %s73
    %s76 = sphi 0, %s75
    %s90 = sphi 0, %s76
    %s94 = sphi 0, %s94
    %s96 = sphi 0, %s94
    %s97 = sphi 0, %s96
    %s111 = sphi 0, %s97
    %s115 = sphi 0, %s115
    %s117 = sphi 0, %s115
    %s118 = sphi 0, %s117
    %s132 = sphi 0, %s118
    %s136 = sphi 0, %s136
    %s138 = sphi 0, %s136
    %s139 = sphi 0, %s138
    %s153 = sphi 0, %s139
    %s157 = sphi 0, %s157
    %s159 = sphi 0, %s157
    %s160 = sphi 0, %s159
    %s174 = sphi 0, %s160
    %s180 = sphi 0, %s182
    %s183 = sphi 0, %s180
    %s184 = sphi 0, %s183
    %s200 = sphi 0, %s184
  $region4: #{residual_forward_nhwc.5} parent=0 // loop_header_branch
    %16 = sbr.rel (%p14) target = $region8
  $region5: #{residual_forward_nhwc.5} parent=0 // loop_body
    %s18 = ssub.s32 %s13, 1
    %s19 = ssub.s32 %s13, 2
    %s20 = sadd.s32 %s13, 1
    %s21 = ssub.s32 %s13, %s20
    %p22 = scmp.eq.s32.totalorder %s21, 0
    %s24 = sadd.s32 %s23, 1
    %s25 = scalar_select %p22, %s23, %s24
    %p28 = pneg %p22
    %p29 = scmp.eq.s32.totalorder %s13, 1
    %p30 = por %p28, %p29
    %p31 = scmp.ne.s32.totalorder %s23, %s26
    %p32 = scmp.eq.s32.totalorder %s13, 0
    %p33 = por %p31, %p32
    %p34 = scmp.ne.s32.totalorder %s23, %s26
    %p35 = scmp.eq.s32.totalorder %s18, 1
    %p36 = por %p34, %p35
    %p37 = scmp.ne.s32.totalorder %s26, %s27
    %p38 = scmp.eq.s32.totalorder %s18, 0
    %p39 = por %p37, %p38
    %p40 = scmp.ne.s32.totalorder %s26, %s27
    %p41 = scmp.eq.s32.totalorder %s19, 1
    %p42 = por %p40, %p41
    %p44 = scmp.ne.s32.totalorder %s27, %s43
    %p45 = scmp.eq.s32.totalorder %s19, 0
    %p46 = por %p44, %p45
    %s47 = ssub.s32 %s13, %s20
    %p48 = scmp.eq.s32.totalorder %s47, 0
    %s50 = sadd.s32 %s49, 1
    %s51 = scalar_select %p48, %s49, %s50
    %p54 = pneg %p48
    %p55 = scmp.eq.s32.totalorder %s13, 1
    %p56 = por %p54, %p55
    %p57 = scmp.ne.s32.totalorder %s49, %s52
    %p58 = scmp.eq.s32.totalorder %s13, 0
    %p59 = por %p57, %p58
    %p60 = scmp.ne.s32.totalorder %s49, %s52
    %p61 = scmp.eq.s32.totalorder %s18, 1
    %p62 = por %p60, %p61
    %p63 = scmp.ne.s32.totalorder %s52, %s53
    %p64 = scmp.eq.s32.totalorder %s18, 0
    %p65 = por %p63, %p64
    %p66 = scmp.ne.s32.totalorder %s52, %s53
    %p67 = scmp.eq.s32.totalorder %s19, 1
    %p68 = por %p66, %p67
    %p70 = scmp.ne.s32.totalorder %s53, %s69
    %p71 = scmp.eq.s32.totalorder %s19, 0
    %p72 = por %p70, %p71
    %s74 = sadd.s32 %s73, 1
    %p77 = scmp.eq.s32.totalorder %s13, 1
    %p78 = scmp.ne.s32.totalorder %s73, %s75
    %p79 = scmp.eq.s32.totalorder %s13, 0
    %p80 = por %p78, %p79
    %p81 = scmp.ne.s32.totalorder %s73, %s75
    %p82 = scmp.eq.s32.totalorder %s18, 1
    %p83 = por %p81, %p82
    %p84 = scmp.ne.s32.totalorder %s75, %s76
    %p85 = scmp.eq.s32.totalorder %s18, 0
    %p86 = por %p84, %p85
    %p87 = scmp.ne.s32.totalorder %s75, %s76
    %p88 = scmp.eq.s32.totalorder %s19, 1
    %p89 = por %p87, %p88
    %p91 = scmp.ne.s32.totalorder %s76, %s90
    %p92 = scmp.eq.s32.totalorder %s19, 0
    %p93 = por %p91, %p92
    %s95 = sadd.s32 %s94, 1
    %p98 = scmp.eq.s32.totalorder %s13, 1
    %p99 = scmp.ne.s32.totalorder %s94, %s96
    %p100 = scmp.eq.s32.totalorder %s13, 0
    %p101 = por %p99, %p100
    %p102 = scmp.ne.s32.totalorder %s94, %s96
    %p103 = scmp.eq.s32.totalorder %s18, 1
    %p104 = por %p102, %p103
    %p105 = scmp.ne.s32.totalorder %s96, %s97
    %p106 = scmp.eq.s32.totalorder %s18, 0
    %p107 = por %p105, %p106
    %p108 = scmp.ne.s32.totalorder %s96, %s97
    %p109 = scmp.eq.s32.totalorder %s19, 1
    %p110 = por %p108, %p109
    %p112 = scmp.ne.s32.totalorder %s97, %s111
    %p113 = scmp.eq.s32.totalorder %s19, 0
    %p114 = por %p112, %p113
    %s116 = sadd.s32 %s115, 1
    %p119 = scmp.eq.s32.totalorder %s13, 1
    %p120 = scmp.ne.s32.totalorder %s115, %s117
    %p121 = scmp.eq.s32.totalorder %s13, 0
    %p122 = por %p120, %p121
    %p123 = scmp.ne.s32.totalorder %s115, %s117
    %p124 = scmp.eq.s32.totalorder %s18, 1
    %p125 = por %p123, %p124
    %p126 = scmp.ne.s32.totalorder %s117, %s118
    %p127 = scmp.eq.s32.totalorder %s18, 0
    %p128 = por %p126, %p127
    %p129 = scmp.ne.s32.totalorder %s117, %s118
    %p130 = scmp.eq.s32.totalorder %s19, 1
    %p131 = por %p129, %p130
    %p133 = scmp.ne.s32.totalorder %s118, %s132
    %p134 = scmp.eq.s32.totalorder %s19, 0
    %p135 = por %p133, %p134
    %s137 = sadd.s32 %s136, 1
    %p140 = scmp.eq.s32.totalorder %s13, 1
    %p141 = scmp.ne.s32.totalorder %s136, %s138
    %p142 = scmp.eq.s32.totalorder %s13, 0
    %p143 = por %p141, %p142
    %p144 = scmp.ne.s32.totalorder %s136, %s138
    %p145 = scmp.eq.s32.totalorder %s18, 1
    %p146 = por %p144, %p145
    %p147 = scmp.ne.s32.totalorder %s138, %s139
    %p148 = scmp.eq.s32.totalorder %s18, 0
    %p149 = por %p147, %p148
    %p150 = scmp.ne.s32.totalorder %s138, %s139
    %p151 = scmp.eq.s32.totalorder %s19, 1
    %p152 = por %p150, %p151
    %p154 = scmp.ne.s32.totalorder %s139, %s153
    %p155 = scmp.eq.s32.totalorder %s19, 0
    %p156 = por %p154, %p155
    %s158 = sadd.s32 %s157, 1
    %p161 = scmp.eq.s32.totalorder %s13, 1
    %p162 = scmp.ne.s32.totalorder %s157, %s159
    %p163 = scmp.eq.s32.totalorder %s13, 0
    %p164 = por %p162, %p163
    %p165 = scmp.ne.s32.totalorder %s157, %s159
    %p166 = scmp.eq.s32.totalorder %s18, 1
    %p167 = por %p165, %p166
    %p168 = scmp.ne.s32.totalorder %s159, %s160
    %p169 = scmp.eq.s32.totalorder %s18, 0
    %p170 = por %p168, %p169
    %p171 = scmp.ne.s32.totalorder %s159, %s160
    %p172 = scmp.eq.s32.totalorder %s19, 1
    %p173 = por %p171, %p172
    %p175 = scmp.ne.s32.totalorder %s160, %s174
    %p176 = scmp.eq.s32.totalorder %s19, 0
    %p177 = por %p175, %p176
    %s178 = ssub.s32 %s13, %s20
    %p179 = scmp.eq.s32.totalorder %s178, 0
    %s181 = sadd.s32 %s180, 1
    %s182 = scalar_select %p179, %s180, %s181
    %p185 = pneg %p179
    %p186 = scmp.eq.s32.totalorder %s13, 1
    %p187 = por %p185, %p186
    %p188 = scmp.ne.s32.totalorder %s180, %s183
    %p189 = scmp.eq.s32.totalorder %s13, 0
    %p190 = por %p188, %p189
    %p191 = scmp.ne.s32.totalorder %s180, %s183
    %p192 = scmp.eq.s32.totalorder %s18, 1
    %p193 = por %p191, %p192
    %p194 = scmp.ne.s32.totalorder %s183, %s184
    %p195 = scmp.eq.s32.totalorder %s18, 0
    %p196 = por %p194, %p195
    %p197 = scmp.ne.s32.totalorder %s183, %s184
    %p198 = scmp.eq.s32.totalorder %s19, 1
    %p199 = por %p197, %p198
    %p201 = scmp.ne.s32.totalorder %s184, %s200
    %p202 = scmp.eq.s32.totalorder %s19, 0
    %p203 = por %p201, %p202
    %p204 = scmp.le.s32.totalorder 1, %s13
    %p205 = scmp.lt.s32.totalorder %s13, 3
    %p206 = pnand %p204, %p205
    %p207 = pneg %p206
    // Predicated region
    $region9: #{residual_forward_nhwc.5} parent=5 // pred_check
      _
    $region10: #{residual_forward_nhwc.5} parent=5 // pred_check_branch
      %209 = sbr.rel (%p206) target = $region12
    $region11: #{residual_forward_nhwc.5} parent=5 // pred_region
      %s210 = ssub.s32 %s13, 1
      // Predicated region
      $region13: #{residual_forward_nhwc.5} parent=11 // pred_check
        %p211 = pneg %p86
      $region14: #{residual_forward_nhwc.5} parent=11 // pred_check_branch
        %213 = sbr.rel (%p211) target = $region16
      $region15: #{residual_forward_nhwc.5} parent=11 // pred_region
        _
      $region16: #{residual_forward_nhwc.5} parent=11 // pred_fallthru
        _
      // Predicated region
      $region17: #{residual_forward_nhwc.5} parent=11 // pred_check
        %p214 = pneg %p107
      $region18: #{residual_forward_nhwc.5} parent=11 // pred_check_branch
        %216 = sbr.rel (%p214) target = $region20
      $region19: #{residual_forward_nhwc.5} parent=11 // pred_region
        _
      $region20: #{residual_forward_nhwc.5} parent=11 // pred_fallthru
        _
      // Predicated region
      $region21: #{residual_forward_nhwc.5} parent=11 // pred_check
        %p217 = pneg %p128
      $region22: #{residual_forward_nhwc.5} parent=11 // pred_check_branch
        %219 = sbr.rel (%p217) target = $region24
      $region23: #{residual_forward_nhwc.5} parent=11 // pred_region
        _
      $region24: #{residual_forward_nhwc.5} parent=11 // pred_fallthru
        _
      // Predicated region
      $region25: #{residual_forward_nhwc.5} parent=11 // pred_check
        %p220 = pneg %p149
      $region26: #{residual_forward_nhwc.5} parent=11 // pred_check_branch
        %222 = sbr.rel (%p220) target = $region28
      $region27: #{residual_forward_nhwc.5} parent=11 // pred_region
        _
      $region28: #{residual_forward_nhwc.5} parent=11 // pred_fallthru
        _
      // Predicated region
      $region29: #{residual_forward_nhwc.5} parent=11 // pred_check
        %p223 = pneg %p170
      $region30: #{residual_forward_nhwc.5} parent=11 // pred_check_branch
        %225 = sbr.rel (%p223) target = $region32
      $region31: #{residual_forward_nhwc.5} parent=11 // pred_region
        _
      $region32: #{residual_forward_nhwc.5} parent=11 // pred_fallthru
        _
    $region12: #{residual_forward_nhwc.5} parent=5 // pred_fallthru
      _
    %p226 = scmp.lt.s32.totalorder %s13, 2
    // Predicated region
    $region33: #{residual_forward_nhwc.5} parent=5 // pred_check
      %p227 = pneg %p226
    $region34: #{residual_forward_nhwc.5} parent=5 // pred_check_branch
      %229 = sbr.rel (%p227) target = $region36
    $region35: #{residual_forward_nhwc.5} parent=5 // pred_region
      // Predicated region
      $region37: #{residual_forward_nhwc.5} parent=35 // pred_check
        %p230 = pneg %p33
      $region38: #{residual_forward_nhwc.5} parent=35 // pred_check_branch
        %232 = sbr.rel (%p230) target = $region40
      $region39: #{residual_forward_nhwc.5} parent=35 // pred_region
        %p233 = scmp.lt.s32.totalorder %s13, 1
        %s234 = scalar_select %p233, %s13, 1
        %s235 = smul.addr %s234, 32
        %s236 = smul.addr %s235, 8
        %s237 = scalar_lea.vmem %s0, %s236
      $region40: #{residual_forward_nhwc.5} parent=35 // pred_fallthru
        _
      // Predicated region
      $region41: #{residual_forward_nhwc.5} parent=35 // pred_check
        %p238 = pneg %p59
      $region42: #{residual_forward_nhwc.5} parent=35 // pred_check_branch
        %240 = sbr.rel (%p238) target = $region44
      $region43: #{residual_forward_nhwc.5} parent=35 // pred_region
        %p241 = scmp.lt.s32.totalorder %s13, 1
        %s242 = scalar_select %p241, %s13, 1
        %s243 = smul.addr %s242, 32
        %s244 = smul.addr %s243, 8
        %s245 = scalar_lea.vmem %s1, %s244
      $region44: #{residual_forward_nhwc.5} parent=35 // pred_fallthru
        _
    $region36: #{residual_forward_nhwc.5} parent=5 // pred_fallthru
      _
    %p246 = scmp.le.s32.totalorder 1, %s13
    %p247 = scmp.lt.s32.totalorder %s13, 3
    %p248 = pnand %p246, %p247
    %p249 = pneg %p248
    // Predicated region
    $region45: #{residual_forward_nhwc.5} parent=5 // pred_check
      _
    $region46: #{residual_forward_nhwc.5} parent=5 // pred_check_branch
      %251 = sbr.rel (%p248) target = $region48
    $region47: #{residual_forward_nhwc.5} parent=5 // pred_region
      %s252 = ssub.s32 %s13, 1
      %p253 = scmp.lt.s32.totalorder %s18, 1
      %s254 = scalar_select %p253, %s18, 1
      %s255 = smul.addr %s254, 32
      %s256 = smul.addr %s255, 8
      %s257 = scalar_lea.vmem %s0, %s256
      %p258 = pneg %p39
      %p259 = pneg %p36
      %p260 = scmp.lt.s32.totalorder %s18, 1
      %s261 = scalar_select %p260, %s18, 1
      %s262 = smul.addr %s261, 32
      %s263 = smul.addr %s262, 8
      %s264 = scalar_lea.vmem %s1, %s263
      %p265 = pneg %p65
      %p266 = pneg %p62
      %p267 = pneg %p86
      %p268 = pneg %p83
      %p269 = pneg %p107
      %p270 = pneg %p104
      %p271 = pneg %p128
      %p272 = pneg %p125
      %p273 = pneg %p149
      %p274 = pneg %p146
      %p275 = pneg %p170
      %p276 = pneg %p167
      %p277 = pneg %p196
      %p278 = pneg %p193
      %p279 = scmp.lt.s32.totalorder %s18, 1
      %s280 = scalar_select %p279, %s18, 1
      %s281 = smul.addr %s280, 32
      %s282 = smul.addr %s281, 8
      %s283 = scalar_lea.vmem %s7, %s282
      %p284 = scmp.lt.s32.totalorder %s18, 1
      %s285 = scalar_select %p284, %s18, 1
      %s286 = smul.addr %s285, 32
      %s287 = smul.addr %s286, 8
      %s288 = scalar_lea.vmem %s0, %s287
      %p289 = scmp.lt.s32.totalorder %s18, 1
      %s290 = scalar_select %p289, %s18, 1
      %s291 = smul.addr %s290, 32
      %s292 = smul.addr %s291, 8
      %s293 = scalar_lea.vmem %s1, %s292
      %p294 = scmp.lt.s32.totalorder %s18, 1
      %s295 = scalar_select %p294, %s18, 1
      %s296 = smul.addr %s295, 32
      %s297 = smul.addr %s296, 8
      %s298 = scalar_lea.vmem %s7, %s297
      %v299 = vld [vmem:[%s288] sm:$0xff]
      %v300 = vld [vmem:[%s288 + $0x8] sm:$0xff]
      %v301 = vld [vmem:[%s288 + $0x10] sm:$0xff]
      %v302 = vld [vmem:[%s288 + $0x18] sm:$0xff]
      %v303 = vld [vmem:[%s288 + $0x20] sm:$0xff]
      %v304 = vld [vmem:[%s288 + $0x28] sm:$0xff]
      %v305 = vld [vmem:[%s288 + $0x30] sm:$0xff]
      %v306 = vld [vmem:[%s288 + $0x38] sm:$0xff]
      %v307 = vld [vmem:[%s288 + $0x40] sm:$0xff]
      %v308 = vld [vmem:[%s288 + $0x48] sm:$0xff]
      %v309 = vld [vmem:[%s288 + $0x50] sm:$0xff]
      %v310 = vld [vmem:[%s288 + $0x58] sm:$0xff]
      %v311 = vld [vmem:[%s288 + $0x60] sm:$0xff]
      %v312 = vld [vmem:[%s288 + $0x68] sm:$0xff]
      %v313 = vld [vmem:[%s288 + $0x70] sm:$0xff]
      %v314 = vld [vmem:[%s288 + $0x78] sm:$0xff]
      %v315 = vld [vmem:[%s288 + $0x80] sm:$0xff]
      %v316 = vld [vmem:[%s288 + $0x88] sm:$0xff]
      %v317 = vld [vmem:[%s288 + $0x90] sm:$0xff]
      %v318 = vld [vmem:[%s288 + $0x98] sm:$0xff]
      %v319 = vld [vmem:[%s288 + $0xa0] sm:$0xff]
      %v320 = vld [vmem:[%s288 + $0xa8] sm:$0xff]
      %v321 = vld [vmem:[%s288 + $0xb0] sm:$0xff]
      %v322 = vld [vmem:[%s288 + $0xb8] sm:$0xff]
      %v323 = vld [vmem:[%s288 + $0xc0] sm:$0xff]
      %v324 = vld [vmem:[%s288 + $0xc8] sm:$0xff]
      %v325 = vld [vmem:[%s288 + $0xd0] sm:$0xff]
      %v326 = vld [vmem:[%s288 + $0xd8] sm:$0xff]
      %v327 = vld [vmem:[%s288 + $0xe0] sm:$0xff]
      %v328 = vld [vmem:[%s288 + $0xe8] sm:$0xff]
      %v329 = vld [vmem:[%s288 + $0xf0] sm:$0xff]
      %v330 = vld [vmem:[%s288 + $0xf8] sm:$0xff]
      %v331 = vld [vmem:[%s2] sm:$0x1]
      %v333 = vperm.slane %v331, 0
      %v335 = vmul.f32 %v299, %v333
      %v336 = vmul.f32 %v300, %v333
      %v337 = vmul.f32 %v301, %v333
      %v338 = vmul.f32 %v302, %v333
      %v339 = vmul.f32 %v303, %v333
      %v340 = vmul.f32 %v304, %v333
      %v341 = vmul.f32 %v305, %v333
      %v342 = vmul.f32 %v306, %v333
      %v343 = vmul.f32 %v307, %v333
      %v344 = vmul.f32 %v308, %v333
      %v345 = vmul.f32 %v309, %v333
      %v346 = vmul.f32 %v310, %v333
      %v347 = vmul.f32 %v311, %v333
      %v348 = vmul.f32 %v312, %v333
      %v349 = vmul.f32 %v313, %v333
      %v350 = vmul.f32 %v314, %v333
      %v351 = vmul.f32 %v315, %v333
      %v352 = vmul.f32 %v316, %v333
      %v353 = vmul.f32 %v317, %v333
      %v354 = vmul.f32 %v318, %v333
      %v355 = vmul.f32 %v319, %v333
      %v356 = vmul.f32 %v320, %v333
      %v357 = vmul.f32 %v321, %v333
      %v358 = vmul.f32 %v322, %v333
      %v359 = vmul.f32 %v323, %v333
      %v360 = vmul.f32 %v324, %v333
      %v361 = vmul.f32 %v325, %v333
      %v362 = vmul.f32 %v326, %v333
      %v363 = vmul.f32 %v327, %v333
      %v364 = vmul.f32 %v328, %v333
      %v365 = vmul.f32 %v329, %v333
      %v366 = vmul.f32 %v330, %v333
      %v367 = vld [vmem:[%s3] sm:$0x1]
      %v369 = vperm.slane %v367, 0
      %v371 = vadd.f32 %v335, %v369
      %v372 = vadd.f32 %v336, %v369
      %v373 = vadd.f32 %v337, %v369
      %v374 = vadd.f32 %v338, %v369
      %v375 = vadd.f32 %v339, %v369
      %v376 = vadd.f32 %v340, %v369
      %v377 = vadd.f32 %v341, %v369
      %v378 = vadd.f32 %v342, %v369
      %v379 = vadd.f32 %v343, %v369
      %v380 = vadd.f32 %v344, %v369
      %v381 = vadd.f32 %v345, %v369
      %v382 = vadd.f32 %v346, %v369
      %v383 = vadd.f32 %v347, %v369
      %v384 = vadd.f32 %v348, %v369
      %v385 = vadd.f32 %v349, %v369
      %v386 = vadd.f32 %v350, %v369
      %v387 = vadd.f32 %v351, %v369
      %v388 = vadd.f32 %v352, %v369
      %v389 = vadd.f32 %v353, %v369
      %v390 = vadd.f32 %v354, %v369
      %v391 = vadd.f32 %v355, %v369
      %v392 = vadd.f32 %v356, %v369
      %v393 = vadd.f32 %v357, %v369
      %v394 = vadd.f32 %v358, %v369
      %v395 = vadd.f32 %v359, %v369
      %v396 = vadd.f32 %v360, %v369
      %v397 = vadd.f32 %v361, %v369
      %v398 = vadd.f32 %v362, %v369
      %v399 = vadd.f32 %v363, %v369
      %v400 = vadd.f32 %v364, %v369
      %v401 = vadd.f32 %v365, %v369
      %v402 = vadd.f32 %v366, %v369
      %v403 = vmax.f32 %v371, 0.0
      %v404 = vmax.f32 %v372, 0.0
      %v405 = vmax.f32 %v373, 0.0
      %v406 = vmax.f32 %v374, 0.0
      %v407 = vmax.f32 %v375, 0.0
      %v408 = vmax.f32 %v376, 0.0
      %v409 = vmax.f32 %v377, 0.0
      %v410 = vmax.f32 %v378, 0.0
      %v411 = vmax.f32 %v379, 0.0
      %v412 = vmax.f32 %v380, 0.0
      %v413 = vmax.f32 %v381, 0.0
      %v414 = vmax.f32 %v382, 0.0
      %v415 = vmax.f32 %v383, 0.0
      %v416 = vmax.f32 %v384, 0.0
      %v417 = vmax.f32 %v385, 0.0
      %v418 = vmax.f32 %v386, 0.0
      %v419 = vmax.f32 %v387, 0.0
      %v420 = vmax.f32 %v388, 0.0
      %v421 = vmax.f32 %v389, 0.0
      %v422 = vmax.f32 %v390, 0.0
      %v423 = vmax.f32 %v391, 0.0
      %v424 = vmax.f32 %v392, 0.0
      %v425 = vmax.f32 %v393, 0.0
      %v426 = vmax.f32 %v394, 0.0
      %v427 = vmax.f32 %v395, 0.0
      %v428 = vmax.f32 %v396, 0.0
      %v429 = vmax.f32 %v397, 0.0
      %v430 = vmax.f32 %v398, 0.0
      %v431 = vmax.f32 %v399, 0.0
      %v432 = vmax.f32 %v400, 0.0
      %v433 = vmax.f32 %v401, 0.0
      %v434 = vmax.f32 %v402, 0.0
      %v435 = vld [vmem:[%s293] sm:$0xff]
      %v436 = vld [vmem:[%s293 + $0x8] sm:$0xff]
      %v437 = vld [vmem:[%s293 + $0x10] sm:$0xff]
      %v438 = vld [vmem:[%s293 + $0x18] sm:$0xff]
      %v439 = vld [vmem:[%s293 + $0x20] sm:$0xff]
      %v440 = vld [vmem:[%s293 + $0x28] sm:$0xff]
      %v441 = vld [vmem:[%s293 + $0x30] sm:$0xff]
      %v442 = vld [vmem:[%s293 + $0x38] sm:$0xff]
      %v443 = vld [vmem:[%s293 + $0x40] sm:$0xff]
      %v444 = vld [vmem:[%s293 + $0x48] sm:$0xff]
      %v445 = vld [vmem:[%s293 + $0x50] sm:$0xff]
      %v446 = vld [vmem:[%s293 + $0x58] sm:$0xff]
      %v447 = vld [vmem:[%s293 + $0x60] sm:$0xff]
      %v448 = vld [vmem:[%s293 + $0x68] sm:$0xff]
      %v449 = vld [vmem:[%s293 + $0x70] sm:$0xff]
      %v450 = vld [vmem:[%s293 + $0x78] sm:$0xff]
      %v451 = vld [vmem:[%s293 + $0x80] sm:$0xff]
      %v452 = vld [vmem:[%s293 + $0x88] sm:$0xff]
      %v453 = vld [vmem:[%s293 + $0x90] sm:$0xff]
      %v454 = vld [vmem:[%s293 + $0x98] sm:$0xff]
      %v455 = vld [vmem:[%s293 + $0xa0] sm:$0xff]
      %v456 = vld [vmem:[%s293 + $0xa8] sm:$0xff]
      %v457 = vld [vmem:[%s293 + $0xb0] sm:$0xff]
      %v458 = vld [vmem:[%s293 + $0xb8] sm:$0xff]
      %v459 = vld [vmem:[%s293 + $0xc0] sm:$0xff]
      %v460 = vld [vmem:[%s293 + $0xc8] sm:$0xff]
      %v461 = vld [vmem:[%s293 + $0xd0] sm:$0xff]
      %v462 = vld [vmem:[%s293 + $0xd8] sm:$0xff]
      %v463 = vld [vmem:[%s293 + $0xe0] sm:$0xff]
      %v464 = vld [vmem:[%s293 + $0xe8] sm:$0xff]
      %v465 = vld [vmem:[%s293 + $0xf0] sm:$0xff]
      %v466 = vld [vmem:[%s293 + $0xf8] sm:$0xff]
      %v467 = vld [vmem:[%s4] sm:$0xf]
      %v468 = vld [vmem:[%s5] sm:$0xf]
      %vm469 = vcmask 31744
      %v471 = vsel %vm469, %v435, 0
      %v474 = vsel %vm469, %v436, 0
      %v477 = vsel %vm469, %v437, 0
      %v480 = vsel %vm469, %v438, 0
      %v483 = vsel %vm469, %v439, 0
      %v486 = vsel %vm469, %v440, 0
      %v489 = vsel %vm469, %v441, 0
      %v492 = vsel %vm469, %v442, 0
      %v495 = vsel %vm469, %v443, 0
      %v498 = vsel %vm469, %v444, 0
      %v501 = vsel %vm469, %v445, 0
      %v504 = vsel %vm469, %v446, 0
      %v507 = vsel %vm469, %v447, 0
      %v510 = vsel %vm469, %v448, 0
      %v513 = vsel %vm469, %v449, 0
      %v516 = vsel %vm469, %v450, 0
      %v519 = vsel %vm469, %v451, 0
      %v522 = vsel %vm469, %v452, 0
      %v525 = vsel %vm469, %v453, 0
      %v528 = vsel %vm469, %v454, 0
      %v531 = vsel %vm469, %v455, 0
      %v534 = vsel %vm469, %v456, 0
      %v537 = vsel %vm469, %v457, 0
      %v540 = vsel %vm469, %v458, 0
      %v543 = vsel %vm469, %v459, 0
      %v546 = vsel %vm469, %v460, 0
      %v549 = vsel %vm469, %v461, 0
      %v552 = vsel %vm469, %v462, 0
      %v555 = vsel %vm469, %v463, 0
      %v558 = vsel %vm469, %v464, 0
      %v561 = vsel %vm469, %v465, 0
      %v564 = vsel %vm469, %v466, 0
      %vm566 = vcmask 1043456
      %v568 = vsel %vm566, %v468, 0
      %570 = vmatpush.msra.mxu0 0.0
      %571 = vmatpush.msra.mxu0 0.0
      %572 = vmatpush.msra.mxu0 0.0
      %573 = vmatpush.msra.mxu0 0.0
      %574 = vmatpush.msra.mxu0 0.0
      %575 = vmatpush.msra.mxu0 0.0
      %576 = vmatpush.msra.mxu0 0.0
      %577 = vmatpush.msra.mxu0 0.0
      %578 = vmatpush.msra.mxu0 0.0
      %579 = vmatpush.msra.mxu0 0.0
      %580 = vmatpush.msra.mxu0 0.0
      %581 = vmatpush.msra.mxu0 0.0
      %582 = vmatpush.msra.mxu0 0.0
      %583 = vmatpush.msra.mxu0 0.0
      %584 = vmatpush.msra.mxu0 0.0
      %585 = vmatpush.msra.mxu0 %v568
      %586 = vmatmul.f32.gmra.mxu0 %v471
      %v587 = vpop.f32.mrf.mxu0
      %v588 = vadd.f32 0.0, %v587
      %589 = vmatmul.f32.gmra.mxu0 %v474
      %v590 = vpop.f32.mrf.mxu0
      %v591 = vadd.f32 0.0, %v590
      %592 = vmatmul.f32.gmra.mxu0 %v477
      %v593 = vpop.f32.mrf.mxu0
      %v594 = vadd.f32 0.0, %v593
      %595 = vmatmul.f32.gmra.mxu0 %v480
      %v596 = vpop.f32.mrf.mxu0
      %v597 = vadd.f32 0.0, %v596
      %598 = vmatmul.f32.gmra.mxu0 %v483
      %v599 = vpop.f32.mrf.mxu0
      %v600 = vadd.f32 0.0, %v599
      %601 = vmatmul.f32.gmra.mxu0 %v486
      %v602 = vpop.f32.mrf.mxu0
      %v603 = vadd.f32 0.0, %v602
      %604 = vmatmul.f32.gmra.mxu0 %v489
      %v605 = vpop.f32.mrf.mxu0
      %v606 = vadd.f32 0.0, %v605
      %607 = vmatmul.f32.gmra.mxu0 %v492
      %v608 = vpop.f32.mrf.mxu0
      %v609 = vadd.f32 0.0, %v608
      %610 = vmatmul.f32.gmra.mxu0 %v495
      %v611 = vpop.f32.mrf.mxu0
      %v612 = vadd.f32 0.0, %v611
      %613 = vmatmul.f32.gmra.mxu0 %v498
      %v614 = vpop.f32.mrf.mxu0
      %v615 = vadd.f32 0.0, %v614
      %616 = vmatmul.f32.gmra.mxu0 %v501
      %v617 = vpop.f32.mrf.mxu0
      %v618 = vadd.f32 0.0, %v617
      %619 = vmatmul.f32.gmra.mxu0 %v504
      %v620 = vpop.f32.mrf.mxu0
      %v621 = vadd.f32 0.0, %v620
      %622 = vmatmul.f32.gmra.mxu0 %v507
      %v623 = vpop.f32.mrf.mxu0
      %v624 = vadd.f32 0.0, %v623
      %625 = vmatmul.f32.gmra.mxu0 %v510
      %v626 = vpop.f32.mrf.mxu0
      %v627 = vadd.f32 0.0, %v626
      %628 = vmatmul.f32.gmra.mxu0 %v513
      %v629 = vpop.f32.mrf.mxu0
      %v630 = vadd.f32 0.0, %v629
      %631 = vmatmul.f32.gmra.mxu0 %v516
      %v632 = vpop.f32.mrf.mxu0
      %v633 = vadd.f32 0.0, %v632
      %634 = vmatmul.f32.gmra.mxu0 %v519
      %v635 = vpop.f32.mrf.mxu0
      %v636 = vadd.f32 0.0, %v635
      %637 = vmatmul.f32.gmra.mxu0 %v522
      %v638 = vpop.f32.mrf.mxu0
      %v639 = vadd.f32 0.0, %v638
      %640 = vmatmul.f32.gmra.mxu0 %v525
      %v641 = vpop.f32.mrf.mxu0
      %v642 = vadd.f32 0.0, %v641
      %643 = vmatmul.f32.gmra.mxu0 %v528
      %v644 = vpop.f32.mrf.mxu0
      %v645 = vadd.f32 0.0, %v644
      %646 = vmatmul.f32.gmra.mxu0 %v531
      %v647 = vpop.f32.mrf.mxu0
      %v648 = vadd.f32 0.0, %v647
      %649 = vmatmul.f32.gmra.mxu0 %v534
      %v650 = vpop.f32.mrf.mxu0
      %v651 = vadd.f32 0.0, %v650
      %652 = vmatmul.f32.gmra.mxu0 %v537
      %v653 = vpop.f32.mrf.mxu0
      %v654 = vadd.f32 0.0, %v653
      %655 = vmatmul.f32.gmra.mxu0 %v540
      %v656 = vpop.f32.mrf.mxu0
      %v657 = vadd.f32 0.0, %v656
      %658 = vmatmul.f32.gmra.mxu0 %v543
      %v659 = vpop.f32.mrf.mxu0
      %v660 = vadd.f32 0.0, %v659
      %661 = vmatmul.f32.gmra.mxu0 %v546
      %v662 = vpop.f32.mrf.mxu0
      %v663 = vadd.f32 0.0, %v662
      %664 = vmatmul.f32.gmra.mxu0 %v549
      %v665 = vpop.f32.mrf.mxu0
      %v666 = vadd.f32 0.0, %v665
      %667 = vmatmul.f32.gmra.mxu0 %v552
      %v668 = vpop.f32.mrf.mxu0
      %v669 = vadd.f32 0.0, %v668
      %670 = vmatmul.f32.gmra.mxu0 %v555
      %v671 = vpop.f32.mrf.mxu0
      %v672 = vadd.f32 0.0, %v671
      %673 = vmatmul.f32.gmra.mxu0 %v558
      %v674 = vpop.f32.mrf.mxu0
      %v675 = vadd.f32 0.0, %v674
      %676 = vmatmul.f32.gmra.mxu0 %v561
      %v677 = vpop.f32.mrf.mxu0
      %v678 = vadd.f32 0.0, %v677
      %679 = vmatmul.f32.gmra.mxu0 %v564
      %v680 = vpop.f32.mrf.mxu0
      %v681 = vadd.f32 0.0, %v680
      %682 = vdwg.mxu0
      %v684 = vsel %vm469, %v403, 0
      %v687 = vsel %vm469, %v404, 0
      %v690 = vsel %vm469, %v405, 0
      %v693 = vsel %vm469, %v406, 0
      %v696 = vsel %vm469, %v407, 0
      %v699 = vsel %vm469, %v408, 0
      %v702 = vsel %vm469, %v409, 0
      %v705 = vsel %vm469, %v410, 0
      %v708 = vsel %vm469, %v411, 0
      %v711 = vsel %vm469, %v412, 0
      %v714 = vsel %vm469, %v413, 0
      %v717 = vsel %vm469, %v414, 0
      %v720 = vsel %vm469, %v415, 0
      %v723 = vsel %vm469, %v416, 0
      %v726 = vsel %vm469, %v417, 0
      %v729 = vsel %vm469, %v418, 0
      %v732 = vsel %vm469, %v419, 0
      %v735 = vsel %vm469, %v420, 0
      %v738 = vsel %vm469, %v421, 0
      %v741 = vsel %vm469, %v422, 0
      %v744 = vsel %vm469, %v423, 0
      %v747 = vsel %vm469, %v424, 0
      %v750 = vsel %vm469, %v425, 0
      %v753 = vsel %vm469, %v426, 0
      %v756 = vsel %vm469, %v427, 0
      %v759 = vsel %vm469, %v428, 0
      %v762 = vsel %vm469, %v429, 0
      %v765 = vsel %vm469, %v430, 0
      %v768 = vsel %vm469, %v431, 0
      %v771 = vsel %vm469, %v432, 0
      %v774 = vsel %vm469, %v433, 0
      %v777 = vsel %vm469, %v434, 0
      %v780 = vsel %vm566, %v467, 0
      %782 = vmatpush.msra.mxu0 0.0
      %783 = vmatpush.msra.mxu0 0.0
      %784 = vmatpush.msra.mxu0 0.0
      %785 = vmatpush.msra.mxu0 0.0
      %786 = vmatpush.msra.mxu0 0.0
      %787 = vmatpush.msra.mxu0 0.0
      %788 = vmatpush.msra.mxu0 0.0
      %789 = vmatpush.msra.mxu0 0.0
      %790 = vmatpush.msra.mxu0 0.0
      %791 = vmatpush.msra.mxu0 0.0
      %792 = vmatpush.msra.mxu0 0.0
      %793 = vmatpush.msra.mxu0 0.0
      %794 = vmatpush.msra.mxu0 0.0
      %795 = vmatpush.msra.mxu0 0.0
      %796 = vmatpush.msra.mxu0 0.0
      %797 = vmatpush.msra.mxu0 %v780
      %798 = vmatmul.f32.gmra.mxu0 %v684
      %v799 = vpop.f32.mrf.mxu0
      %v800 = vadd.f32 %v588, %v799
      %801 = vmatmul.f32.gmra.mxu0 %v687
      %v802 = vpop.f32.mrf.mxu0
      %v803 = vadd.f32 %v591, %v802
      %804 = vmatmul.f32.gmra.mxu0 %v690
      %v805 = vpop.f32.mrf.mxu0
      %v806 = vadd.f32 %v594, %v805
      %807 = vmatmul.f32.gmra.mxu0 %v693
      %v808 = vpop.f32.mrf.mxu0
      %v809 = vadd.f32 %v597, %v808
      %810 = vmatmul.f32.gmra.mxu0 %v696
      %v811 = vpop.f32.mrf.mxu0
      %v812 = vadd.f32 %v600, %v811
      %813 = vmatmul.f32.gmra.mxu0 %v699
      %v814 = vpop.f32.mrf.mxu0
      %v815 = vadd.f32 %v603, %v814
      %816 = vmatmul.f32.gmra.mxu0 %v702
      %v817 = vpop.f32.mrf.mxu0
      %v818 = vadd.f32 %v606, %v817
      %819 = vmatmul.f32.gmra.mxu0 %v705
      %v820 = vpop.f32.mrf.mxu0
      %v821 = vadd.f32 %v609, %v820
      %822 = vmatmul.f32.gmra.mxu0 %v708
      %v823 = vpop.f32.mrf.mxu0
      %v824 = vadd.f32 %v612, %v823
      %825 = vmatmul.f32.gmra.mxu0 %v711
      %v826 = vpop.f32.mrf.mxu0
      %v827 = vadd.f32 %v615, %v826
      %828 = vmatmul.f32.gmra.mxu0 %v714
      %v829 = vpop.f32.mrf.mxu0
      %v830 = vadd.f32 %v618, %v829
      %831 = vmatmul.f32.gmra.mxu0 %v717
      %v832 = vpop.f32.mrf.mxu0
      %v833 = vadd.f32 %v621, %v832
      %834 = vmatmul.f32.gmra.mxu0 %v720
      %v835 = vpop.f32.mrf.mxu0
      %v836 = vadd.f32 %v624, %v835
      %837 = vmatmul.f32.gmra.mxu0 %v723
      %v838 = vpop.f32.mrf.mxu0
      %v839 = vadd.f32 %v627, %v838
      %840 = vmatmul.f32.gmra.mxu0 %v726
      %v841 = vpop.f32.mrf.mxu0
      %v842 = vadd.f32 %v630, %v841
      %843 = vmatmul.f32.gmra.mxu0 %v729
      %v844 = vpop.f32.mrf.mxu0
      %v845 = vadd.f32 %v633, %v844
      %846 = vmatmul.f32.gmra.mxu0 %v732
      %v847 = vpop.f32.mrf.mxu0
      %v848 = vadd.f32 %v636, %v847
      %849 = vmatmul.f32.gmra.mxu0 %v735
      %v850 = vpop.f32.mrf.mxu0
      %v851 = vadd.f32 %v639, %v850
      %852 = vmatmul.f32.gmra.mxu0 %v738
      %v853 = vpop.f32.mrf.mxu0
      %v854 = vadd.f32 %v642, %v853
      %855 = vmatmul.f32.gmra.mxu0 %v741
      %v856 = vpop.f32.mrf.mxu0
      %v857 = vadd.f32 %v645, %v856
      %858 = vmatmul.f32.gmra.mxu0 %v744
      %v859 = vpop.f32.mrf.mxu0
      %v860 = vadd.f32 %v648, %v859
      %861 = vmatmul.f32.gmra.mxu0 %v747
      %v862 = vpop.f32.mrf.mxu0
      %v863 = vadd.f32 %v651, %v862
      %864 = vmatmul.f32.gmra.mxu0 %v750
      %v865 = vpop.f32.mrf.mxu0
      %v866 = vadd.f32 %v654, %v865
      %867 = vmatmul.f32.gmra.mxu0 %v753
      %v868 = vpop.f32.mrf.mxu0
      %v869 = vadd.f32 %v657, %v868
      %870 = vmatmul.f32.gmra.mxu0 %v756
      %v871 = vpop.f32.mrf.mxu0
      %v872 = vadd.f32 %v660, %v871
      %873 = vmatmul.f32.gmra.mxu0 %v759
      %v874 = vpop.f32.mrf.mxu0
      %v875 = vadd.f32 %v663, %v874
      %876 = vmatmul.f32.gmra.mxu0 %v762
      %v877 = vpop.f32.mrf.mxu0
      %v878 = vadd.f32 %v666, %v877
      %879 = vmatmul.f32.gmra.mxu0 %v765
      %v880 = vpop.f32.mrf.mxu0
      %v881 = vadd.f32 %v669, %v880
      %882 = vmatmul.f32.gmra.mxu0 %v768
      %v883 = vpop.f32.mrf.mxu0
      %v884 = vadd.f32 %v672, %v883
      %885 = vmatmul.f32.gmra.mxu0 %v771
      %v886 = vpop.f32.mrf.mxu0
      %v887 = vadd.f32 %v675, %v886
      %888 = vmatmul.f32.gmra.mxu0 %v774
      %v889 = vpop.f32.mrf.mxu0
      %v890 = vadd.f32 %v678, %v889
      %891 = vmatmul.f32.gmra.mxu0 %v777
      %v892 = vpop.f32.mrf.mxu0
      %v893 = vadd.f32 %v681, %v892
      %894 = vdwg.mxu0
      %v895 = vld [vmem:[%s6] sm:$0x1]
      %v897 = vperm.slane %v895, 0
      %v899 = vadd.f32 %v800, %v897
      %v900 = vadd.f32 %v803, %v897
      %v901 = vadd.f32 %v806, %v897
      %v902 = vadd.f32 %v809, %v897
      %v903 = vadd.f32 %v812, %v897
      %v904 = vadd.f32 %v815, %v897
      %v905 = vadd.f32 %v818, %v897
      %v906 = vadd.f32 %v821, %v897
      %v907 = vadd.f32 %v824, %v897
      %v908 = vadd.f32 %v827, %v897
      %v909 = vadd.f32 %v830, %v897
      %v910 = vadd.f32 %v833, %v897
      %v911 = vadd.f32 %v836, %v897
      %v912 = vadd.f32 %v839, %v897
      %v913 = vadd.f32 %v842, %v897
      %v914 = vadd.f32 %v845, %v897
      %v915 = vadd.f32 %v848, %v897
      %v916 = vadd.f32 %v851, %v897
      %v917 = vadd.f32 %v854, %v897
      %v918 = vadd.f32 %v857, %v897
      %v919 = vadd.f32 %v860, %v897
      %v920 = vadd.f32 %v863, %v897
      %v921 = vadd.f32 %v866, %v897
      %v922 = vadd.f32 %v869, %v897
      %v923 = vadd.f32 %v872, %v897
      %v924 = vadd.f32 %v875, %v897
      %v925 = vadd.f32 %v878, %v897
      %v926 = vadd.f32 %v881, %v897
      %v927 = vadd.f32 %v884, %v897
      %v928 = vadd.f32 %v887, %v897
      %v929 = vadd.f32 %v890, %v897
      %v930 = vadd.f32 %v893, %v897
      %vm931 = vcmask 64512
      %932 = vst.msk [vmem:[%s298] sm:$0xff] %vm931, %v899
      %933 = vst.msk [vmem:[%s298 + $0x8] sm:$0xff] %vm931, %v900
      %934 = vst.msk [vmem:[%s298 + $0x10] sm:$0xff] %vm931, %v901
      %935 = vst.msk [vmem:[%s298 + $0x18] sm:$0xff] %vm931, %v902
      %936 = vst.msk [vmem:[%s298 + $0x20] sm:$0xff] %vm931, %v903
      %937 = vst.msk [vmem:[%s298 + $0x28] sm:$0xff] %vm931, %v904
      %938 = vst.msk [vmem:[%s298 + $0x30] sm:$0xff] %vm931, %v905
      %939 = vst.msk [vmem:[%s298 + $0x38] sm:$0xff] %vm931, %v906
      %940 = vst.msk [vmem:[%s298 + $0x40] sm:$0xff] %vm931, %v907
      %941 = vst.msk [vmem:[%s298 + $0x48] sm:$0xff] %vm931, %v908
      %942 = vst.msk [vmem:[%s298 + $0x50] sm:$0xff] %vm931, %v909
      %943 = vst.msk [vmem:[%s298 + $0x58] sm:$0xff] %vm931, %v910
      %944 = vst.msk [vmem:[%s298 + $0x60] sm:$0xff] %vm931, %v911
      %945 = vst.msk [vmem:[%s298 + $0x68] sm:$0xff] %vm931, %v912
      %946 = vst.msk [vmem:[%s298 + $0x70] sm:$0xff] %vm931, %v913
      %947 = vst.msk [vmem:[%s298 + $0x78] sm:$0xff] %vm931, %v914
      %948 = vst.msk [vmem:[%s298 + $0x80] sm:$0xff] %vm931, %v915
      %949 = vst.msk [vmem:[%s298 + $0x88] sm:$0xff] %vm931, %v916
      %950 = vst.msk [vmem:[%s298 + $0x90] sm:$0xff] %vm931, %v917
      %951 = vst.msk [vmem:[%s298 + $0x98] sm:$0xff] %vm931, %v918
      %952 = vst.msk [vmem:[%s298 + $0xa0] sm:$0xff] %vm931, %v919
      %953 = vst.msk [vmem:[%s298 + $0xa8] sm:$0xff] %vm931, %v920
      %954 = vst.msk [vmem:[%s298 + $0xb0] sm:$0xff] %vm931, %v921
      %955 = vst.msk [vmem:[%s298 + $0xb8] sm:$0xff] %vm931, %v922
      %956 = vst.msk [vmem:[%s298 + $0xc0] sm:$0xff] %vm931, %v923
      %957 = vst.msk [vmem:[%s298 + $0xc8] sm:$0xff] %vm931, %v924
      %958 = vst.msk [vmem:[%s298 + $0xd0] sm:$0xff] %vm931, %v925
      %959 = vst.msk [vmem:[%s298 + $0xd8] sm:$0xff] %vm931, %v926
      %960 = vst.msk [vmem:[%s298 + $0xe0] sm:$0xff] %vm931, %v927
      %961 = vst.msk [vmem:[%s298 + $0xe8] sm:$0xff] %vm931, %v928
      %962 = vst.msk [vmem:[%s298 + $0xf0] sm:$0xff] %vm931, %v929
      %963 = vst.msk [vmem:[%s298 + $0xf8] sm:$0xff] %vm931, %v930
      %p964 = scmp.lt.s32.totalorder %s18, 1
      %s965 = scalar_select %p964, %s18, 1
      %s966 = smul.addr %s965, 32
      %s967 = smul.addr %s966, 8
      %s968 = scalar_lea.vmem %s7, %s967
      // Predicated region
      $region49: #{residual_forward_nhwc.5} parent=47 // pred_check
        %p969 = pneg %p193
      $region50: #{residual_forward_nhwc.5} parent=47 // pred_check_branch
        %971 = sbr.rel (%p969) target = $region52
      $region51: #{residual_forward_nhwc.5} parent=47 // pred_region
        _
      $region52: #{residual_forward_nhwc.5} parent=47 // pred_fallthru
        _
    $region48: #{residual_forward_nhwc.5} parent=5 // pred_fallthru
      _
    %p972 = scmp.le.s32.totalorder 2, %s13
    // Predicated region
    $region53: #{residual_forward_nhwc.5} parent=5 // pred_check
      %p973 = pneg %p972
    $region54: #{residual_forward_nhwc.5} parent=5 // pred_check_branch
      %975 = sbr.rel (%p973) target = $region56
    $region55: #{residual_forward_nhwc.5} parent=5 // pred_region
      %s976 = ssub.s32 %s13, 2
      // Predicated region
      $region57: #{residual_forward_nhwc.5} parent=55 // pred_check
        %p977 = pneg %p199
      $region58: #{residual_forward_nhwc.5} parent=55 // pred_check_branch
        %979 = sbr.rel (%p977) target = $region60
      $region59: #{residual_forward_nhwc.5} parent=55 // pred_region
        %p980 = scmp.lt.s32.totalorder %s19, 1
        %s981 = scalar_select %p980, %s19, 1
        %s982 = smul.addr %s981, 32
        %s983 = smul.addr %s982, 8
        %s984 = scalar_lea.vmem %s7, %s983
      $region60: #{residual_forward_nhwc.5} parent=55 // pred_fallthru
        _
    $region56: #{residual_forward_nhwc.5} parent=5 // pred_fallthru
      _
  $region6: #{residual_forward_nhwc.5} parent=0 // loop_footer
    %s17 = sadd.s32 1, %s13
  $region7: #{residual_forward_nhwc.5} parent=0 // loop_footer_branch
    %12 = sbr.rel target = $region3
  $region8: #{residual_forward_nhwc.5} parent=0 // loop_exit
    _

// kernel: residual_forward_nhwc.4
$region0: #{residual_forward_nhwc.4}
  #allocation0 [shape = 'u32[]', space=smem, size = 0x4, offset = 0x4, fixed_abs, tag = 'smem constant byte address 0x4 - core index']
  #allocation1 [shape = 'u32[72,128]{1,0:T(1,128)}', space=vmem, size = 0x9000, scoped, tag = 'internal scratch']
  #allocation2 [shape = 'f32[16,16,36]{2,1,0:T(8,128)}', space=vmem, size = 0x20000, scoped, tag = 'scratch operand']
  %s0 = inlined_call_operand.vmem [shape: f32[2,16,16,4], index: 0, kind: input, shape index: {}]
  %s1 = inlined_call_operand.vmem [shape: f32[1,4], index: 1, kind: input, shape index: {}]
  %s2 = inlined_call_operand.vmem [shape: f32[1,4], index: 2, kind: input, shape index: {}]
  %s3 = inlined_call_operand.vmem [shape: f32[36,4], index: 3, kind: input, shape index: {}]
  %s4 = inlined_call_operand.vmem [shape: f32[1,4], index: 4, kind: input, shape index: {}]
  %s5 = inlined_call_operand.vmem [shape: f32[2,16,16,4], index: 5, kind: output, shape index: {0}]
  %s6 = inlined_call_operand.vmem [shape: f32[2,2,4], index: 6, kind: output, shape index: {1}]
  %7 = xla_tuple %s5, %s6
  %s8 = sld [smem:[#allocation0]]
  $region61: #{residual_forward_nhwc.4} parent=0
    _
  %s10 = ssub.s32 1, %s8
  %s11 = scalar_select 0, %s10, %s8
  loop: start=0, step=1, limit=4
  $region2: #{residual_forward_nhwc.4} parent=0 // loop_pre_header
    _
  $region3: #{residual_forward_nhwc.4} parent=0 // loop_header
    %s13 = sphi 0, %s17
    %p14 = scmp.ge.s32.totalorder %s13, 4
    %s23 = sphi 0, %s25
    %s26 = sphi 0, %s23
    %s27 = sphi 0, %s26
    %s43 = sphi 0, %s27
    %s47 = sphi 0, %s47
    %s49 = sphi 0, %s47
    %s50 = sphi 0, %s49
    %s64 = sphi 0, %s50
    %s68 = sphi 0, %s68
    %s70 = sphi 0, %s68
    %s71 = sphi 0, %s70
    %s85 = sphi 0, %s71
    %s89 = sphi 0, %s89
    %s91 = sphi 0, %s89
    %s92 = sphi 0, %s91
    %s106 = sphi 0, %s92
    %s110 = sphi 0, %s110
    %s112 = sphi 0, %s110
    %s113 = sphi 0, %s112
    %s127 = sphi 0, %s113
    %s133 = sphi 0, %s135
    %s136 = sphi 0, %s133
    %s137 = sphi 0, %s136
    %s153 = sphi 0, %s137
    %s159 = sphi 0, %s161
    %s162 = sphi 0, %s159
    %s163 = sphi 0, %s162
    %s179 = sphi 0, %s163
  $region4: #{residual_forward_nhwc.4} parent=0 // loop_header_branch
    %16 = sbr.rel (%p14) target = $region8
  $region5: #{residual_forward_nhwc.4} parent=0 // loop_body
    %s18 = ssub.s32 %s13, 1
    %s19 = ssub.s32 %s13, 2
    %s20 = sadd.s32 %s13, 1
    %s21 = ssub.s32 %s13, %s20
    %p22 = scmp.eq.s32.totalorder %s21, 0
    %s24 = sadd.s32 %s23, 1
    %s25 = scalar_select %p22, %s23, %s24
    %p28 = pneg %p22
    %p29 = scmp.eq.s32.totalorder %s13, 1
    %p30 = por %p28, %p29
    %p31 = scmp.ne.s32.totalorder %s23, %s26
    %p32 = scmp.eq.s32.totalorder %s13, 0
    %p33 = por %p31, %p32
    %p34 = scmp.ne.s32.totalorder %s23, %s26
    %p35 = scmp.eq.s32.totalorder %s18, 1
    %p36 = por %p34, %p35
    %p37 = scmp.ne.s32.totalorder %s26, %s27
    %p38 = scmp.eq.s32.totalorder %s18, 0
    %p39 = por %p37, %p38
    %p40 = scmp.ne.s32.totalorder %s26, %s27
    %p41 = scmp.eq.s32.totalorder %s19, 1
    %p42 = por %p40, %p41
    %p44 = scmp.ne.s32.totalorder %s27, %s43
    %p45 = scmp.eq.s32.totalorder %s19, 0
    %p46 = por %p44, %p45
    %s48 = sadd.s32 %s47, 1
    %p51 = scmp.eq.s32.totalorder %s13, 1
    %p52 = scmp.ne.s32.totalorder %s47, %s49
    %p53 = scmp.eq.s32.totalorder %s13, 0
    %p54 = por %p52, %p53
    %p55 = scmp.ne.s32.totalorder %s47, %s49
    %p56 = scmp.eq.s32.totalorder %s18, 1
    %p57 = por %p55, %p56
    %p58 = scmp.ne.s32.totalorder %s49, %s50
    %p59 = scmp.eq.s32.totalorder %s18, 0
    %p60 = por %p58, %p59
    %p61 = scmp.ne.s32.totalorder %s49, %s50
    %p62 = scmp.eq.s32.totalorder %s19, 1
    %p63 = por %p61, %p62
    %p65 = scmp.ne.s32.totalorder %s50, %s64
    %p66 = scmp.eq.s32.totalorder %s19, 0
    %p67 = por %p65, %p66
    %s69 = sadd.s32 %s68, 1
    %p72 = scmp.eq.s32.totalorder %s13, 1
    %p73 = scmp.ne.s32.totalorder %s68, %s70
    %p74 = scmp.eq.s32.totalorder %s13, 0
    %p75 = por %p73, %p74
    %p76 = scmp.ne.s32.totalorder %s68, %s70
    %p77 = scmp.eq.s32.totalorder %s18, 1
    %p78 = por %p76, %p77
    %p79 = scmp.ne.s32.totalorder %s70, %s71
    %p80 = scmp.eq.s32.totalorder %s18, 0
    %p81 = por %p79, %p80
    %p82 = scmp.ne.s32.totalorder %s70, %s71
    %p83 = scmp.eq.s32.totalorder %s19, 1
    %p84 = por %p82, %p83
    %p86 = scmp.ne.s32.totalorder %s71, %s85
    %p87 = scmp.eq.s32.totalorder %s19, 0
    %p88 = por %p86, %p87
    %s90 = sadd.s32 %s89, 1
    %p93 = scmp.eq.s32.totalorder %s13, 1
    %p94 = scmp.ne.s32.totalorder %s89, %s91
    %p95 = scmp.eq.s32.totalorder %s13, 0
    %p96 = por %p94, %p95
    %p97 = scmp.ne.s32.totalorder %s89, %s91
    %p98 = scmp.eq.s32.totalorder %s18, 1
    %p99 = por %p97, %p98
    %p100 = scmp.ne.s32.totalorder %s91, %s92
    %p101 = scmp.eq.s32.totalorder %s18, 0
    %p102 = por %p100, %p101
    %p103 = scmp.ne.s32.totalorder %s91, %s92
    %p104 = scmp.eq.s32.totalorder %s19, 1
    %p105 = por %p103, %p104
    %p107 = scmp.ne.s32.totalorder %s92, %s106
    %p108 = scmp.eq.s32.totalorder %s19, 0
    %p109 = por %p107, %p108
    %s111 = sadd.s32 %s110, 1
    %p114 = scmp.eq.s32.totalorder %s13, 1
    %p115 = scmp.ne.s32.totalorder %s110, %s112
    %p116 = scmp.eq.s32.totalorder %s13, 0
    %p117 = por %p115, %p116
    %p118 = scmp.ne.s32.totalorder %s110, %s112
    %p119 = scmp.eq.s32.totalorder %s18, 1
    %p120 = por %p118, %p119
    %p121 = scmp.ne.s32.totalorder %s112, %s113
    %p122 = scmp.eq.s32.totalorder %s18, 0
    %p123 = por %p121, %p122
    %p124 = scmp.ne.s32.totalorder %s112, %s113
    %p125 = scmp.eq.s32.totalorder %s19, 1
    %p126 = por %p124, %p125
    %p128 = scmp.ne.s32.totalorder %s113, %s127
    %p129 = scmp.eq.s32.totalorder %s19, 0
    %p130 = por %p128, %p129
    %s131 = ssub.s32 %s13, %s20
    %p132 = scmp.eq.s32.totalorder %s131, 0
    %s134 = sadd.s32 %s133, 1
    %s135 = scalar_select %p132, %s133, %s134
    %p138 = pneg %p132
    %p139 = scmp.eq.s32.totalorder %s13, 1
    %p140 = por %p138, %p139
    %p141 = scmp.ne.s32.totalorder %s133, %s136
    %p142 = scmp.eq.s32.totalorder %s13, 0
    %p143 = por %p141, %p142
    %p144 = scmp.ne.s32.totalorder %s133, %s136
    %p145 = scmp.eq.s32.totalorder %s18, 1
    %p146 = por %p144, %p145
    %p147 = scmp.ne.s32.totalorder %s136, %s137
    %p148 = scmp.eq.s32.totalorder %s18, 0
    %p149 = por %p147, %p148
    %p150 = scmp.ne.s32.totalorder %s136, %s137
    %p151 = scmp.eq.s32.totalorder %s19, 1
    %p152 = por %p150, %p151
    %p154 = scmp.ne.s32.totalorder %s137, %s153
    %p155 = scmp.eq.s32.totalorder %s19, 0
    %p156 = por %p154, %p155
    %s157 = ssub.s32 %s13, %s20
    %p158 = scmp.eq.s32.totalorder %s157, 0
    %s160 = sadd.s32 %s159, 1
    %s161 = scalar_select %p158, %s159, %s160
    %p164 = pneg %p158
    %p165 = scmp.eq.s32.totalorder %s13, 1
    %p166 = por %p164, %p165
    %p167 = scmp.ne.s32.totalorder %s159, %s162
    %p168 = scmp.eq.s32.totalorder %s13, 0
    %p169 = por %p167, %p168
    %p170 = scmp.ne.s32.totalorder %s159, %s162
    %p171 = scmp.eq.s32.totalorder %s18, 1
    %p172 = por %p170, %p171
    %p173 = scmp.ne.s32.totalorder %s162, %s163
    %p174 = scmp.eq.s32.totalorder %s18, 0
    %p175 = por %p173, %p174
    %p176 = scmp.ne.s32.totalorder %s162, %s163
    %p177 = scmp.eq.s32.totalorder %s19, 1
    %p178 = por %p176, %p177
    %p180 = scmp.ne.s32.totalorder %s163, %s179
    %p181 = scmp.eq.s32.totalorder %s19, 0
    %p182 = por %p180, %p181
    %p183 = scmp.le.s32.totalorder 1, %s13
    %p184 = scmp.lt.s32.totalorder %s13, 3
    %p185 = pnand %p183, %p184
    %p186 = pneg %p185
    // Predicated region
    $region9: #{residual_forward_nhwc.4} parent=5 // pred_check
      _
    $region10: #{residual_forward_nhwc.4} parent=5 // pred_check_branch
      %188 = sbr.rel (%p185) target = $region12
    $region11: #{residual_forward_nhwc.4} parent=5 // pred_region
      %s189 = ssub.s32 %s13, 1
      // Predicated region
      $region13: #{residual_forward_nhwc.4} parent=11 // pred_check
        %p190 = pneg %p60
      $region14: #{residual_forward_nhwc.4} parent=11 // pred_check_branch
        %192 = sbr.rel (%p190) target = $region16
      $region15: #{residual_forward_nhwc.4} parent=11 // pred_region
        _
      $region16: #{residual_forward_nhwc.4} parent=11 // pred_fallthru
        _
      // Predicated region
      $region17: #{residual_forward_nhwc.4} parent=11 // pred_check
        %p193 = pneg %p81
      $region18: #{residual_forward_nhwc.4} parent=11 // pred_check_branch
        %195 = sbr.rel (%p193) target = $region20
      $region19: #{residual_forward_nhwc.4} parent=11 // pred_region
        _
      $region20: #{residual_forward_nhwc.4} parent=11 // pred_fallthru
        _
      // Predicated region
      $region21: #{residual_forward_nhwc.4} parent=11 // pred_check
        %p196 = pneg %p102
      $region22: #{residual_forward_nhwc.4} parent=11 // pred_check_branch
        %198 = sbr.rel (%p196) target = $region24
      $region23: #{residual_forward_nhwc.4} parent=11 // pred_region
        _
      $region24: #{residual_forward_nhwc.4} parent=11 // pred_fallthru
        _
      // Predicated region
      $region25: #{residual_forward_nhwc.4} parent=11 // pred_check
        %p199 = pneg %p123
      $region26: #{residual_forward_nhwc.4} parent=11 // pred_check_branch
        %201 = sbr.rel (%p199) target = $region28
      $region27: #{residual_forward_nhwc.4} parent=11 // pred_region
        _
      $region28: #{residual_forward_nhwc.4} parent=11 // pred_fallthru
        _
    $region12: #{residual_forward_nhwc.4} parent=5 // pred_fallthru
      _
    %p202 = scmp.lt.s32.totalorder %s13, 2
    // Predicated region
    $region29: #{residual_forward_nhwc.4} parent=5 // pred_check
      %p203 = pneg %p202
    $region30: #{residual_forward_nhwc.4} parent=5 // pred_check_branch
      %205 = sbr.rel (%p203) target = $region32
    $region31: #{residual_forward_nhwc.4} parent=5 // pred_region
      // Predicated region
      $region33: #{residual_forward_nhwc.4} parent=31 // pred_check
        %p206 = pneg %p33
      $region34: #{residual_forward_nhwc.4} parent=31 // pred_check_branch
        %208 = sbr.rel (%p206) target = $region36
      $region35: #{residual_forward_nhwc.4} parent=31 // pred_region
        %p209 = scmp.lt.s32.totalorder %s13, 1
        %s210 = scalar_select %p209, %s13, 1
        %s211 = smul.addr %s210, 32
        %s212 = smul.addr %s211, 8
        %s213 = scalar_lea.vmem %s0, %s212
      $region36: #{residual_forward_nhwc.4} parent=31 // pred_fallthru
        _
    $region32: #{residual_forward_nhwc.4} parent=5 // pred_fallthru
      _
    %p214 = scmp.le.s32.totalorder 1, %s13
    %p215 = scmp.lt.s32.totalorder %s13, 3
    %p216 = pnand %p214, %p215
    %p217 = pneg %p216
    // Predicated region
    $region37: #{residual_forward_nhwc.4} parent=5 // pred_check
      _
    $region38: #{residual_forward_nhwc.4} parent=5 // pred_check_branch
      %219 = sbr.rel (%p216) target = $region40
    $region39: #{residual_forward_nhwc.4} parent=5 // pred_region
      %s220 = ssub.s32 %s13, 1
      %p221 = scmp.lt.s32.totalorder %s18, 1
      %s222 = scalar_select %p221, %s18, 1
      %s223 = smul.addr %s222, 32
      %s224 = smul.addr %s223, 8
      %s225 = scalar_lea.vmem %s0, %s224
      %p226 = pneg %p39
      %p227 = pneg %p36
      %p228 = pneg %p60
      %p229 = pneg %p57
      %p230 = pneg %p81
      %p231 = pneg %p78
      %p232 = pneg %p102
      %p233 = pneg %p99
      %p234 = pneg %p123
      %p235 = pneg %p120
      %p236 = pneg %p149
      %p237 = pneg %p146
      %p238 = scmp.lt.s32.totalorder %s18, 1
      %s239 = scalar_select %p238, %s18, 1
      %s240 = smul.addr %s239, 32
      %s241 = smul.addr %s240, 8
      %s242 = scalar_lea.vmem %s5, %s241
      %p243 = pneg %p175
      %p244 = pneg %p172
      %p245 = scmp.lt.s32.totalorder %s18, 1
      %s246 = scalar_select %p245, %s18, 1
      %s247 = smul.addr %s246, 2
      %s248 = scalar_lea.vmem %s6, %s247
      %p249 = scmp.lt.s32.totalorder %s18, 1
      %s250 = scalar_select %p249, %s18, 1
      %s251 = smul.addr %s250, 32
      %s252 = smul.addr %s251, 8
      %s253 = scalar_lea.vmem %s0, %s252
      %p254 = scmp.lt.s32.totalorder %s18, 1
      %s255 = scalar_select %p254, %s18, 1
      %s256 = smul.addr %s255, 32
      %s257 = smul.addr %s256, 8
      %s258 = scalar_lea.vmem %s5, %s257
      %p259 = scmp.lt.s32.totalorder %s18, 1
      %s260 = scalar_select %p259, %s18, 1
      %s261 = smul.addr %s260, 2
      %s262 = scalar_lea.vmem %s6, %s261
      %vm263 = vcmask 31744
      %264 = vst.msk [vmem:[#allocation2] sm:$0xff] %vm263, 0.0
      %265 = vst.msk [vmem:[#allocation2 + $0x8] sm:$0xff] %vm263, 0.0
      %vm266 = vcmask 24576
      %267 = vst.msk [vmem:[#allocation2] sm:$0x1] %vm266, 0.0
      %268 = vst.msk [vmem:[#allocation2 + $0x10] sm:$0x1] %vm266, 0.0
      %269 = vst.msk [vmem:[#allocation2 + $0x20] sm:$0x1] %vm266, 0.0
      %270 = vst.msk [vmem:[#allocation2 + $0x30] sm:$0x1] %vm266, 0.0
      %271 = vst.msk [vmem:[#allocation2 + $0x40] sm:$0x1] %vm266, 0.0
      %272 = vst.msk [vmem:[#allocation2 + $0x50] sm:$0x1] %vm266, 0.0
      %273 = vst.msk [vmem:[#allocation2 + $0x60] sm:$0x1] %vm266, 0.0
      %274 = vst.msk [vmem:[#allocation2 + $0x70] sm:$0x1] %vm266, 0.0
      %275 = vst.msk [vmem:[#allocation2 + $0x80] sm:$0x1] %vm266, 0.0
      %276 = vst.msk [vmem:[#allocation2 + $0x90] sm:$0x1] %vm266, 0.0
      %277 = vst.msk [vmem:[#allocation2 + $0xa0] sm:$0x1] %vm266, 0.0
      %278 = vst.msk [vmem:[#allocation2 + $0xb0] sm:$0x1] %vm266, 0.0
      %279 = vst.msk [vmem:[#allocation2 + $0xc0] sm:$0x1] %vm266, 0.0
      %280 = vst.msk [vmem:[#allocation2 + $0xd0] sm:$0x1] %vm266, 0.0
      %281 = vst.msk [vmem:[#allocation2 + $0xe0] sm:$0x1] %vm266, 0.0
      %282 = vst.msk [vmem:[#allocation2 + $0xf0] sm:$0x1] %vm266, 0.0
      %v283 = vld [vmem:[%s253] sm:$0xff]
      %v284 = vld [vmem:[%s253 + $0x8] sm:$0x7f]
      %v285 = vld [vmem:[%s253 + $0x10] sm:$0xff]
      %v286 = vld [vmem:[%s253 + $0x18] sm:$0x7f]
      %v287 = vld [vmem:[%s253 + $0x20] sm:$0xff]
      %v288 = vld [vmem:[%s253 + $0x28] sm:$0x7f]
      %v289 = vld [vmem:[%s253 + $0x30] sm:$0xff]
      %v290 = vld [vmem:[%s253 + $0x38] sm:$0x7f]
      %v291 = vld [vmem:[%s253 + $0x40] sm:$0xff]
      %v292 = vld [vmem:[%s253 + $0x48] sm:$0x7f]
      %v293 = vld [vmem:[%s253 + $0x50] sm:$0xff]
      %v294 = vld [vmem:[%s253 + $0x58] sm:$0x7f]
      %v295 = vld [vmem:[%s253 + $0x60] sm:$0xff]
      %v296 = vld [vmem:[%s253 + $0x68] sm:$0x7f]
      %v297 = vld [vmem:[%s253 + $0x70] sm:$0xff]
      %v298 = vld [vmem:[%s253 + $0x78] sm:$0x7f]
      %v299 = vld [vmem:[%s253 + $0x80] sm:$0xff]
      %v300 = vld [vmem:[%s253 + $0x88] sm:$0x7f]
      %v301 = vld [vmem:[%s253 + $0x90] sm:$0xff]
      %v302 = vld [vmem:[%s253 + $0x98] sm:$0x7f]
      %v303 = vld [vmem:[%s253 + $0xa0] sm:$0xff]
      %v304 = vld [vmem:[%s253 + $0xa8] sm:$0x7f]
      %v305 = vld [vmem:[%s253 + $0xb0] sm:$0xff]
      %v306 = vld [vmem:[%s253 + $0xb8] sm:$0x7f]
      %v307 = vld [vmem:[%s253 + $0xc0] sm:$0xff]
      %v308 = vld [vmem:[%s253 + $0xc8] sm:$0x7f]
      %v309 = vld [vmem:[%s253 + $0xd0] sm:$0xff]
      %v310 = vld [vmem:[%s253 + $0xd8] sm:$0x7f]
      %v311 = vld [vmem:[%s253 + $0xe0] sm:$0xff]
      %v312 = vld [vmem:[%s253 + $0xe8] sm:$0x7f]
      %v313 = vld [vmem:[%s1] sm:$0x1]
      %v315 = vperm.slane %v313, 0
      %v317 = vmul.f32 %v283, %v315
      %v318 = vmul.f32 %v284, %v315
      %v319 = vmul.f32 %v285, %v315
      %v320 = vmul.f32 %v286, %v315
      %v321 = vmul.f32 %v287, %v315
      %v322 = vmul.f32 %v288, %v315
      %v323 = vmul.f32 %v289, %v315
      %v324 = vmul.f32 %v290, %v315
      %v325 = vmul.f32 %v291, %v315
      %v326 = vmul.f32 %v292, %v315
      %v327 = vmul.f32 %v293, %v315
      %v328 = vmul.f32 %v294, %v315
      %v329 = vmul.f32 %v295, %v315
      %v330 = vmul.f32 %v296, %v315
      %v331 = vmul.f32 %v297, %v315
      %v332 = vmul.f32 %v298, %v315
      %v333 = vmul.f32 %v299, %v315
      %v334 = vmul.f32 %v300, %v315
      %v335 = vmul.f32 %v301, %v315
      %v336 = vmul.f32 %v302, %v315
      %v337 = vmul.f32 %v303, %v315
      %v338 = vmul.f32 %v304, %v315
      %v339 = vmul.f32 %v305, %v315
      %v340 = vmul.f32 %v306, %v315
      %v341 = vmul.f32 %v307, %v315
      %v342 = vmul.f32 %v308, %v315
      %v343 = vmul.f32 %v309, %v315
      %v344 = vmul.f32 %v310, %v315
      %v345 = vmul.f32 %v311, %v315
      %v346 = vmul.f32 %v312, %v315
      %v347 = vld [vmem:[%s2] sm:$0x1]
      %v349 = vperm.slane %v347, 0
      %v351 = vadd.f32 %v317, %v349
      %v352 = vadd.f32 %v318, %v349
      %v353 = vadd.f32 %v319, %v349
      %v354 = vadd.f32 %v320, %v349
      %v355 = vadd.f32 %v321, %v349
      %v356 = vadd.f32 %v322, %v349
      %v357 = vadd.f32 %v323, %v349
      %v358 = vadd.f32 %v324, %v349
      %v359 = vadd.f32 %v325, %v349
      %v360 = vadd.f32 %v326, %v349
      %v361 = vadd.f32 %v327, %v349
      %v362 = vadd.f32 %v328, %v349
      %v363 = vadd.f32 %v329, %v349
      %v364 = vadd.f32 %v330, %v349
      %v365 = vadd.f32 %v331, %v349
      %v366 = vadd.f32 %v332, %v349
      %v367 = vadd.f32 %v333, %v349
      %v368 = vadd.f32 %v334, %v349
      %v369 = vadd.f32 %v335, %v349
      %v370 = vadd.f32 %v336, %v349
      %v371 = vadd.f32 %v337, %v349
      %v372 = vadd.f32 %v338, %v349
      %v373 = vadd.f32 %v339, %v349
      %v374 = vadd.f32 %v340, %v349
      %v375 = vadd.f32 %v341, %v349
      %v376 = vadd.f32 %v342, %v349
      %v377 = vadd.f32 %v343, %v349
      %v378 = vadd.f32 %v344, %v349
      %v379 = vadd.f32 %v345, %v349
      %v380 = vadd.f32 %v346, %v349
      %v381 = vmax.f32 %v351, 0.0
      %v382 = vmax.f32 %v352, 0.0
      %v383 = vmax.f32 %v353, 0.0
      %v384 = vmax.f32 %v354, 0.0
      %v385 = vmax.f32 %v355, 0.0
      %v386 = vmax.f32 %v356, 0.0
      %v387 = vmax.f32 %v357, 0.0
      %v388 = vmax.f32 %v358, 0.0
      %v389 = vmax.f32 %v359, 0.0
      %v390 = vmax.f32 %v360, 0.0
      %v391 = vmax.f32 %v361, 0.0
      %v392 = vmax.f32 %v362, 0.0
      %v393 = vmax.f32 %v363, 0.0
      %v394 = vmax.f32 %v364, 0.0
      %v395 = vmax.f32 %v365, 0.0
      %v396 = vmax.f32 %v366, 0.0
      %v397 = vmax.f32 %v367, 0.0
      %v398 = vmax.f32 %v368, 0.0
      %v399 = vmax.f32 %v369, 0.0
      %v400 = vmax.f32 %v370, 0.0
      %v401 = vmax.f32 %v371, 0.0
      %v402 = vmax.f32 %v372, 0.0
      %v403 = vmax.f32 %v373, 0.0
      %v404 = vmax.f32 %v374, 0.0
      %v405 = vmax.f32 %v375, 0.0
      %v406 = vmax.f32 %v376, 0.0
      %v407 = vmax.f32 %v377, 0.0
      %v408 = vmax.f32 %v378, 0.0
      %v409 = vmax.f32 %v379, 0.0
      %v410 = vmax.f32 %v380, 0.0
      %s411 = scalar_lea.vmem [#allocation2], 16
      %412 = vst.msk [vmem:[%s411 + $0x1] sm:$0xff] %vm263, %v381
      %vm413 = vcmask 30720
      %414 = vst.msk [vmem:[%s411 + $0x9] sm:$0x7f] %vm413, %v382
      %415 = vst.msk [vmem:[%s411 + $0x11] sm:$0xff] %vm263, %v383
      %416 = vst.msk [vmem:[%s411 + $0x19] sm:$0x7f] %vm413, %v384
      %417 = vst.msk [vmem:[%s411 + $0x21] sm:$0xff] %vm263, %v385
      %418 = vst.msk [vmem:[%s411 + $0x29] sm:$0x7f] %vm413, %v386
      %419 = vst.msk [vmem:[%s411 + $0x31] sm:$0xff] %vm263, %v387
      %420 = vst.msk [vmem:[%s411 + $0x39] sm:$0x7f] %vm413, %v388
      %421 = vst.msk [vmem:[%s411 + $0x41] sm:$0xff] %vm263, %v389
      %422 = vst.msk [vmem:[%s411 + $0x49] sm:$0x7f] %vm413, %v390
      %423 = vst.msk [vmem:[%s411 + $0x51] sm:$0xff] %vm263, %v391
      %424 = vst.msk [vmem:[%s411 + $0x59] sm:$0x7f] %vm413, %v392
      %425 = vst.msk [vmem:[%s411 + $0x61] sm:$0xff] %vm263, %v393
      %426 = vst.msk [vmem:[%s411 + $0x69] sm:$0x7f] %vm413, %v394
      %427 = vst.msk [vmem:[%s411 + $0x71] sm:$0xff] %vm263, %v395
      %428 = vst.msk [vmem:[%s411 + $0x79] sm:$0x7f] %vm413, %v396
      %429 = vst.msk [vmem:[%s411 + $0x81] sm:$0xff] %vm263, %v397
      %430 = vst.msk [vmem:[%s411 + $0x89] sm:$0x7f] %vm413, %v398
      %431 = vst.msk [vmem:[%s411 + $0x91] sm:$0xff] %vm263, %v399
      %432 = vst.msk [vmem:[%s411 + $0x99] sm:$0x7f] %vm413, %v400
      %433 = vst.msk [vmem:[%s411 + $0xa1] sm:$0xff] %vm263, %v401
      %434 = vst.msk [vmem:[%s411 + $0xa9] sm:$0x7f] %vm413, %v402
      %435 = vst.msk [vmem:[%s411 + $0xb1] sm:$0xff] %vm263, %v403
      %436 = vst.msk [vmem:[%s411 + $0xb9] sm:$0x7f] %vm413, %v404
      %437 = vst.msk [vmem:[%s411 + $0xc1] sm:$0xff] %vm263, %v405
      %438 = vst.msk [vmem:[%s411 + $0xc9] sm:$0x7f] %vm413, %v406
      %439 = vst.msk [vmem:[%s411 + $0xd1] sm:$0xff] %vm263, %v407
      %440 = vst.msk [vmem:[%s411 + $0xd9] sm:$0x7f] %vm413, %v408
      %441 = vst.msk [vmem:[%s411 + $0xe1] sm:$0xff] %vm263, %v409
      %442 = vst.msk [vmem:[%s411 + $0xe9] sm:$0x7f] %vm413, %v410
      %vm443 = vcmask 64544
      %444 = vst.msk [vmem:[#allocation2] sm:$0xff] %vm443, 0.0
      %445 = vst.msk [vmem:[#allocation2 + $0x8] sm:$0xff] %vm443, 0.0
      %v446 = vld [vmem:[%s253] sm:$0xff]
      %v447 = vld [vmem:[%s253 + $0x8] sm:$0xff]
      %v448 = vld [vmem:[%s253 + $0x10] sm:$0xff]
      %v449 = vld [vmem:[%s253 + $0x18] sm:$0xff]
      %v450 = vld [vmem:[%s253 + $0x20] sm:$0xff]
      %v451 = vld [vmem:[%s253 + $0x28] sm:$0xff]
      %v452 = vld [vmem:[%s253 + $0x30] sm:$0xff]
      %v453 = vld [vmem:[%s253 + $0x38] sm:$0xff]
      %v454 = vld [vmem:[%s253 + $0x40] sm:$0xff]
      %v455 = vld [vmem:[%s253 + $0x48] sm:$0xff]
      %v456 = vld [vmem:[%s253 + $0x50] sm:$0xff]
      %v457 = vld [vmem:[%s253 + $0x58] sm:$0xff]
      %v458 = vld [vmem:[%s253 + $0x60] sm:$0xff]
      %v459 = vld [vmem:[%s253 + $0x68] sm:$0xff]
      %v460 = vld [vmem:[%s253 + $0x70] sm:$0xff]
      %v461 = vld [vmem:[%s253 + $0x78] sm:$0xff]
      %v462 = vld [vmem:[%s253 + $0x80] sm:$0xff]
      %v463 = vld [vmem:[%s253 + $0x88] sm:$0xff]
      %v464 = vld [vmem:[%s253 + $0x90] sm:$0xff]
      %v465 = vld [vmem:[%s253 + $0x98] sm:$0xff]
      %v466 = vld [vmem:[%s253 + $0xa0] sm:$0xff]
      %v467 = vld [vmem:[%s253 + $0xa8] sm:$0xff]
      %v468 = vld [vmem:[%s253 + $0xb0] sm:$0xff]
      %v469 = vld [vmem:[%s253 + $0xb8] sm:$0xff]
      %v470 = vld [vmem:[%s253 + $0xc0] sm:$0xff]
      %v471 = vld [vmem:[%s253 + $0xc8] sm:$0xff]
      %v472 = vld [vmem:[%s253 + $0xd0] sm:$0xff]
      %v473 = vld [vmem:[%s253 + $0xd8] sm:$0xff]
      %v474 = vld [vmem:[%s253 + $0xe0] sm:$0xff]
      %v475 = vld [vmem:[%s253 + $0xe8] sm:$0xff]
      %v476 = vld [vmem:[%s1] sm:$0x1]
      %v478 = vperm.slane %v476, 0
      %v480 = vmul.f32 %v446, %v478
      %v481 = vmul.f32 %v447, %v478
      %v482 = vmul.f32 %v448, %v478
      %v483 = vmul.f32 %v449, %v478
      %v484 = vmul.f32 %v450, %v478
      %v485 = vmul.f32 %v451, %v478
      %v486 = vmul.f32 %v452, %v478
      %v487 = vmul.f32 %v453, %v478
      %v488 = vmul.f32 %v454, %v478
      %v489 = vmul.f32 %v455, %v478
      %v490 = vmul.f32 %v456, %v478
      %v491 = vmul.f32 %v457, %v478
      %v492 = vmul.f32 %v458, %v478
      %v493 = vmul.f32 %v459, %v478
      %v494 = vmul.f32 %v460, %v478
      %v495 = vmul.f32 %v461, %v478
      %v496 = vmul.f32 %v462, %v478
      %v497 = vmul.f32 %v463, %v478
      %v498 = vmul.f32 %v464, %v478
      %v499 = vmul.f32 %v465, %v478
      %v500 = vmul.f32 %v466, %v478
      %v501 = vmul.f32 %v467, %v478
      %v502 = vmul.f32 %v468, %v478
      %v503 = vmul.f32 %v469, %v478
      %v504 = vmul.f32 %v470, %v478
      %v505 = vmul.f32 %v471, %v478
      %v506 = vmul.f32 %v472, %v478
      %v507 = vmul.f32 %v473, %v478
      %v508 = vmul.f32 %v474, %v478
      %v509 = vmul.f32 %v475, %v478
      %v510 = vld [vmem:[%s2] sm:$0x1]
      %v512 = vperm.slane %v510, 0
      %v514 = vadd.f32 %v480, %v512
      %v515 = vadd.f32 %v481, %v512
      %v516 = vadd.f32 %v482, %v512
      %v517 = vadd.f32 %v483, %v512
      %v518 = vadd.f32 %v484, %v512
      %v519 = vadd.f32 %v485, %v512
      %v520 = vadd.f32 %v486, %v512
      %v521 = vadd.f32 %v487, %v512
      %v522 = vadd.f32 %v488, %v512
      %v523 = vadd.f32 %v489, %v512
      %v524 = vadd.f32 %v490, %v512
      %v525 = vadd.f32 %v491, %v512
      %v526 = vadd.f32 %v492, %v512
      %v527 = vadd.f32 %v493, %v512
      %v528 = vadd.f32 %v494, %v512
      %v529 = vadd.f32 %v495, %v512
      %v530 = vadd.f32 %v496, %v512
      %v531 = vadd.f32 %v497, %v512
      %v532 = vadd.f32 %v498, %v512
      %v533 = vadd.f32 %v499, %v512
      %v534 = vadd.f32 %v500, %v512
      %v535 = vadd.f32 %v501, %v512
      %v536 = vadd.f32 %v502, %v512
      %v537 = vadd.f32 %v503, %v512
      %v538 = vadd.f32 %v504, %v512
      %v539 = vadd.f32 %v505, %v512
      %v540 = vadd.f32 %v506, %v512
      %v541 = vadd.f32 %v507, %v512
      %v542 = vadd.f32 %v508, %v512
      %v543 = vadd.f32 %v509, %v512
      %v544 = vmax.f32 %v514, 0.0
      %v545 = vmax.f32 %v515, 0.0
      %v546 = vmax.f32 %v516, 0.0
      %v547 = vmax.f32 %v517, 0.0
      %v548 = vmax.f32 %v518, 0.0
      %v549 = vmax.f32 %v519, 0.0
      %v550 = vmax.f32 %v520, 0.0
      %v551 = vmax.f32 %v521, 0.0
      %v552 = vmax.f32 %v522, 0.0
      %v553 = vmax.f32 %v523, 0.0
      %v554 = vmax.f32 %v524, 0.0
      %v555 = vmax.f32 %v525, 0.0
      %v556 = vmax.f32 %v526, 0.0
      %v557 = vmax.f32 %v527, 0.0
      %v558 = vmax.f32 %v528, 0.0
      %v559 = vmax.f32 %v529, 0.0
      %v560 = vmax.f32 %v530, 0.0
      %v561 = vmax.f32 %v531, 0.0
      %v562 = vmax.f32 %v532, 0.0
      %v563 = vmax.f32 %v533, 0.0
      %v564 = vmax.f32 %v534, 0.0
      %v565 = vmax.f32 %v535, 0.0
      %v566 = vmax.f32 %v536, 0.0
      %v567 = vmax.f32 %v537, 0.0
      %v568 = vmax.f32 %v538, 0.0
      %v569 = vmax.f32 %v539, 0.0
      %v570 = vmax.f32 %v540, 0.0
      %v571 = vmax.f32 %v541, 0.0
      %v572 = vmax.f32 %v542, 0.0
      %v573 = vmax.f32 %v543, 0.0
      %604 = vrot.lane.b32.xlu0 %v544, 4
      %v605 = vpop.permute.xlu0 %604
      %606 = vrot.lane.b32.xlu0 %v545, 4
      %v607 = vpop.permute.xlu0 %606
      %608 = vrot.lane.b32.xlu0 %v546, 4
      %v609 = vpop.permute.xlu0 %608
      %610 = vrot.lane.b32.xlu0 %v547, 4
      %v611 = vpop.permute.xlu0 %610
      %612 = vrot.lane.b32.xlu0 %v548, 4
      %v613 = vpop.permute.xlu0 %612
      %614 = vrot.lane.b32.xlu0 %v549, 4
      %v615 = vpop.permute.xlu0 %614
      %616 = vrot.lane.b32.xlu0 %v550, 4
      %v617 = vpop.permute.xlu0 %616
      %618 = vrot.lane.b32.xlu0 %v551, 4
      %v619 = vpop.permute.xlu0 %618
      %620 = vrot.lane.b32.xlu0 %v552, 4
      %v621 = vpop.permute.xlu0 %620
      %622 = vrot.lane.b32.xlu0 %v553, 4
      %v623 = vpop.permute.xlu0 %622
      %624 = vrot.lane.b32.xlu0 %v554, 4
      %v625 = vpop.permute.xlu0 %624
      %626 = vrot.lane.b32.xlu0 %v555, 4
      %v627 = vpop.permute.xlu0 %626
      %628 = vrot.lane.b32.xlu0 %v556, 4
      %v629 = vpop.permute.xlu0 %628
      %630 = vrot.lane.b32.xlu0 %v557, 4
      %v631 = vpop.permute.xlu0 %630
      %632 = vrot.lane.b32.xlu0 %v558, 4
      %v633 = vpop.permute.xlu0 %632
      %634 = vrot.lane.b32.xlu0 %v559, 4
      %v635 = vpop.permute.xlu0 %634
      %636 = vrot.lane.b32.xlu0 %v560, 4
      %v637 = vpop.permute.xlu0 %636
      %638 = vrot.lane.b32.xlu0 %v561, 4
      %v639 = vpop.permute.xlu0 %638
      %640 = vrot.lane.b32.xlu0 %v562, 4
      %v641 = vpop.permute.xlu0 %640
      %642 = vrot.lane.b32.xlu0 %v563, 4
      %v643 = vpop.permute.xlu0 %642
      %644 = vrot.lane.b32.xlu0 %v564, 4
      %v645 = vpop.permute.xlu0 %644
      %646 = vrot.lane.b32.xlu0 %v565, 4
      %v647 = vpop.permute.xlu0 %646
      %648 = vrot.lane.b32.xlu0 %v566, 4
      %v649 = vpop.permute.xlu0 %648
      %650 = vrot.lane.b32.xlu0 %v567, 4
      %v651 = vpop.permute.xlu0 %650
      %652 = vrot.lane.b32.xlu0 %v568, 4
      %v653 = vpop.permute.xlu0 %652
      %654 = vrot.lane.b32.xlu0 %v569, 4
      %v655 = vpop.permute.xlu0 %654
      %656 = vrot.lane.b32.xlu0 %v570, 4
      %v657 = vpop.permute.xlu0 %656
      %658 = vrot.lane.b32.xlu0 %v571, 4
      %v659 = vpop.permute.xlu0 %658
      %660 = vrot.lane.b32.xlu0 %v572, 4
      %v661 = vpop.permute.xlu0 %660
      %662 = vrot.lane.b32.xlu0 %v573, 4
      %v663 = vpop.permute.xlu0 %662
      %694 = vst.msk [vmem:[%s411] sm:$0xff] %vm443, %v605
      %695 = vst.msk [vmem:[%s411 + $0x8] sm:$0xff] %vm443, %v607
      %696 = vst.msk [vmem:[%s411 + $0x10] sm:$0xff] %vm443, %v609
      %697 = vst.msk [vmem:[%s411 + $0x18] sm:$0xff] %vm443, %v611
      %698 = vst.msk [vmem:[%s411 + $0x20] sm:$0xff] %vm443, %v613
      %699 = vst.msk [vmem:[%s411 + $0x28] sm:$0xff] %vm443, %v615
      %700 = vst.msk [vmem:[%s411 + $0x30] sm:$0xff] %vm443, %v617
      %701 = vst.msk [vmem:[%s411 + $0x38] sm:$0xff] %vm443, %v619
      %702 = vst.msk [vmem:[%s411 + $0x40] sm:$0xff] %vm443, %v621
      %703 = vst.msk [vmem:[%s411 + $0x48] sm:$0xff] %vm443, %v623
      %704 = vst.msk [vmem:[%s411 + $0x50] sm:$0xff] %vm443, %v625
      %705 = vst.msk [vmem:[%s411 + $0x58] sm:$0xff] %vm443, %v627
      %706 = vst.msk [vmem:[%s411 + $0x60] sm:$0xff] %vm443, %v629
      %707 = vst.msk [vmem:[%s411 + $0x68] sm:$0xff] %vm443, %v631
      %708 = vst.msk [vmem:[%s411 + $0x70] sm:$0xff] %vm443, %v633
      %709 = vst.msk [vmem:[%s411 + $0x78] sm:$0xff] %vm443, %v635
      %710 = vst.msk [vmem:[%s411 + $0x80] sm:$0xff] %vm443, %v637
      %711 = vst.msk [vmem:[%s411 + $0x88] sm:$0xff] %vm443, %v639
      %712 = vst.msk [vmem:[%s411 + $0x90] sm:$0xff] %vm443, %v641
      %713 = vst.msk [vmem:[%s411 + $0x98] sm:$0xff] %vm443, %v643
      %714 = vst.msk [vmem:[%s411 + $0xa0] sm:$0xff] %vm443, %v645
      %715 = vst.msk [vmem:[%s411 + $0xa8] sm:$0xff] %vm443, %v647
      %716 = vst.msk [vmem:[%s411 + $0xb0] sm:$0xff] %vm443, %v649
      %717 = vst.msk [vmem:[%s411 + $0xb8] sm:$0xff] %vm443, %v651
      %718 = vst.msk [vmem:[%s411 + $0xc0] sm:$0xff] %vm443, %v653
      %719 = vst.msk [vmem:[%s411 + $0xc8] sm:$0xff] %vm443, %v655
      %720 = vst.msk [vmem:[%s411 + $0xd0] sm:$0xff] %vm443, %v657
      %721 = vst.msk [vmem:[%s411 + $0xd8] sm:$0xff] %vm443, %v659
      %722 = vst.msk [vmem:[%s411 + $0xe0] sm:$0xff] %vm443, %v661
      %723 = vst.msk [vmem:[%s411 + $0xe8] sm:$0xff] %vm443, %v663
      %vm724 = vcmask 97344
      %725 = vst.msk [vmem:[#allocation2] sm:$0xff] %vm724, 0.0
      %726 = vst.msk [vmem:[#allocation2 + $0x8] sm:$0xff] %vm724, 0.0
      %vm727 = vcmask 90176
      %728 = vst.msk [vmem:[#allocation2 + $0xf] sm:$0x1] %vm727, 0.0
      %729 = vst.msk [vmem:[#allocation2 + $0x1f] sm:$0x1] %vm727, 0.0
      %730 = vst.msk [vmem:[#allocation2 + $0x2f] sm:$0x1] %vm727, 0.0
      %731 = vst.msk [vmem:[#allocation2 + $0x3f] sm:$0x1] %vm727, 0.0
      %732 = vst.msk [vmem:[#allocation2 + $0x4f] sm:$0x1] %vm727, 0.0
      %733 = vst.msk [vmem:[#allocation2 + $0x5f] sm:$0x1] %vm727, 0.0
      %734 = vst.msk [vmem:[#allocation2 + $0x6f] sm:$0x1] %vm727, 0.0
      %735 = vst.msk [vmem:[#allocation2 + $0x7f] sm:$0x1] %vm727, 0.0
      %736 = vst.msk [vmem:[#allocation2 + $0x8f] sm:$0x1] %vm727, 0.0
      %737 = vst.msk [vmem:[#allocation2 + $0x9f] sm:$0x1] %vm727, 0.0
      %738 = vst.msk [vmem:[#allocation2 + $0xaf] sm:$0x1] %vm727, 0.0
      %739 = vst.msk [vmem:[#allocation2 + $0xbf] sm:$0x1] %vm727, 0.0
      %740 = vst.msk [vmem:[#allocation2 + $0xcf] sm:$0x1] %vm727, 0.0
      %741 = vst.msk [vmem:[#allocation2 + $0xdf] sm:$0x1] %vm727, 0.0
      %742 = vst.msk [vmem:[#allocation2 + $0xef] sm:$0x1] %vm727, 0.0
      %743 = vst.msk [vmem:[#allocation2 + $0xff] sm:$0x1] %vm727, 0.0
      %v744 = vld [vmem:[%s253 + $0x1] sm:$0xff]
      %v745 = vld [vmem:[%s253 + $0x9] sm:$0x7f]
      %v746 = vld [vmem:[%s253 + $0x11] sm:$0xff]
      %v747 = vld [vmem:[%s253 + $0x19] sm:$0x7f]
      %v748 = vld [vmem:[%s253 + $0x21] sm:$0xff]
      %v749 = vld [vmem:[%s253 + $0x29] sm:$0x7f]
      %v750 = vld [vmem:[%s253 + $0x31] sm:$0xff]
      %v751 = vld [vmem:[%s253 + $0x39] sm:$0x7f]
      %v752 = vld [vmem:[%s253 + $0x41] sm:$0xff]
      %v753 = vld [vmem:[%s253 + $0x49] sm:$0x7f]
      %v754 = vld [vmem:[%s253 + $0x51] sm:$0xff]
      %v755 = vld [vmem:[%s253 + $0x59] sm:$0x7f]
      %v756 = vld [vmem:[%s253 + $0x61] sm:$0xff]
      %v757 = vld [vmem:[%s253 + $0x69] sm:$0x7f]
      %v758 = vld [vmem:[%s253 + $0x71] sm:$0xff]
      %v759 = vld [vmem:[%s253 + $0x79] sm:$0x7f]
      %v760 = vld [vmem:[%s253 + $0x81] sm:$0xff]
      %v761 = vld [vmem:[%s253 + $0x89] sm:$0x7f]
      %v762 = vld [vmem:[%s253 + $0x91] sm:$0xff]
      %v763 = vld [vmem:[%s253 + $0x99] sm:$0x7f]
      %v764 = vld [vmem:[%s253 + $0xa1] sm:$0xff]
      %v765 = vld [vmem:[%s253 + $0xa9] sm:$0x7f]
      %v766 = vld [vmem:[%s253 + $0xb1] sm:$0xff]
      %v767 = vld [vmem:[%s253 + $0xb9] sm:$0x7f]
      %v768 = vld [vmem:[%s253 + $0xc1] sm:$0xff]
      %v769 = vld [vmem:[%s253 + $0xc9] sm:$0x7f]
      %v770 = vld [vmem:[%s253 + $0xd1] sm:$0xff]
      %v771 = vld [vmem:[%s253 + $0xd9] sm:$0x7f]
      %v772 = vld [vmem:[%s253 + $0xe1] sm:$0xff]
      %v773 = vld [vmem:[%s253 + $0xe9] sm:$0x7f]
      %v774 = vld [vmem:[%s1] sm:$0x1]
      %v776 = vperm.slane %v774, 0
      %v778 = vmul.f32 %v744, %v776
      %v779 = vmul.f32 %v745, %v776
      %v780 = vmul.f32 %v746, %v776
      %v781 = vmul.f32 %v747, %v776
      %v782 = vmul.f32 %v748, %v776
      %v783 = vmul.f32 %v749, %v776
      %v784 = vmul.f32 %v750, %v776
      %v785 = vmul.f32 %v751, %v776
      %v786 = vmul.f32 %v752, %v776
      %v787 = vmul.f32 %v753, %v776
      %v788 = vmul.f32 %v754, %v776
      %v789 = vmul.f32 %v755, %v776
      %v790 = vmul.f32 %v756, %v776
      %v791 = vmul.f32 %v757, %v776
      %v792 = vmul.f32 %v758, %v776
      %v793 = vmul.f32 %v759, %v776
      %v794 = vmul.f32 %v760, %v776
      %v795 = vmul.f32 %v761, %v776
      %v796 = vmul.f32 %v762, %v776
      %v797 = vmul.f32 %v763, %v776
      %v798 = vmul.f32 %v764, %v776
      %v799 = vmul.f32 %v765, %v776
      %v800 = vmul.f32 %v766, %v776
      %v801 = vmul.f32 %v767, %v776
      %v802 = vmul.f32 %v768, %v776
      %v803 = vmul.f32 %v769, %v776
      %v804 = vmul.f32 %v770, %v776
      %v805 = vmul.f32 %v771, %v776
      %v806 = vmul.f32 %v772, %v776
      %v807 = vmul.f32 %v773, %v776
      %v808 = vld [vmem:[%s2] sm:$0x1]
      %v810 = vperm.slane %v808, 0
      %v812 = vadd.f32 %v778, %v810
      %v813 = vadd.f32 %v779, %v810
      %v814 = vadd.f32 %v780, %v810
      %v815 = vadd.f32 %v781, %v810
      %v816 = vadd.f32 %v782, %v810
      %v817 = vadd.f32 %v783, %v810
      %v818 = vadd.f32 %v784, %v810
      %v819 = vadd.f32 %v785, %v810
      %v820 = vadd.f32 %v786, %v810
      %v821 = vadd.f32 %v787, %v810
      %v822 = vadd.f32 %v788, %v810
      %v823 = vadd.f32 %v789, %v810
      %v824 = vadd.f32 %v790, %v810
      %v825 = vadd.f32 %v791, %v810
      %v826 = vadd.f32 %v792, %v810
      %v827 = vadd.f32 %v793, %v810
      %v828 = vadd.f32 %v794, %v810
      %v829 = vadd.f32 %v795, %v810
      %v830 = vadd.f32 %v796, %v810
      %v831 = vadd.f32 %v797, %v810
      %v832 = vadd.f32 %v798, %v810
      %v833 = vadd.f32 %v799, %v810
      %v834 = vadd.f32 %v800, %v810
      %v835 = vadd.f32 %v801, %v810
      %v836 = vadd.f32 %v802, %v810
      %v837 = vadd.f32 %v803, %v810
      %v838 = vadd.f32 %v804, %v810
      %v839 = vadd.f32 %v805, %v810
      %v840 = vadd.f32 %v806, %v810
      %v841 = vadd.f32 %v807, %v810
      %v842 = vmax.f32 %v812, 0.0
      %v843 = vmax.f32 %v813, 0.0
      %v844 = vmax.f32 %v814, 0.0
      %v845 = vmax.f32 %v815, 0.0
      %v846 = vmax.f32 %v816, 0.0
      %v847 = vmax.f32 %v817, 0.0
      %v848 = vmax.f32 %v818, 0.0
      %v849 = vmax.f32 %v819, 0.0
      %v850 = vmax.f32 %v820, 0.0
      %v851 = vmax.f32 %v821, 0.0
      %v852 = vmax.f32 %v822, 0.0
      %v853 = vmax.f32 %v823, 0.0
      %v854 = vmax.f32 %v824, 0.0
      %v855 = vmax.f32 %v825, 0.0
      %v856 = vmax.f32 %v826, 0.0
      %v857 = vmax.f32 %v827, 0.0
      %v858 = vmax.f32 %v828, 0.0
      %v859 = vmax.f32 %v829, 0.0
      %v860 = vmax.f32 %v830, 0.0
      %v861 = vmax.f32 %v831, 0.0
      %v862 = vmax.f32 %v832, 0.0
      %v863 = vmax.f32 %v833, 0.0
      %v864 = vmax.f32 %v834, 0.0
      %v865 = vmax.f32 %v835, 0.0
      %v866 = vmax.f32 %v836, 0.0
      %v867 = vmax.f32 %v837, 0.0
      %v868 = vmax.f32 %v838, 0.0
      %v869 = vmax.f32 %v839, 0.0
      %v870 = vmax.f32 %v840, 0.0
      %v871 = vmax.f32 %v841, 0.0
      %902 = vrot.lane.b32.xlu0 %v842, 8
      %v903 = vpop.permute.xlu0 %902
      %904 = vrot.lane.b32.xlu0 %v843, 8
      %v905 = vpop.permute.xlu0 %904
      %906 = vrot.lane.b32.xlu0 %v844, 8
      %v907 = vpop.permute.xlu0 %906
      %908 = vrot.lane.b32.xlu0 %v845, 8
      %v909 = vpop.permute.xlu0 %908
      %910 = vrot.lane.b32.xlu0 %v846, 8
      %v911 = vpop.permute.xlu0 %910
      %912 = vrot.lane.b32.xlu0 %v847, 8
      %v913 = vpop.permute.xlu0 %912
      %914 = vrot.lane.b32.xlu0 %v848, 8
      %v915 = vpop.permute.xlu0 %914
      %916 = vrot.lane.b32.xlu0 %v849, 8
      %v917 = vpop.permute.xlu0 %916
      %918 = vrot.lane.b32.xlu0 %v850, 8
      %v919 = vpop.permute.xlu0 %918
      %920 = vrot.lane.b32.xlu0 %v851, 8
      %v921 = vpop.permute.xlu0 %920
      %922 = vrot.lane.b32.xlu0 %v852, 8
      %v923 = vpop.permute.xlu0 %922
      %924 = vrot.lane.b32.xlu0 %v853, 8
      %v925 = vpop.permute.xlu0 %924
      %926 = vrot.lane.b32.xlu0 %v854, 8
      %v927 = vpop.permute.xlu0 %926
      %928 = vrot.lane.b32.xlu0 %v855, 8
      %v929 = vpop.permute.xlu0 %928
      %930 = vrot.lane.b32.xlu0 %v856, 8
      %v931 = vpop.permute.xlu0 %930
      %932 = vrot.lane.b32.xlu0 %v857, 8
      %v933 = vpop.permute.xlu0 %932
      %934 = vrot.lane.b32.xlu0 %v858, 8
      %v935 = vpop.permute.xlu0 %934
      %936 = vrot.lane.b32.xlu0 %v859, 8
      %v937 = vpop.permute.xlu0 %936
      %938 = vrot.lane.b32.xlu0 %v860, 8
      %v939 = vpop.permute.xlu0 %938
      %940 = vrot.lane.b32.xlu0 %v861, 8
      %v941 = vpop.permute.xlu0 %940
      %942 = vrot.lane.b32.xlu0 %v862, 8
      %v943 = vpop.permute.xlu0 %942
      %944 = vrot.lane.b32.xlu0 %v863, 8
      %v945 = vpop.permute.xlu0 %944
      %946 = vrot.lane.b32.xlu0 %v864, 8
      %v947 = vpop.permute.xlu0 %946
      %948 = vrot.lane.b32.xlu0 %v865, 8
      %v949 = vpop.permute.xlu0 %948
      %950 = vrot.lane.b32.xlu0 %v866, 8
      %v951 = vpop.permute.xlu0 %950
      %952 = vrot.lane.b32.xlu0 %v867, 8
      %v953 = vpop.permute.xlu0 %952
      %954 = vrot.lane.b32.xlu0 %v868, 8
      %v955 = vpop.permute.xlu0 %954
      %956 = vrot.lane.b32.xlu0 %v869, 8
      %v957 = vpop.permute.xlu0 %956
      %958 = vrot.lane.b32.xlu0 %v870, 8
      %v959 = vpop.permute.xlu0 %958
      %960 = vrot.lane.b32.xlu0 %v871, 8
      %v961 = vpop.permute.xlu0 %960
      %992 = vst.msk [vmem:[%s411] sm:$0xff] %vm724, %v903
      %vm993 = vcmask 96320
      %994 = vst.msk [vmem:[%s411 + $0x8] sm:$0x7f] %vm993, %v905
      %995 = vst.msk [vmem:[%s411 + $0x10] sm:$0xff] %vm724, %v907
      %996 = vst.msk [vmem:[%s411 + $0x18] sm:$0x7f] %vm993, %v909
      %997 = vst.msk [vmem:[%s411 + $0x20] sm:$0xff] %vm724, %v911
      %998 = vst.msk [vmem:[%s411 + $0x28] sm:$0x7f] %vm993, %v913
      %999 = vst.msk [vmem:[%s411 + $0x30] sm:$0xff] %vm724, %v915
      %1000 = vst.msk [vmem:[%s411 + $0x38] sm:$0x7f] %vm993, %v917
      %1001 = vst.msk [vmem:[%s411 + $0x40] sm:$0xff] %vm724, %v919
      %1002 = vst.msk [vmem:[%s411 + $0x48] sm:$0x7f] %vm993, %v921
      %1003 = vst.msk [vmem:[%s411 + $0x50] sm:$0xff] %vm724, %v923
      %1004 = vst.msk [vmem:[%s411 + $0x58] sm:$0x7f] %vm993, %v925
      %1005 = vst.msk [vmem:[%s411 + $0x60] sm:$0xff] %vm724, %v927
      %1006 = vst.msk [vmem:[%s411 + $0x68] sm:$0x7f] %vm993, %v929
      %1007 = vst.msk [vmem:[%s411 + $0x70] sm:$0xff] %vm724, %v931
      %1008 = vst.msk [vmem:[%s411 + $0x78] sm:$0x7f] %vm993, %v933
      %1009 = vst.msk [vmem:[%s411 + $0x80] sm:$0xff] %vm724, %v935
      %1010 = vst.msk [vmem:[%s411 + $0x88] sm:$0x7f] %vm993, %v937
      %1011 = vst.msk [vmem:[%s411 + $0x90] sm:$0xff] %vm724, %v939
      %1012 = vst.msk [vmem:[%s411 + $0x98] sm:$0x7f] %vm993, %v941
      %1013 = vst.msk [vmem:[%s411 + $0xa0] sm:$0xff] %vm724, %v943
      %1014 = vst.msk [vmem:[%s411 + $0xa8] sm:$0x7f] %vm993, %v945
      %1015 = vst.msk [vmem:[%s411 + $0xb0] sm:$0xff] %vm724, %v947
      %1016 = vst.msk [vmem:[%s411 + $0xb8] sm:$0x7f] %vm993, %v949
      %1017 = vst.msk [vmem:[%s411 + $0xc0] sm:$0xff] %vm724, %v951
      %1018 = vst.msk [vmem:[%s411 + $0xc8] sm:$0x7f] %vm993, %v953
      %1019 = vst.msk [vmem:[%s411 + $0xd0] sm:$0xff] %vm724, %v955
      %1020 = vst.msk [vmem:[%s411 + $0xd8] sm:$0x7f] %vm993, %v957
      %1021 = vst.msk [vmem:[%s411 + $0xe0] sm:$0xff] %vm724, %v959
      %1022 = vst.msk [vmem:[%s411 + $0xe8] sm:$0x7f] %vm993, %v961
      %vm1023 = vcmask 122976
      %1024 = vst.msk [vmem:[#allocation2] sm:$0x1] %vm1023, 0.0
      %1025 = vst.msk [vmem:[#allocation2 + $0x10] sm:$0x1] %vm1023, 0.0
      %1026 = vst.msk [vmem:[#allocation2 + $0x20] sm:$0x1] %vm1023, 0.0
      %1027 = vst.msk [vmem:[#allocation2 + $0x30] sm:$0x1] %vm1023, 0.0
      %1028 = vst.msk [vmem:[#allocation2 + $0x40] sm:$0x1] %vm1023, 0.0
      %1029 = vst.msk [vmem:[#allocation2 + $0x50] sm:$0x1] %vm1023, 0.0
      %1030 = vst.msk [vmem:[#allocation2 + $0x60] sm:$0x1] %vm1023, 0.0
      %1031 = vst.msk [vmem:[#allocation2 + $0x70] sm:$0x1] %vm1023, 0.0
      %1032 = vst.msk [vmem:[#allocation2 + $0x80] sm:$0x1] %vm1023, 0.0
      %1033 = vst.msk [vmem:[#allocation2 + $0x90] sm:$0x1] %vm1023, 0.0
      %1034 = vst.msk [vmem:[#allocation2 + $0xa0] sm:$0x1] %vm1023, 0.0
      %1035 = vst.msk [vmem:[#allocation2 + $0xb0] sm:$0x1] %vm1023, 0.0
      %1036 = vst.msk [vmem:[#allocation2 + $0xc0] sm:$0x1] %vm1023, 0.0
      %1037 = vst.msk [vmem:[#allocation2 + $0xd0] sm:$0x1] %vm1023, 0.0
      %1038 = vst.msk [vmem:[#allocation2 + $0xe0] sm:$0x1] %vm1023, 0.0
      %1039 = vst.msk [vmem:[#allocation2 + $0xf0] sm:$0x1] %vm1023, 0.0
      %v1040 = vld [vmem:[%s253] sm:$0xff]
      %v1041 = vld [vmem:[%s253 + $0x8] sm:$0x7f]
      %v1042 = vld [vmem:[%s253 + $0x10] sm:$0xff]
      %v1043 = vld [vmem:[%s253 + $0x18] sm:$0x7f]
      %v1044 = vld [vmem:[%s253 + $0x20] sm:$0xff]
      %v1045 = vld [vmem:[%s253 + $0x28] sm:$0x7f]
      %v1046 = vld [vmem:[%s253 + $0x30] sm:$0xff]
      %v1047 = vld [vmem:[%s253 + $0x38] sm:$0x7f]
      %v1048 = vld [vmem:[%s253 + $0x40] sm:$0xff]
      %v1049 = vld [vmem:[%s253 + $0x48] sm:$0x7f]
      %v1050 = vld [vmem:[%s253 + $0x50] sm:$0xff]
      %v1051 = vld [vmem:[%s253 + $0x58] sm:$0x7f]
      %v1052 = vld [vmem:[%s253 + $0x60] sm:$0xff]
      %v1053 = vld [vmem:[%s253 + $0x68] sm:$0x7f]
      %v1054 = vld [vmem:[%s253 + $0x70] sm:$0xff]
      %v1055 = vld [vmem:[%s253 + $0x78] sm:$0x7f]
      %v1056 = vld [vmem:[%s253 + $0x80] sm:$0xff]
      %v1057 = vld [vmem:[%s253 + $0x88] sm:$0x7f]
      %v1058 = vld [vmem:[%s253 + $0x90] sm:$0xff]
      %v1059 = vld [vmem:[%s253 + $0x98] sm:$0x7f]
      %v1060 = vld [vmem:[%s253 + $0xa0] sm:$0xff]
      %v1061 = vld [vmem:[%s253 + $0xa8] sm:$0x7f]
      %v1062 = vld [vmem:[%s253 + $0xb0] sm:$0xff]
      %v1063 = vld [vmem:[%s253 + $0xb8] sm:$0x7f]
      %v1064 = vld [vmem:[%s253 + $0xc0] sm:$0xff]
      %v1065 = vld [vmem:[%s253 + $0xc8] sm:$0x7f]
      %v1066 = vld [vmem:[%s253 + $0xd0] sm:$0xff]
      %v1067 = vld [vmem:[%s253 + $0xd8] sm:$0x7f]
      %v1068 = vld [vmem:[%s253 + $0xe0] sm:$0xff]
      %v1069 = vld [vmem:[%s253 + $0xe8] sm:$0x7f]
      %v1070 = vld [vmem:[%s253 + $0xf0] sm:$0xff]
      %v1071 = vld [vmem:[%s253 + $0xf8] sm:$0x7f]
      %v1072 = vld [vmem:[%s1] sm:$0x1]
      %v1074 = vperm.slane %v1072, 0
      %v1076 = vmul.f32 %v1040, %v1074
      %v1077 = vmul.f32 %v1041, %v1074
      %v1078 = vmul.f32 %v1042, %v1074
      %v1079 = vmul.f32 %v1043, %v1074
      %v1080 = vmul.f32 %v1044, %v1074
      %v1081 = vmul.f32 %v1045, %v1074
      %v1082 = vmul.f32 %v1046, %v1074
      %v1083 = vmul.f32 %v1047, %v1074
      %v1084 = vmul.f32 %v1048, %v1074
      %v1085 = vmul.f32 %v1049, %v1074
      %v1086 = vmul.f32 %v1050, %v1074
      %v1087 = vmul.f32 %v1051, %v1074
      %v1088 = vmul.f32 %v1052, %v1074
      %v1089 = vmul.f32 %v1053, %v1074
      %v1090 = vmul.f32 %v1054, %v1074
      %v1091 = vmul.f32 %v1055, %v1074
      %v1092 = vmul.f32 %v1056, %v1074
      %v1093 = vmul.f32 %v1057, %v1074
      %v1094 = vmul.f32 %v1058, %v1074
      %v1095 = vmul.f32 %v1059, %v1074
      %v1096 = vmul.f32 %v1060, %v1074
      %v1097 = vmul.f32 %v1061, %v1074
      %v1098 = vmul.f32 %v1062, %v1074
      %v1099 = vmul.f32 %v1063, %v1074
      %v1100 = vmul.f32 %v1064, %v1074
      %v1101 = vmul.f32 %v1065, %v1074
      %v1102 = vmul.f32 %v1066, %v1074
      %v1103 = vmul.f32 %v1067, %v1074
      %v1104 = vmul.f32 %v1068, %v1074
      %v1105 = vmul.f32 %v1069, %v1074
      %v1106 = vmul.f32 %v1070, %v1074
      %v1107 = vmul.f32 %v1071, %v1074
      %v1108 = vld [vmem:[%s2] sm:$0x1]
      %v1110 = vperm.slane %v1108, 0
      %v1112 = vadd.f32 %v1076, %v1110
      %v1113 = vadd.f32 %v1077, %v1110
      %v1114 = vadd.f32 %v1078, %v1110
      %v1115 = vadd.f32 %v1079, %v1110
      %v1116 = vadd.f32 %v1080, %v1110
      %v1117 = vadd.f32 %v1081, %v1110
      %v1118 = vadd.f32 %v1082, %v1110
      %v1119 = vadd.f32 %v1083, %v1110
      %v1120 = vadd.f32 %v1084, %v1110
      %v1121 = vadd.f32 %v1085, %v1110
      %v1122 = vadd.f32 %v1086, %v1110
      %v1123 = vadd.f32 %v1087, %v1110
      %v1124 = vadd.f32 %v1088, %v1110
      %v1125 = vadd.f32 %v1089, %v1110
      %v1126 = vadd.f32 %v1090, %v1110
      %v1127 = vadd.f32 %v1091, %v1110
      %v1128 = vadd.f32 %v1092, %v1110
      %v1129 = vadd.f32 %v1093, %v1110
      %v1130 = vadd.f32 %v1094, %v1110
      %v1131 = vadd.f32 %v1095, %v1110
      %v1132 = vadd.f32 %v1096, %v1110
      %v1133 = vadd.f32 %v1097, %v1110
      %v1134 = vadd.f32 %v1098, %v1110
      %v1135 = vadd.f32 %v1099, %v1110
      %v1136 = vadd.f32 %v1100, %v1110
      %v1137 = vadd.f32 %v1101, %v1110
      %v1138 = vadd.f32 %v1102, %v1110
      %v1139 = vadd.f32 %v1103, %v1110
      %v1140 = vadd.f32 %v1104, %v1110
      %v1141 = vadd.f32 %v1105, %v1110
      %v1142 = vadd.f32 %v1106, %v1110
      %v1143 = vadd.f32 %v1107, %v1110
      %v1144 = vmax.f32 %v1112, 0.0
      %v1145 = vmax.f32 %v1113, 0.0
      %v1146 = vmax.f32 %v1114, 0.0
      %v1147 = vmax.f32 %v1115, 0.0
      %v1148 = vmax.f32 %v1116, 0.0
      %v1149 = vmax.f32 %v1117, 0.0
      %v1150 = vmax.f32 %v1118, 0.0
      %v1151 = vmax.f32 %v1119, 0.0
      %v1152 = vmax.f32 %v1120, 0.0
      %v1153 = vmax.f32 %v1121, 0.0
      %v1154 = vmax.f32 %v1122, 0.0
      %v1155 = vmax.f32 %v1123, 0.0
      %v1156 = vmax.f32 %v1124, 0.0
      %v1157 = vmax.f32 %v1125, 0.0
      %v1158 = vmax.f32 %v1126, 0.0
      %v1159 = vmax.f32 %v1127, 0.0
      %v1160 = vmax.f32 %v1128, 0.0
      %v1161 = vmax.f32 %v1129, 0.0
      %v1162 = vmax.f32 %v1130, 0.0
      %v1163 = vmax.f32 %v1131, 0.0
      %v1164 = vmax.f32 %v1132, 0.0
      %v1165 = vmax.f32 %v1133, 0.0
      %v1166 = vmax.f32 %v1134, 0.0
      %v1167 = vmax.f32 %v1135, 0.0
      %v1168 = vmax.f32 %v1136, 0.0
      %v1169 = vmax.f32 %v1137, 0.0
      %v1170 = vmax.f32 %v1138, 0.0
      %v1171 = vmax.f32 %v1139, 0.0
      %v1172 = vmax.f32 %v1140, 0.0
      %v1173 = vmax.f32 %v1141, 0.0
      %v1174 = vmax.f32 %v1142, 0.0
      %v1175 = vmax.f32 %v1143, 0.0
      %1208 = vrot.lane.b32.xlu0 %v1144, 12
      %v1209 = vpop.permute.xlu0 %1208
      %1210 = vrot.lane.b32.xlu0 %v1145, 12
      %v1211 = vpop.permute.xlu0 %1210
      %1212 = vrot.lane.b32.xlu0 %v1146, 12
      %v1213 = vpop.permute.xlu0 %1212
      %1214 = vrot.lane.b32.xlu0 %v1147, 12
      %v1215 = vpop.permute.xlu0 %1214
      %1216 = vrot.lane.b32.xlu0 %v1148, 12
      %v1217 = vpop.permute.xlu0 %1216
      %1218 = vrot.lane.b32.xlu0 %v1149, 12
      %v1219 = vpop.permute.xlu0 %1218
      %1220 = vrot.lane.b32.xlu0 %v1150, 12
      %v1221 = vpop.permute.xlu0 %1220
      %1222 = vrot.lane.b32.xlu0 %v1151, 12
      %v1223 = vpop.permute.xlu0 %1222
      %1224 = vrot.lane.b32.xlu0 %v1152, 12
      %v1225 = vpop.permute.xlu0 %1224
      %1226 = vrot.lane.b32.xlu0 %v1153, 12
      %v1227 = vpop.permute.xlu0 %1226
      %1228 = vrot.lane.b32.xlu0 %v1154, 12
      %v1229 = vpop.permute.xlu0 %1228
      %1230 = vrot.lane.b32.xlu0 %v1155, 12
      %v1231 = vpop.permute.xlu0 %1230
      %1232 = vrot.lane.b32.xlu0 %v1156, 12
      %v1233 = vpop.permute.xlu0 %1232
      %1234 = vrot.lane.b32.xlu0 %v1157, 12
      %v1235 = vpop.permute.xlu0 %1234
      %1236 = vrot.lane.b32.xlu0 %v1158, 12
      %v1237 = vpop.permute.xlu0 %1236
      %1238 = vrot.lane.b32.xlu0 %v1159, 12
      %v1239 = vpop.permute.xlu0 %1238
      %1240 = vrot.lane.b32.xlu0 %v1160, 12
      %v1241 = vpop.permute.xlu0 %1240
      %1242 = vrot.lane.b32.xlu0 %v1161, 12
      %v1243 = vpop.permute.xlu0 %1242
      %1244 = vrot.lane.b32.xlu0 %v1162, 12
      %v1245 = vpop.permute.xlu0 %1244
      %1246 = vrot.lane.b32.xlu0 %v1163, 12
      %v1247 = vpop.permute.xlu0 %1246
      %1248 = vrot.lane.b32.xlu0 %v1164, 12
      %v1249 = vpop.permute.xlu0 %1248
      %1250 = vrot.lane.b32.xlu0 %v1165, 12
      %v1251 = vpop.permute.xlu0 %1250
      %1252 = vrot.lane.b32.xlu0 %v1166, 12
      %v1253 = vpop.permute.xlu0 %1252
      %1254 = vrot.lane.b32.xlu0 %v1167, 12
      %v1255 = vpop.permute.xlu0 %1254
      %1256 = vrot.lane.b32.xlu0 %v1168, 12
      %v1257 = vpop.permute.xlu0 %1256
      %1258 = vrot.lane.b32.xlu0 %v1169, 12
      %v1259 = vpop.permute.xlu0 %1258
      %1260 = vrot.lane.b32.xlu0 %v1170, 12
      %v1261 = vpop.permute.xlu0 %1260
      %1262 = vrot.lane.b32.xlu0 %v1171, 12
      %v1263 = vpop.permute.xlu0 %1262
      %1264 = vrot.lane.b32.xlu0 %v1172, 12
      %v1265 = vpop.permute.xlu0 %1264
      %1266 = vrot.lane.b32.xlu0 %v1173, 12
      %v1267 = vpop.permute.xlu0 %1266
      %1268 = vrot.lane.b32.xlu0 %v1174, 12
      %v1269 = vpop.permute.xlu0 %1268
      %1270 = vrot.lane.b32.xlu0 %v1175, 12
      %v1271 = vpop.permute.xlu0 %1270
      %vm1304 = vcmask 130144
      %1305 = vst.msk [vmem:[#allocation2 + $0x1] sm:$0xff] %vm1304, %v1209
      %vm1306 = vcmask 129120
      %1307 = vst.msk [vmem:[#allocation2 + $0x9] sm:$0x7f] %vm1306, %v1211
      %1308 = vst.msk [vmem:[#allocation2 + $0x11] sm:$0xff] %vm1304, %v1213
      %1309 = vst.msk [vmem:[#allocation2 + $0x19] sm:$0x7f] %vm1306, %v1215
      %1310 = vst.msk [vmem:[#allocation2 + $0x21] sm:$0xff] %vm1304, %v1217
      %1311 = vst.msk [vmem:[#allocation2 + $0x29] sm:$0x7f] %vm1306, %v1219
      %1312 = vst.msk [vmem:[#allocation2 + $0x31] sm:$0xff] %vm1304, %v1221
      %1313 = vst.msk [vmem:[#allocation2 + $0x39] sm:$0x7f] %vm1306, %v1223
      %1314 = vst.msk [vmem:[#allocation2 + $0x41] sm:$0xff] %vm1304, %v1225
      %1315 = vst.msk [vmem:[#allocation2 + $0x49] sm:$0x7f] %vm1306, %v1227
      %1316 = vst.msk [vmem:[#allocation2 + $0x51] sm:$0xff] %vm1304, %v1229
      %1317 = vst.msk [vmem:[#allocation2 + $0x59] sm:$0x7f] %vm1306, %v1231
      %1318 = vst.msk [vmem:[#allocation2 + $0x61] sm:$0xff] %vm1304, %v1233
      %1319 = vst.msk [vmem:[#allocation2 + $0x69] sm:$0x7f] %vm1306, %v1235
      %1320 = vst.msk [vmem:[#allocation2 + $0x71] sm:$0xff] %vm1304, %v1237
      %1321 = vst.msk [vmem:[#allocation2 + $0x79] sm:$0x7f] %vm1306, %v1239
      %1322 = vst.msk [vmem:[#allocation2 + $0x81] sm:$0xff] %vm1304, %v1241
      %1323 = vst.msk [vmem:[#allocation2 + $0x89] sm:$0x7f] %vm1306, %v1243
      %1324 = vst.msk [vmem:[#allocation2 + $0x91] sm:$0xff] %vm1304, %v1245
      %1325 = vst.msk [vmem:[#allocation2 + $0x99] sm:$0x7f] %vm1306, %v1247
      %1326 = vst.msk [vmem:[#allocation2 + $0xa1] sm:$0xff] %vm1304, %v1249
      %1327 = vst.msk [vmem:[#allocation2 + $0xa9] sm:$0x7f] %vm1306, %v1251
      %1328 = vst.msk [vmem:[#allocation2 + $0xb1] sm:$0xff] %vm1304, %v1253
      %1329 = vst.msk [vmem:[#allocation2 + $0xb9] sm:$0x7f] %vm1306, %v1255
      %1330 = vst.msk [vmem:[#allocation2 + $0xc1] sm:$0xff] %vm1304, %v1257
      %1331 = vst.msk [vmem:[#allocation2 + $0xc9] sm:$0x7f] %vm1306, %v1259
      %1332 = vst.msk [vmem:[#allocation2 + $0xd1] sm:$0xff] %vm1304, %v1261
      %1333 = vst.msk [vmem:[#allocation2 + $0xd9] sm:$0x7f] %vm1306, %v1263
      %1334 = vst.msk [vmem:[#allocation2 + $0xe1] sm:$0xff] %vm1304, %v1265
      %1335 = vst.msk [vmem:[#allocation2 + $0xe9] sm:$0x7f] %vm1306, %v1267
      %1336 = vst.msk [vmem:[#allocation2 + $0xf1] sm:$0xff] %vm1304, %v1269
      %1337 = vst.msk [vmem:[#allocation2 + $0xf9] sm:$0x7f] %vm1306, %v1271
      %v1338 = vld [vmem:[%s253] sm:$0xff]
      %v1339 = vld [vmem:[%s253 + $0x8] sm:$0xff]
      %v1340 = vld [vmem:[%s253 + $0x10] sm:$0xff]
      %v1341 = vld [vmem:[%s253 + $0x18] sm:$0xff]
      %v1342 = vld [vmem:[%s253 + $0x20] sm:$0xff]
      %v1343 = vld [vmem:[%s253 + $0x28] sm:$0xff]
      %v1344 = vld [vmem:[%s253 + $0x30] sm:$0xff]
      %v1345 = vld [vmem:[%s253 + $0x38] sm:$0xff]
      %v1346 = vld [vmem:[%s253 + $0x40] sm:$0xff]
      %v1347 = vld [vmem:[%s253 + $0x48] sm:$0xff]
      %v1348 = vld [vmem:[%s253 + $0x50] sm:$0xff]
      %v1349 = vld [vmem:[%s253 + $0x58] sm:$0xff]
      %v1350 = vld [vmem:[%s253 + $0x60] sm:$0xff]
      %v1351 = vld [vmem:[%s253 + $0x68] sm:$0xff]
      %v1352 = vld [vmem:[%s253 + $0x70] sm:$0xff]
      %v1353 = vld [vmem:[%s253 + $0x78] sm:$0xff]
      %v1354 = vld [vmem:[%s253 + $0x80] sm:$0xff]
      %v1355 = vld [vmem:[%s253 + $0x88] sm:$0xff]
      %v1356 = vld [vmem:[%s253 + $0x90] sm:$0xff]
      %v1357 = vld [vmem:[%s253 + $0x98] sm:$0xff]
      %v1358 = vld [vmem:[%s253 + $0xa0] sm:$0xff]
      %v1359 = vld [vmem:[%s253 + $0xa8] sm:$0xff]
      %v1360 = vld [vmem:[%s253 + $0xb0] sm:$0xff]
      %v1361 = vld [vmem:[%s253 + $0xb8] sm:$0xff]
      %v1362 = vld [vmem:[%s253 + $0xc0] sm:$0xff]
      %v1363 = vld [vmem:[%s253 + $0xc8] sm:$0xff]
      %v1364 = vld [vmem:[%s253 + $0xd0] sm:$0xff]
      %v1365 = vld [vmem:[%s253 + $0xd8] sm:$0xff]
      %v1366 = vld [vmem:[%s253 + $0xe0] sm:$0xff]
      %v1367 = vld [vmem:[%s253 + $0xe8] sm:$0xff]
      %v1368 = vld [vmem:[%s253 + $0xf0] sm:$0xff]
      %v1369 = vld [vmem:[%s253 + $0xf8] sm:$0xff]
      %v1370 = vld [vmem:[%s1] sm:$0x1]
      %v1372 = vperm.slane %v1370, 0
      %v1374 = vmul.f32 %v1338, %v1372
      %v1375 = vmul.f32 %v1339, %v1372
      %v1376 = vmul.f32 %v1340, %v1372
      %v1377 = vmul.f32 %v1341, %v1372
      %v1378 = vmul.f32 %v1342, %v1372
      %v1379 = vmul.f32 %v1343, %v1372
      %v1380 = vmul.f32 %v1344, %v1372
      %v1381 = vmul.f32 %v1345, %v1372
      %v1382 = vmul.f32 %v1346, %v1372
      %v1383 = vmul.f32 %v1347, %v1372
      %v1384 = vmul.f32 %v1348, %v1372
      %v1385 = vmul.f32 %v1349, %v1372
      %v1386 = vmul.f32 %v1350, %v1372
      %v1387 = vmul.f32 %v1351, %v1372
      %v1388 = vmul.f32 %v1352, %v1372
      %v1389 = vmul.f32 %v1353, %v1372
      %v1390 = vmul.f32 %v1354, %v1372
      %v1391 = vmul.f32 %v1355, %v1372
      %v1392 = vmul.f32 %v1356, %v1372
      %v1393 = vmul.f32 %v1357, %v1372
      %v1394 = vmul.f32 %v1358, %v1372
      %v1395 = vmul.f32 %v1359, %v1372
      %v1396 = vmul.f32 %v1360, %v1372
      %v1397 = vmul.f32 %v1361, %v1372
      %v1398 = vmul.f32 %v1362, %v1372
      %v1399 = vmul.f32 %v1363, %v1372
      %v1400 = vmul.f32 %v1364, %v1372
      %v1401 = vmul.f32 %v1365, %v1372
      %v1402 = vmul.f32 %v1366, %v1372
      %v1403 = vmul.f32 %v1367, %v1372
      %v1404 = vmul.f32 %v1368, %v1372
      %v1405 = vmul.f32 %v1369, %v1372
      %v1406 = vld [vmem:[%s2] sm:$0x1]
      %v1408 = vperm.slane %v1406, 0
      %v1410 = vadd.f32 %v1374, %v1408
      %v1411 = vadd.f32 %v1375, %v1408
      %v1412 = vadd.f32 %v1376, %v1408
      %v1413 = vadd.f32 %v1377, %v1408
      %v1414 = vadd.f32 %v1378, %v1408
      %v1415 = vadd.f32 %v1379, %v1408
      %v1416 = vadd.f32 %v1380, %v1408
      %v1417 = vadd.f32 %v1381, %v1408
      %v1418 = vadd.f32 %v1382, %v1408
      %v1419 = vadd.f32 %v1383, %v1408
      %v1420 = vadd.f32 %v1384, %v1408
      %v1421 = vadd.f32 %v1385, %v1408
      %v1422 = vadd.f32 %v1386, %v1408
      %v1423 = vadd.f32 %v1387, %v1408
      %v1424 = vadd.f32 %v1388, %v1408
      %v1425 = vadd.f32 %v1389, %v1408
      %v1426 = vadd.f32 %v1390, %v1408
      %v1427 = vadd.f32 %v1391, %v1408
      %v1428 = vadd.f32 %v1392, %v1408
      %v1429 = vadd.f32 %v1393, %v1408
      %v1430 = vadd.f32 %v1394, %v1408
      %v1431 = vadd.f32 %v1395, %v1408
      %v1432 = vadd.f32 %v1396, %v1408
      %v1433 = vadd.f32 %v1397, %v1408
      %v1434 = vadd.f32 %v1398, %v1408
      %v1435 = vadd.f32 %v1399, %v1408
      %v1436 = vadd.f32 %v1400, %v1408
      %v1437 = vadd.f32 %v1401, %v1408
      %v1438 = vadd.f32 %v1402, %v1408
      %v1439 = vadd.f32 %v1403, %v1408
      %v1440 = vadd.f32 %v1404, %v1408
      %v1441 = vadd.f32 %v1405, %v1408
      %v1442 = vmax.f32 %v1410, 0.0
      %v1443 = vmax.f32 %v1411, 0.0
      %v1444 = vmax.f32 %v1412, 0.0
      %v1445 = vmax.f32 %v1413, 0.0
      %v1446 = vmax.f32 %v1414, 0.0
      %v1447 = vmax.f32 %v1415, 0.0
      %v1448 = vmax.f32 %v1416, 0.0
      %v1449 = vmax.f32 %v1417, 0.0
      %v1450 = vmax.f32 %v1418, 0.0
      %v1451 = vmax.f32 %v1419, 0.0
      %v1452 = vmax.f32 %v1420, 0.0
      %v1453 = vmax.f32 %v1421, 0.0
      %v1454 = vmax.f32 %v1422, 0.0
      %v1455 = vmax.f32 %v1423, 0.0
      %v1456 = vmax.f32 %v1424, 0.0
      %v1457 = vmax.f32 %v1425, 0.0
      %v1458 = vmax.f32 %v1426, 0.0
      %v1459 = vmax.f32 %v1427, 0.0
      %v1460 = vmax.f32 %v1428, 0.0
      %v1461 = vmax.f32 %v1429, 0.0
      %v1462 = vmax.f32 %v1430, 0.0
      %v1463 = vmax.f32 %v1431, 0.0
      %v1464 = vmax.f32 %v1432, 0.0
      %v1465 = vmax.f32 %v1433, 0.0
      %v1466 = vmax.f32 %v1434, 0.0
      %v1467 = vmax.f32 %v1435, 0.0
      %v1468 = vmax.f32 %v1436, 0.0
      %v1469 = vmax.f32 %v1437, 0.0
      %v1470 = vmax.f32 %v1438, 0.0
      %v1471 = vmax.f32 %v1439, 0.0
      %v1472 = vmax.f32 %v1440, 0.0
      %v1473 = vmax.f32 %v1441, 0.0
      %1506 = vrot.lane.b32.xlu0 %v1442, 16
      %v1507 = vpop.permute.xlu0 %1506
      %1508 = vrot.lane.b32.xlu0 %v1443, 16
      %v1509 = vpop.permute.xlu0 %1508
      %1510 = vrot.lane.b32.xlu0 %v1444, 16
      %v1511 = vpop.permute.xlu0 %1510
      %1512 = vrot.lane.b32.xlu0 %v1445, 16
      %v1513 = vpop.permute.xlu0 %1512
      %1514 = vrot.lane.b32.xlu0 %v1446, 16
      %v1515 = vpop.permute.xlu0 %1514
      %1516 = vrot.lane.b32.xlu0 %v1447, 16
      %v1517 = vpop.permute.xlu0 %1516
      %1518 = vrot.lane.b32.xlu0 %v1448, 16
      %v1519 = vpop.permute.xlu0 %1518
      %1520 = vrot.lane.b32.xlu0 %v1449, 16
      %v1521 = vpop.permute.xlu0 %1520
      %1522 = vrot.lane.b32.xlu0 %v1450, 16
      %v1523 = vpop.permute.xlu0 %1522
      %1524 = vrot.lane.b32.xlu0 %v1451, 16
      %v1525 = vpop.permute.xlu0 %1524
      %1526 = vrot.lane.b32.xlu0 %v1452, 16
      %v1527 = vpop.permute.xlu0 %1526
      %1528 = vrot.lane.b32.xlu0 %v1453, 16
      %v1529 = vpop.permute.xlu0 %1528
      %1530 = vrot.lane.b32.xlu0 %v1454, 16
      %v1531 = vpop.permute.xlu0 %1530
      %1532 = vrot.lane.b32.xlu0 %v1455, 16
      %v1533 = vpop.permute.xlu0 %1532
      %1534 = vrot.lane.b32.xlu0 %v1456, 16
      %v1535 = vpop.permute.xlu0 %1534
      %1536 = vrot.lane.b32.xlu0 %v1457, 16
      %v1537 = vpop.permute.xlu0 %1536
      %1538 = vrot.lane.b32.xlu0 %v1458, 16
      %v1539 = vpop.permute.xlu0 %1538
      %1540 = vrot.lane.b32.xlu0 %v1459, 16
      %v1541 = vpop.permute.xlu0 %1540
      %1542 = vrot.lane.b32.xlu0 %v1460, 16
      %v1543 = vpop.permute.xlu0 %1542
      %1544 = vrot.lane.b32.xlu0 %v1461, 16
      %v1545 = vpop.permute.xlu0 %1544
      %1546 = vrot.lane.b32.xlu0 %v1462, 16
      %v1547 = vpop.permute.xlu0 %1546
      %1548 = vrot.lane.b32.xlu0 %v1463, 16
      %v1549 = vpop.permute.xlu0 %1548
      %1550 = vrot.lane.b32.xlu0 %v1464, 16
      %v1551 = vpop.permute.xlu0 %1550
      %1552 = vrot.lane.b32.xlu0 %v1465, 16
      %v1553 = vpop.permute.xlu0 %1552
      %1554 = vrot.lane.b32.xlu0 %v1466, 16
      %v1555 = vpop.permute.xlu0 %1554
      %1556 = vrot.lane.b32.xlu0 %v1467, 16
      %v1557 = vpop.permute.xlu0 %1556
      %1558 = vrot.lane.b32.xlu0 %v1468, 16
      %v1559 = vpop.permute.xlu0 %1558
      %1560 = vrot.lane.b32.xlu0 %v1469, 16
      %v1561 = vpop.permute.xlu0 %1560
      %1562 = vrot.lane.b32.xlu0 %v1470, 16
      %v1563 = vpop.permute.xlu0 %1562
      %1564 = vrot.lane.b32.xlu0 %v1471, 16
      %v1565 = vpop.permute.xlu0 %1564
      %1566 = vrot.lane.b32.xlu0 %v1472, 16
      %v1567 = vpop.permute.xlu0 %1566
      %1568 = vrot.lane.b32.xlu0 %v1473, 16
      %v1569 = vpop.permute.xlu0 %1568
      %vm1602 = vcmask 162944
      %1603 = vst.msk [vmem:[#allocation2] sm:$0xff] %vm1602, %v1507
      %1604 = vst.msk [vmem:[#allocation2 + $0x8] sm:$0xff] %vm1602, %v1509
      %1605 = vst.msk [vmem:[#allocation2 + $0x10] sm:$0xff] %vm1602, %v1511
      %1606 = vst.msk [vmem:[#allocation2 + $0x18] sm:$0xff] %vm1602, %v1513
      %1607 = vst.msk [vmem:[#allocation2 + $0x20] sm:$0xff] %vm1602, %v1515
      %1608 = vst.msk [vmem:[#allocation2 + $0x28] sm:$0xff] %vm1602, %v1517
      %1609 = vst.msk [vmem:[#allocation2 + $0x30] sm:$0xff] %vm1602, %v1519
      %1610 = vst.msk [vmem:[#allocation2 + $0x38] sm:$0xff] %vm1602, %v1521
      %1611 = vst.msk [vmem:[#allocation2 + $0x40] sm:$0xff] %vm1602, %v1523
      %1612 = vst.msk [vmem:[#allocation2 + $0x48] sm:$0xff] %vm1602, %v1525
      %1613 = vst.msk [vmem:[#allocation2 + $0x50] sm:$0xff] %vm1602, %v1527
      %1614 = vst.msk [vmem:[#allocation2 + $0x58] sm:$0xff] %vm1602, %v1529
      %1615 = vst.msk [vmem:[#allocation2 + $0x60] sm:$0xff] %vm1602, %v1531
      %1616 = vst.msk [vmem:[#allocation2 + $0x68] sm:$0xff] %vm1602, %v1533
      %1617 = vst.msk [vmem:[#allocation2 + $0x70] sm:$0xff] %vm1602, %v1535
      %1618 = vst.msk [vmem:[#allocation2 + $0x78] sm:$0xff] %vm1602, %v1537
      %1619 = vst.msk [vmem:[#allocation2 + $0x80] sm:$0xff] %vm1602, %v1539
      %1620 = vst.msk [vmem:[#allocation2 + $0x88] sm:$0xff] %vm1602, %v1541
      %1621 = vst.msk [vmem:[#allocation2 + $0x90] sm:$0xff] %vm1602, %v1543
      %1622 = vst.msk [vmem:[#allocation2 + $0x98] sm:$0xff] %vm1602, %v1545
      %1623 = vst.msk [vmem:[#allocation2 + $0xa0] sm:$0xff] %vm1602, %v1547
      %1624 = vst.msk [vmem:[#allocation2 + $0xa8] sm:$0xff] %vm1602, %v1549
      %1625 = vst.msk [vmem:[#allocation2 + $0xb0] sm:$0xff] %vm1602, %v1551
      %1626 = vst.msk [vmem:[#allocation2 + $0xb8] sm:$0xff] %vm1602, %v1553
      %1627 = vst.msk [vmem:[#allocation2 + $0xc0] sm:$0xff] %vm1602, %v1555
      %1628 = vst.msk [vmem:[#allocation2 + $0xc8] sm:$0xff] %vm1602, %v1557
      %1629 = vst.msk [vmem:[#allocation2 + $0xd0] sm:$0xff] %vm1602, %v1559
      %1630 = vst.msk [vmem:[#allocation2 + $0xd8] sm:$0xff] %vm1602, %v1561
      %1631 = vst.msk [vmem:[#allocation2 + $0xe0] sm:$0xff] %vm1602, %v1563
      %1632 = vst.msk [vmem:[#allocation2 + $0xe8] sm:$0xff] %vm1602, %v1565
      %1633 = vst.msk [vmem:[#allocation2 + $0xf0] sm:$0xff] %vm1602, %v1567
      %1634 = vst.msk [vmem:[#allocation2 + $0xf8] sm:$0xff] %vm1602, %v1569
      %vm1635 = vcmask 188576
      %1636 = vst.msk [vmem:[#allocation2 + $0xf] sm:$0x1] %vm1635, 0.0
      %1637 = vst.msk [vmem:[#allocation2 + $0x1f] sm:$0x1] %vm1635, 0.0
      %1638 = vst.msk [vmem:[#allocation2 + $0x2f] sm:$0x1] %vm1635, 0.0
      %1639 = vst.msk [vmem:[#allocation2 + $0x3f] sm:$0x1] %vm1635, 0.0
      %1640 = vst.msk [vmem:[#allocation2 + $0x4f] sm:$0x1] %vm1635, 0.0
      %1641 = vst.msk [vmem:[#allocation2 + $0x5f] sm:$0x1] %vm1635, 0.0
      %1642 = vst.msk [vmem:[#allocation2 + $0x6f] sm:$0x1] %vm1635, 0.0
      %1643 = vst.msk [vmem:[#allocation2 + $0x7f] sm:$0x1] %vm1635, 0.0
      %1644 = vst.msk [vmem:[#allocation2 + $0x8f] sm:$0x1] %vm1635, 0.0
      %1645 = vst.msk [vmem:[#allocation2 + $0x9f] sm:$0x1] %vm1635, 0.0
      %1646 = vst.msk [vmem:[#allocation2 + $0xaf] sm:$0x1] %vm1635, 0.0
      %1647 = vst.msk [vmem:[#allocation2 + $0xbf] sm:$0x1] %vm1635, 0.0
      %1648 = vst.msk [vmem:[#allocation2 + $0xcf] sm:$0x1] %vm1635, 0.0
      %1649 = vst.msk [vmem:[#allocation2 + $0xdf] sm:$0x1] %vm1635, 0.0
      %1650 = vst.msk [vmem:[#allocation2 + $0xef] sm:$0x1] %vm1635, 0.0
      %1651 = vst.msk [vmem:[#allocation2 + $0xff] sm:$0x1] %vm1635, 0.0
      %v1652 = vld [vmem:[%s253 + $0x1] sm:$0xff]
      %v1653 = vld [vmem:[%s253 + $0x9] sm:$0x7f]
      %v1654 = vld [vmem:[%s253 + $0x11] sm:$0xff]
      %v1655 = vld [vmem:[%s253 + $0x19] sm:$0x7f]
      %v1656 = vld [vmem:[%s253 + $0x21] sm:$0xff]
      %v1657 = vld [vmem:[%s253 + $0x29] sm:$0x7f]
      %v1658 = vld [vmem:[%s253 + $0x31] sm:$0xff]
      %v1659 = vld [vmem:[%s253 + $0x39] sm:$0x7f]
      %v1660 = vld [vmem:[%s253 + $0x41] sm:$0xff]
      %v1661 = vld [vmem:[%s253 + $0x49] sm:$0x7f]
      %v1662 = vld [vmem:[%s253 + $0x51] sm:$0xff]
      %v1663 = vld [vmem:[%s253 + $0x59] sm:$0x7f]
      %v1664 = vld [vmem:[%s253 + $0x61] sm:$0xff]
      %v1665 = vld [vmem:[%s253 + $0x69] sm:$0x7f]
      %v1666 = vld [vmem:[%s253 + $0x71] sm:$0xff]
      %v1667 = vld [vmem:[%s253 + $0x79] sm:$0x7f]
      %v1668 = vld [vmem:[%s253 + $0x81] sm:$0xff]
      %v1669 = vld [vmem:[%s253 + $0x89] sm:$0x7f]
      %v1670 = vld [vmem:[%s253 + $0x91] sm:$0xff]
      %v1671 = vld [vmem:[%s253 + $0x99] sm:$0x7f]
      %v1672 = vld [vmem:[%s253 + $0xa1] sm:$0xff]
      %v1673 = vld [vmem:[%s253 + $0xa9] sm:$0x7f]
      %v1674 = vld [vmem:[%s253 + $0xb1] sm:$0xff]
      %v1675 = vld [vmem:[%s253 + $0xb9] sm:$0x7f]
      %v1676 = vld [vmem:[%s253 + $0xc1] sm:$0xff]
      %v1677 = vld [vmem:[%s253 + $0xc9] sm:$0x7f]
      %v1678 = vld [vmem:[%s253 + $0xd1] sm:$0xff]
      %v1679 = vld [vmem:[%s253 + $0xd9] sm:$0x7f]
      %v1680 = vld [vmem:[%s253 + $0xe1] sm:$0xff]
      %v1681 = vld [vmem:[%s253 + $0xe9] sm:$0x7f]
      %v1682 = vld [vmem:[%s253 + $0xf1] sm:$0xff]
      %v1683 = vld [vmem:[%s253 + $0xf9] sm:$0x7f]
      %v1684 = vld [vmem:[%s1] sm:$0x1]
      %v1686 = vperm.slane %v1684, 0
      %v1688 = vmul.f32 %v1652, %v1686
      %v1689 = vmul.f32 %v1653, %v1686
      %v1690 = vmul.f32 %v1654, %v1686
      %v1691 = vmul.f32 %v1655, %v1686
      %v1692 = vmul.f32 %v1656, %v1686
      %v1693 = vmul.f32 %v1657, %v1686
      %v1694 = vmul.f32 %v1658, %v1686
      %v1695 = vmul.f32 %v1659, %v1686
      %v1696 = vmul.f32 %v1660, %v1686
      %v1697 = vmul.f32 %v1661, %v1686
      %v1698 = vmul.f32 %v1662, %v1686
      %v1699 = vmul.f32 %v1663, %v1686
      %v1700 = vmul.f32 %v1664, %v1686
      %v1701 = vmul.f32 %v1665, %v1686
      %v1702 = vmul.f32 %v1666, %v1686
      %v1703 = vmul.f32 %v1667, %v1686
      %v1704 = vmul.f32 %v1668, %v1686
      %v1705 = vmul.f32 %v1669, %v1686
      %v1706 = vmul.f32 %v1670, %v1686
      %v1707 = vmul.f32 %v1671, %v1686
      %v1708 = vmul.f32 %v1672, %v1686
      %v1709 = vmul.f32 %v1673, %v1686
      %v1710 = vmul.f32 %v1674, %v1686
      %v1711 = vmul.f32 %v1675, %v1686
      %v1712 = vmul.f32 %v1676, %v1686
      %v1713 = vmul.f32 %v1677, %v1686
      %v1714 = vmul.f32 %v1678, %v1686
      %v1715 = vmul.f32 %v1679, %v1686
      %v1716 = vmul.f32 %v1680, %v1686
      %v1717 = vmul.f32 %v1681, %v1686
      %v1718 = vmul.f32 %v1682, %v1686
      %v1719 = vmul.f32 %v1683, %v1686
      %v1720 = vld [vmem:[%s2] sm:$0x1]
      %v1722 = vperm.slane %v1720, 0
      %v1724 = vadd.f32 %v1688, %v1722
      %v1725 = vadd.f32 %v1689, %v1722
      %v1726 = vadd.f32 %v1690, %v1722
      %v1727 = vadd.f32 %v1691, %v1722
      %v1728 = vadd.f32 %v1692, %v1722
      %v1729 = vadd.f32 %v1693, %v1722
      %v1730 = vadd.f32 %v1694, %v1722
      %v1731 = vadd.f32 %v1695, %v1722
      %v1732 = vadd.f32 %v1696, %v1722
      %v1733 = vadd.f32 %v1697, %v1722
      %v1734 = vadd.f32 %v1698, %v1722
      %v1735 = vadd.f32 %v1699, %v1722
      %v1736 = vadd.f32 %v1700, %v1722
      %v1737 = vadd.f32 %v1701, %v1722
      %v1738 = vadd.f32 %v1702, %v1722
      %v1739 = vadd.f32 %v1703, %v1722
      %v1740 = vadd.f32 %v1704, %v1722
      %v1741 = vadd.f32 %v1705, %v1722
      %v1742 = vadd.f32 %v1706, %v1722
      %v1743 = vadd.f32 %v1707, %v1722
      %v1744 = vadd.f32 %v1708, %v1722
      %v1745 = vadd.f32 %v1709, %v1722
      %v1746 = vadd.f32 %v1710, %v1722
      %v1747 = vadd.f32 %v1711, %v1722
      %v1748 = vadd.f32 %v1712, %v1722
      %v1749 = vadd.f32 %v1713, %v1722
      %v1750 = vadd.f32 %v1714, %v1722
      %v1751 = vadd.f32 %v1715, %v1722
      %v1752 = vadd.f32 %v1716, %v1722
      %v1753 = vadd.f32 %v1717, %v1722
      %v1754 = vadd.f32 %v1718, %v1722
      %v1755 = vadd.f32 %v1719, %v1722
      %v1756 = vmax.f32 %v1724, 0.0
      %v1757 = vmax.f32 %v1725, 0.0
      %v1758 = vmax.f32 %v1726, 0.0
      %v1759 = vmax.f32 %v1727, 0.0
      %v1760 = vmax.f32 %v1728, 0.0
      %v1761 = vmax.f32 %v1729, 0.0
      %v1762 = vmax.f32 %v1730, 0.0
      %v1763 = vmax.f32 %v1731, 0.0
      %v1764 = vmax.f32 %v1732, 0.0
      %v1765 = vmax.f32 %v1733, 0.0
      %v1766 = vmax.f32 %v1734, 0.0
      %v1767 = vmax.f32 %v1735, 0.0
      %v1768 = vmax.f32 %v1736, 0.0
      %v1769 = vmax.f32 %v1737, 0.0
      %v1770 = vmax.f32 %v1738, 0.0
      %v1771 = vmax.f32 %v1739, 0.0
      %v1772 = vmax.f32 %v1740, 0.0
      %v1773 = vmax.f32 %v1741, 0.0
      %v1774 = vmax.f32 %v1742, 0.0
      %v1775 = vmax.f32 %v1743, 0.0
      %v1776 = vmax.f32 %v1744, 0.0
      %v1777 = vmax.f32 %v1745, 0.0
      %v1778 = vmax.f32 %v1746, 0.0
      %v1779 = vmax.f32 %v1747, 0.0
      %v1780 = vmax.f32 %v1748, 0.0
      %v1781 = vmax.f32 %v1749, 0.0
      %v1782 = vmax.f32 %v1750, 0.0
      %v1783 = vmax.f32 %v1751, 0.0
      %v1784 = vmax.f32 %v1752, 0.0
      %v1785 = vmax.f32 %v1753, 0.0
      %v1786 = vmax.f32 %v1754, 0.0
      %v1787 = vmax.f32 %v1755, 0.0
      %1820 = vrot.lane.b32.xlu0 %v1756, 20
      %v1821 = vpop.permute.xlu0 %1820
      %1822 = vrot.lane.b32.xlu0 %v1757, 20
      %v1823 = vpop.permute.xlu0 %1822
      %1824 = vrot.lane.b32.xlu0 %v1758, 20
      %v1825 = vpop.permute.xlu0 %1824
      %1826 = vrot.lane.b32.xlu0 %v1759, 20
      %v1827 = vpop.permute.xlu0 %1826
      %1828 = vrot.lane.b32.xlu0 %v1760, 20
      %v1829 = vpop.permute.xlu0 %1828
      %1830 = vrot.lane.b32.xlu0 %v1761, 20
      %v1831 = vpop.permute.xlu0 %1830
      %1832 = vrot.lane.b32.xlu0 %v1762, 20
      %v1833 = vpop.permute.xlu0 %1832
      %1834 = vrot.lane.b32.xlu0 %v1763, 20
      %v1835 = vpop.permute.xlu0 %1834
      %1836 = vrot.lane.b32.xlu0 %v1764, 20
      %v1837 = vpop.permute.xlu0 %1836
      %1838 = vrot.lane.b32.xlu0 %v1765, 20
      %v1839 = vpop.permute.xlu0 %1838
      %1840 = vrot.lane.b32.xlu0 %v1766, 20
      %v1841 = vpop.permute.xlu0 %1840
      %1842 = vrot.lane.b32.xlu0 %v1767, 20
      %v1843 = vpop.permute.xlu0 %1842
      %1844 = vrot.lane.b32.xlu0 %v1768, 20
      %v1845 = vpop.permute.xlu0 %1844
      %1846 = vrot.lane.b32.xlu0 %v1769, 20
      %v1847 = vpop.permute.xlu0 %1846
      %1848 = vrot.lane.b32.xlu0 %v1770, 20
      %v1849 = vpop.permute.xlu0 %1848
      %1850 = vrot.lane.b32.xlu0 %v1771, 20
      %v1851 = vpop.permute.xlu0 %1850
      %1852 = vrot.lane.b32.xlu0 %v1772, 20
      %v1853 = vpop.permute.xlu0 %1852
      %1854 = vrot.lane.b32.xlu0 %v1773, 20
      %v1855 = vpop.permute.xlu0 %1854
      %1856 = vrot.lane.b32.xlu0 %v1774, 20
      %v1857 = vpop.permute.xlu0 %1856
      %1858 = vrot.lane.b32.xlu0 %v1775, 20
      %v1859 = vpop.permute.xlu0 %1858
      %1860 = vrot.lane.b32.xlu0 %v1776, 20
      %v1861 = vpop.permute.xlu0 %1860
      %1862 = vrot.lane.b32.xlu0 %v1777, 20
      %v1863 = vpop.permute.xlu0 %1862
      %1864 = vrot.lane.b32.xlu0 %v1778, 20
      %v1865 = vpop.permute.xlu0 %1864
      %1866 = vrot.lane.b32.xlu0 %v1779, 20
      %v1867 = vpop.permute.xlu0 %1866
      %1868 = vrot.lane.b32.xlu0 %v1780, 20
      %v1869 = vpop.permute.xlu0 %1868
      %1870 = vrot.lane.b32.xlu0 %v1781, 20
      %v1871 = vpop.permute.xlu0 %1870
      %1872 = vrot.lane.b32.xlu0 %v1782, 20
      %v1873 = vpop.permute.xlu0 %1872
      %1874 = vrot.lane.b32.xlu0 %v1783, 20
      %v1875 = vpop.permute.xlu0 %1874
      %1876 = vrot.lane.b32.xlu0 %v1784, 20
      %v1877 = vpop.permute.xlu0 %1876
      %1878 = vrot.lane.b32.xlu0 %v1785, 20
      %v1879 = vpop.permute.xlu0 %1878
      %1880 = vrot.lane.b32.xlu0 %v1786, 20
      %v1881 = vpop.permute.xlu0 %1880
      %1882 = vrot.lane.b32.xlu0 %v1787, 20
      %v1883 = vpop.permute.xlu0 %1882
      %vm1916 = vcmask 195744
      %1917 = vst.msk [vmem:[#allocation2] sm:$0xff] %vm1916, %v1821
      %vm1918 = vcmask 194720
      %1919 = vst.msk [vmem:[#allocation2 + $0x8] sm:$0x7f] %vm1918, %v1823
      %1920 = vst.msk [vmem:[#allocation2 + $0x10] sm:$0xff] %vm1916, %v1825
      %1921 = vst.msk [vmem:[#allocation2 + $0x18] sm:$0x7f] %vm1918, %v1827
      %1922 = vst.msk [vmem:[#allocation2 + $0x20] sm:$0xff] %vm1916, %v1829
      %1923 = vst.msk [vmem:[#allocation2 + $0x28] sm:$0x7f] %vm1918, %v1831
      %1924 = vst.msk [vmem:[#allocation2 + $0x30] sm:$0xff] %vm1916, %v1833
      %1925 = vst.msk [vmem:[#allocation2 + $0x38] sm:$0x7f] %vm1918, %v1835
      %1926 = vst.msk [vmem:[#allocation2 + $0x40] sm:$0xff] %vm1916, %v1837
      %1927 = vst.msk [vmem:[#allocation2 + $0x48] sm:$0x7f] %vm1918, %v1839
      %1928 = vst.msk [vmem:[#allocation2 + $0x50] sm:$0xff] %vm1916, %v1841
      %1929 = vst.msk [vmem:[#allocation2 + $0x58] sm:$0x7f] %vm1918, %v1843
      %1930 = vst.msk [vmem:[#allocation2 + $0x60] sm:$0xff] %vm1916, %v1845
      %1931 = vst.msk [vmem:[#allocation2 + $0x68] sm:$0x7f] %vm1918, %v1847
      %1932 = vst.msk [vmem:[#allocation2 + $0x70] sm:$0xff] %vm1916, %v1849
      %1933 = vst.msk [vmem:[#allocation2 + $0x78] sm:$0x7f] %vm1918, %v1851
      %1934 = vst.msk [vmem:[#allocation2 + $0x80] sm:$0xff] %vm1916, %v1853
      %1935 = vst.msk [vmem:[#allocation2 + $0x88] sm:$0x7f] %vm1918, %v1855
      %1936 = vst.msk [vmem:[#allocation2 + $0x90] sm:$0xff] %vm1916, %v1857
      %1937 = vst.msk [vmem:[#allocation2 + $0x98] sm:$0x7f] %vm1918, %v1859
      %1938 = vst.msk [vmem:[#allocation2 + $0xa0] sm:$0xff] %vm1916, %v1861
      %1939 = vst.msk [vmem:[#allocation2 + $0xa8] sm:$0x7f] %vm1918, %v1863
      %1940 = vst.msk [vmem:[#allocation2 + $0xb0] sm:$0xff] %vm1916, %v1865
      %1941 = vst.msk [vmem:[#allocation2 + $0xb8] sm:$0x7f] %vm1918, %v1867
      %1942 = vst.msk [vmem:[#allocation2 + $0xc0] sm:$0xff] %vm1916, %v1869
      %1943 = vst.msk [vmem:[#allocation2 + $0xc8] sm:$0x7f] %vm1918, %v1871
      %1944 = vst.msk [vmem:[#allocation2 + $0xd0] sm:$0xff] %vm1916, %v1873
      %1945 = vst.msk [vmem:[#allocation2 + $0xd8] sm:$0x7f] %vm1918, %v1875
      %1946 = vst.msk [vmem:[#allocation2 + $0xe0] sm:$0xff] %vm1916, %v1877
      %1947 = vst.msk [vmem:[#allocation2 + $0xe8] sm:$0x7f] %vm1918, %v1879
      %1948 = vst.msk [vmem:[#allocation2 + $0xf0] sm:$0xff] %vm1916, %v1881
      %1949 = vst.msk [vmem:[#allocation2 + $0xf8] sm:$0x7f] %vm1918, %v1883
      %s1950 = scalar_lea.vmem [#allocation2], 240
      %vm1951 = vcmask 228544
      %1952 = vst.msk [vmem:[%s1950] sm:$0xff] %vm1951, 0.0
      %1953 = vst.msk [vmem:[%s1950 + $0x8] sm:$0xff] %vm1951, 0.0
      %vm1954 = vcmask 221376
      %1955 = vst.msk [vmem:[#allocation2] sm:$0x1] %vm1954, 0.0
      %1956 = vst.msk [vmem:[#allocation2 + $0x10] sm:$0x1] %vm1954, 0.0
      %1957 = vst.msk [vmem:[#allocation2 + $0x20] sm:$0x1] %vm1954, 0.0
      %1958 = vst.msk [vmem:[#allocation2 + $0x30] sm:$0x1] %vm1954, 0.0
      %1959 = vst.msk [vmem:[#allocation2 + $0x40] sm:$0x1] %vm1954, 0.0
      %1960 = vst.msk [vmem:[#allocation2 + $0x50] sm:$0x1] %vm1954, 0.0
      %1961 = vst.msk [vmem:[#allocation2 + $0x60] sm:$0x1] %vm1954, 0.0
      %1962 = vst.msk [vmem:[#allocation2 + $0x70] sm:$0x1] %vm1954, 0.0
      %1963 = vst.msk [vmem:[#allocation2 + $0x80] sm:$0x1] %vm1954, 0.0
      %1964 = vst.msk [vmem:[#allocation2 + $0x90] sm:$0x1] %vm1954, 0.0
      %1965 = vst.msk [vmem:[#allocation2 + $0xa0] sm:$0x1] %vm1954, 0.0
      %1966 = vst.msk [vmem:[#allocation2 + $0xb0] sm:$0x1] %vm1954, 0.0
      %1967 = vst.msk [vmem:[#allocation2 + $0xc0] sm:$0x1] %vm1954, 0.0
      %1968 = vst.msk [vmem:[#allocation2 + $0xd0] sm:$0x1] %vm1954, 0.0
      %1969 = vst.msk [vmem:[#allocation2 + $0xe0] sm:$0x1] %vm1954, 0.0
      %1970 = vst.msk [vmem:[#allocation2 + $0xf0] sm:$0x1] %vm1954, 0.0
      %s1971 = scalar_lea.vmem %s253, 16
      %v1972 = vld [vmem:[%s1971] sm:$0xff]
      %v1973 = vld [vmem:[%s1971 + $0x8] sm:$0x7f]
      %v1974 = vld [vmem:[%s1971 + $0x10] sm:$0xff]
      %v1975 = vld [vmem:[%s1971 + $0x18] sm:$0x7f]
      %v1976 = vld [vmem:[%s1971 + $0x20] sm:$0xff]
      %v1977 = vld [vmem:[%s1971 + $0x28] sm:$0x7f]
      %v1978 = vld [vmem:[%s1971 + $0x30] sm:$0xff]
      %v1979 = vld [vmem:[%s1971 + $0x38] sm:$0x7f]
      %v1980 = vld [vmem:[%s1971 + $0x40] sm:$0xff]
      %v1981 = vld [vmem:[%s1971 + $0x48] sm:$0x7f]
      %v1982 = vld [vmem:[%s1971 + $0x50] sm:$0xff]
      %v1983 = vld [vmem:[%s1971 + $0x58] sm:$0x7f]
      %v1984 = vld [vmem:[%s1971 + $0x60] sm:$0xff]
      %v1985 = vld [vmem:[%s1971 + $0x68] sm:$0x7f]
      %v1986 = vld [vmem:[%s1971 + $0x70] sm:$0xff]
      %v1987 = vld [vmem:[%s1971 + $0x78] sm:$0x7f]
      %v1988 = vld [vmem:[%s1971 + $0x80] sm:$0xff]
      %v1989 = vld [vmem:[%s1971 + $0x88] sm:$0x7f]
      %v1990 = vld [vmem:[%s1971 + $0x90] sm:$0xff]
      %v1991 = vld [vmem:[%s1971 + $0x98] sm:$0x7f]
      %v1992 = vld [vmem:[%s1971 + $0xa0] sm:$0xff]
      %v1993 = vld [vmem:[%s1971 + $0xa8] sm:$0x7f]
      %v1994 = vld [vmem:[%s1971 + $0xb0] sm:$0xff]
      %v1995 = vld [vmem:[%s1971 + $0xb8] sm:$0x7f]
      %v1996 = vld [vmem:[%s1971 + $0xc0] sm:$0xff]
      %v1997 = vld [vmem:[%s1971 + $0xc8] sm:$0x7f]
      %v1998 = vld [vmem:[%s1971 + $0xd0] sm:$0xff]
      %v1999 = vld [vmem:[%s1971 + $0xd8] sm:$0x7f]
      %v2000 = vld [vmem:[%s1971 + $0xe0] sm:$0xff]
      %v2001 = vld [vmem:[%s1971 + $0xe8] sm:$0x7f]
      %v2002 = vld [vmem:[%s1] sm:$0x1]
      %v2004 = vperm.slane %v2002, 0
      %v2006 = vmul.f32 %v1972, %v2004
      %v2007 = vmul.f32 %v1973, %v2004
      %v2008 = vmul.f32 %v1974, %v2004
      %v2009 = vmul.f32 %v1975, %v2004
      %v2010 = vmul.f32 %v1976, %v2004
      %v2011 = vmul.f32 %v1977, %v2004
      %v2012 = vmul.f32 %v1978, %v2004
      %v2013 = vmul.f32 %v1979, %v2004
      %v2014 = vmul.f32 %v1980, %v2004
      %v2015 = vmul.f32 %v1981, %v2004
      %v2016 = vmul.f32 %v1982, %v2004
      %v2017 = vmul.f32 %v1983, %v2004
      %v2018 = vmul.f32 %v1984, %v2004
      %v2019 = vmul.f32 %v1985, %v2004
      %v2020 = vmul.f32 %v1986, %v2004
      %v2021 = vmul.f32 %v1987, %v2004
      %v2022 = vmul.f32 %v1988, %v2004
      %v2023 = vmul.f32 %v1989, %v2004
      %v2024 = vmul.f32 %v1990, %v2004
      %v2025 = vmul.f32 %v1991, %v2004
      %v2026 = vmul.f32 %v1992, %v2004
      %v2027 = vmul.f32 %v1993, %v2004
      %v2028 = vmul.f32 %v1994, %v2004
      %v2029 = vmul.f32 %v1995, %v2004
      %v2030 = vmul.f32 %v1996, %v2004
      %v2031 = vmul.f32 %v1997, %v2004
      %v2032 = vmul.f32 %v1998, %v2004
      %v2033 = vmul.f32 %v1999, %v2004
      %v2034 = vmul.f32 %v2000, %v2004
      %v2035 = vmul.f32 %v2001, %v2004
      %v2036 = vld [vmem:[%s2] sm:$0x1]
      %v2038 = vperm.slane %v2036, 0
      %v2040 = vadd.f32 %v2006, %v2038
      %v2041 = vadd.f32 %v2007, %v2038
      %v2042 = vadd.f32 %v2008, %v2038
      %v2043 = vadd.f32 %v2009, %v2038
      %v2044 = vadd.f32 %v2010, %v2038
      %v2045 = vadd.f32 %v2011, %v2038
      %v2046 = vadd.f32 %v2012, %v2038
      %v2047 = vadd.f32 %v2013, %v2038
      %v2048 = vadd.f32 %v2014, %v2038
      %v2049 = vadd.f32 %v2015, %v2038
      %v2050 = vadd.f32 %v2016, %v2038
      %v2051 = vadd.f32 %v2017, %v2038
      %v2052 = vadd.f32 %v2018, %v2038
      %v2053 = vadd.f32 %v2019, %v2038
      %v2054 = vadd.f32 %v2020, %v2038
      %v2055 = vadd.f32 %v2021, %v2038
      %v2056 = vadd.f32 %v2022, %v2038
      %v2057 = vadd.f32 %v2023, %v2038
      %v2058 = vadd.f32 %v2024, %v2038
      %v2059 = vadd.f32 %v2025, %v2038
      %v2060 = vadd.f32 %v2026, %v2038
      %v2061 = vadd.f32 %v2027, %v2038
      %v2062 = vadd.f32 %v2028, %v2038
      %v2063 = vadd.f32 %v2029, %v2038
      %v2064 = vadd.f32 %v2030, %v2038
      %v2065 = vadd.f32 %v2031, %v2038
      %v2066 = vadd.f32 %v2032, %v2038
      %v2067 = vadd.f32 %v2033, %v2038
      %v2068 = vadd.f32 %v2034, %v2038
      %v2069 = vadd.f32 %v2035, %v2038
      %v2070 = vmax.f32 %v2040, 0.0
      %v2071 = vmax.f32 %v2041, 0.0
      %v2072 = vmax.f32 %v2042, 0.0
      %v2073 = vmax.f32 %v2043, 0.0
      %v2074 = vmax.f32 %v2044, 0.0
      %v2075 = vmax.f32 %v2045, 0.0
      %v2076 = vmax.f32 %v2046, 0.0
      %v2077 = vmax.f32 %v2047, 0.0
      %v2078 = vmax.f32 %v2048, 0.0
      %v2079 = vmax.f32 %v2049, 0.0
      %v2080 = vmax.f32 %v2050, 0.0
      %v2081 = vmax.f32 %v2051, 0.0
      %v2082 = vmax.f32 %v2052, 0.0
      %v2083 = vmax.f32 %v2053, 0.0
      %v2084 = vmax.f32 %v2054, 0.0
      %v2085 = vmax.f32 %v2055, 0.0
      %v2086 = vmax.f32 %v2056, 0.0
      %v2087 = vmax.f32 %v2057, 0.0
      %v2088 = vmax.f32 %v2058, 0.0
      %v2089 = vmax.f32 %v2059, 0.0
      %v2090 = vmax.f32 %v2060, 0.0
      %v2091 = vmax.f32 %v2061, 0.0
      %v2092 = vmax.f32 %v2062, 0.0
      %v2093 = vmax.f32 %v2063, 0.0
      %v2094 = vmax.f32 %v2064, 0.0
      %v2095 = vmax.f32 %v2065, 0.0
      %v2096 = vmax.f32 %v2066, 0.0
      %v2097 = vmax.f32 %v2067, 0.0
      %v2098 = vmax.f32 %v2068, 0.0
      %v2099 = vmax.f32 %v2069, 0.0
      %2130 = vrot.lane.b32.xlu0 %v2070, 24
      %v2131 = vpop.permute.xlu0 %2130
      %2132 = vrot.lane.b32.xlu0 %v2071, 24
      %v2133 = vpop.permute.xlu0 %2132
      %2134 = vrot.lane.b32.xlu0 %v2072, 24
      %v2135 = vpop.permute.xlu0 %2134
      %2136 = vrot.lane.b32.xlu0 %v2073, 24
      %v2137 = vpop.permute.xlu0 %2136
      %2138 = vrot.lane.b32.xlu0 %v2074, 24
      %v2139 = vpop.permute.xlu0 %2138
      %2140 = vrot.lane.b32.xlu0 %v2075, 24
      %v2141 = vpop.permute.xlu0 %2140
      %2142 = vrot.lane.b32.xlu0 %v2076, 24
      %v2143 = vpop.permute.xlu0 %2142
      %2144 = vrot.lane.b32.xlu0 %v2077, 24
      %v2145 = vpop.permute.xlu0 %2144
      %2146 = vrot.lane.b32.xlu0 %v2078, 24
      %v2147 = vpop.permute.xlu0 %2146
      %2148 = vrot.lane.b32.xlu0 %v2079, 24
      %v2149 = vpop.permute.xlu0 %2148
      %2150 = vrot.lane.b32.xlu0 %v2080, 24
      %v2151 = vpop.permute.xlu0 %2150
      %2152 = vrot.lane.b32.xlu0 %v2081, 24
      %v2153 = vpop.permute.xlu0 %2152
      %2154 = vrot.lane.b32.xlu0 %v2082, 24
      %v2155 = vpop.permute.xlu0 %2154
      %2156 = vrot.lane.b32.xlu0 %v2083, 24
      %v2157 = vpop.permute.xlu0 %2156
      %2158 = vrot.lane.b32.xlu0 %v2084, 24
      %v2159 = vpop.permute.xlu0 %2158
      %2160 = vrot.lane.b32.xlu0 %v2085, 24
      %v2161 = vpop.permute.xlu0 %2160
      %2162 = vrot.lane.b32.xlu0 %v2086, 24
      %v2163 = vpop.permute.xlu0 %2162
      %2164 = vrot.lane.b32.xlu0 %v2087, 24
      %v2165 = vpop.permute.xlu0 %2164
      %2166 = vrot.lane.b32.xlu0 %v2088, 24
      %v2167 = vpop.permute.xlu0 %2166
      %2168 = vrot.lane.b32.xlu0 %v2089, 24
      %v2169 = vpop.permute.xlu0 %2168
      %2170 = vrot.lane.b32.xlu0 %v2090, 24
      %v2171 = vpop.permute.xlu0 %2170
      %2172 = vrot.lane.b32.xlu0 %v2091, 24
      %v2173 = vpop.permute.xlu0 %2172
      %2174 = vrot.lane.b32.xlu0 %v2092, 24
      %v2175 = vpop.permute.xlu0 %2174
      %2176 = vrot.lane.b32.xlu0 %v2093, 24
      %v2177 = vpop.permute.xlu0 %2176
      %2178 = vrot.lane.b32.xlu0 %v2094, 24
      %v2179 = vpop.permute.xlu0 %2178
      %2180 = vrot.lane.b32.xlu0 %v2095, 24
      %v2181 = vpop.permute.xlu0 %2180
      %2182 = vrot.lane.b32.xlu0 %v2096, 24
      %v2183 = vpop.permute.xlu0 %2182
      %2184 = vrot.lane.b32.xlu0 %v2097, 24
      %v2185 = vpop.permute.xlu0 %2184
      %2186 = vrot.lane.b32.xlu0 %v2098, 24
      %v2187 = vpop.permute.xlu0 %2186
      %2188 = vrot.lane.b32.xlu0 %v2099, 24
      %v2189 = vpop.permute.xlu0 %2188
      %2220 = vst.msk [vmem:[#allocation2 + $0x1] sm:$0xff] %vm1951, %v2131
      %vm2221 = vcmask 227520
      %2222 = vst.msk [vmem:[#allocation2 + $0x9] sm:$0x7f] %vm2221, %v2133
      %2223 = vst.msk [vmem:[#allocation2 + $0x11] sm:$0xff] %vm1951, %v2135
      %2224 = vst.msk [vmem:[#allocation2 + $0x19] sm:$0x7f] %vm2221, %v2137
      %2225 = vst.msk [vmem:[#allocation2 + $0x21] sm:$0xff] %vm1951, %v2139
      %2226 = vst.msk [vmem:[#allocation2 + $0x29] sm:$0x7f] %vm2221, %v2141
      %2227 = vst.msk [vmem:[#allocation2 + $0x31] sm:$0xff] %vm1951, %v2143
      %2228 = vst.msk [vmem:[#allocation2 + $0x39] sm:$0x7f] %vm2221, %v2145
      %2229 = vst.msk [vmem:[#allocation2 + $0x41] sm:$0xff] %vm1951, %v2147
      %2230 = vst.msk [vmem:[#allocation2 + $0x49] sm:$0x7f] %vm2221, %v2149
      %2231 = vst.msk [vmem:[#allocation2 + $0x51] sm:$0xff] %vm1951, %v2151
      %2232 = vst.msk [vmem:[#allocation2 + $0x59] sm:$0x7f] %vm2221, %v2153
      %2233 = vst.msk [vmem:[#allocation2 + $0x61] sm:$0xff] %vm1951, %v2155
      %2234 = vst.msk [vmem:[#allocation2 + $0x69] sm:$0x7f] %vm2221, %v2157
      %2235 = vst.msk [vmem:[#allocation2 + $0x71] sm:$0xff] %vm1951, %v2159
      %2236 = vst.msk [vmem:[#allocation2 + $0x79] sm:$0x7f] %vm2221, %v2161
      %2237 = vst.msk [vmem:[#allocation2 + $0x81] sm:$0xff] %vm1951, %v2163
      %2238 = vst.msk [vmem:[#allocation2 + $0x89] sm:$0x7f] %vm2221, %v2165
      %2239 = vst.msk [vmem:[#allocation2 + $0x91] sm:$0xff] %vm1951, %v2167
      %2240 = vst.msk [vmem:[#allocation2 + $0x99] sm:$0x7f] %vm2221, %v2169
      %2241 = vst.msk [vmem:[#allocation2 + $0xa1] sm:$0xff] %vm1951, %v2171
      %2242 = vst.msk [vmem:[#allocation2 + $0xa9] sm:$0x7f] %vm2221, %v2173
      %2243 = vst.msk [vmem:[#allocation2 + $0xb1] sm:$0xff] %vm1951, %v2175
      %2244 = vst.msk [vmem:[#allocation2 + $0xb9] sm:$0x7f] %vm2221, %v2177
      %2245 = vst.msk [vmem:[#allocation2 + $0xc1] sm:$0xff] %vm1951, %v2179
      %2246 = vst.msk [vmem:[#allocation2 + $0xc9] sm:$0x7f] %vm2221, %v2181
      %2247 = vst.msk [vmem:[#allocation2 + $0xd1] sm:$0xff] %vm1951, %v2183
      %2248 = vst.msk [vmem:[#allocation2 + $0xd9] sm:$0x7f] %vm2221, %v2185
      %2249 = vst.msk [vmem:[#allocation2 + $0xe1] sm:$0xff] %vm1951, %v2187
      %2250 = vst.msk [vmem:[#allocation2 + $0xe9] sm:$0x7f] %vm2221, %v2189
      %vm2251 = vcmask 261344
      %2252 = vst.msk [vmem:[%s1950] sm:$0xff] %vm2251, 0.0
      %2253 = vst.msk [vmem:[%s1950 + $0x8] sm:$0xff] %vm2251, 0.0
      %v2254 = vld [vmem:[%s1971] sm:$0xff]
      %v2255 = vld [vmem:[%s1971 + $0x8] sm:$0xff]
      %v2256 = vld [vmem:[%s1971 + $0x10] sm:$0xff]
      %v2257 = vld [vmem:[%s1971 + $0x18] sm:$0xff]
      %v2258 = vld [vmem:[%s1971 + $0x20] sm:$0xff]
      %v2259 = vld [vmem:[%s1971 + $0x28] sm:$0xff]
      %v2260 = vld [vmem:[%s1971 + $0x30] sm:$0xff]
      %v2261 = vld [vmem:[%s1971 + $0x38] sm:$0xff]
      %v2262 = vld [vmem:[%s1971 + $0x40] sm:$0xff]
      %v2263 = vld [vmem:[%s1971 + $0x48] sm:$0xff]
      %v2264 = vld [vmem:[%s1971 + $0x50] sm:$0xff]
      %v2265 = vld [vmem:[%s1971 + $0x58] sm:$0xff]
      %v2266 = vld [vmem:[%s1971 + $0x60] sm:$0xff]
      %v2267 = vld [vmem:[%s1971 + $0x68] sm:$0xff]
      %v2268 = vld [vmem:[%s1971 + $0x70] sm:$0xff]
      %v2269 = vld [vmem:[%s1971 + $0x78] sm:$0xff]
      %v2270 = vld [vmem:[%s1971 + $0x80] sm:$0xff]
      %v2271 = vld [vmem:[%s1971 + $0x88] sm:$0xff]
      %v2272 = vld [vmem:[%s1971 + $0x90] sm:$0xff]
      %v2273 = vld [vmem:[%s1971 + $0x98] sm:$0xff]
      %v2274 = vld [vmem:[%s1971 + $0xa0] sm:$0xff]
      %v2275 = vld [vmem:[%s1971 + $0xa8] sm:$0xff]
      %v2276 = vld [vmem:[%s1971 + $0xb0] sm:$0xff]
      %v2277 = vld [vmem:[%s1971 + $0xb8] sm:$0xff]
      %v2278 = vld [vmem:[%s1971 + $0xc0] sm:$0xff]
      %v2279 = vld [vmem:[%s1971 + $0xc8] sm:$0xff]
      %v2280 = vld [vmem:[%s1971 + $0xd0] sm:$0xff]
      %v2281 = vld [vmem:[%s1971 + $0xd8] sm:$0xff]
      %v2282 = vld [vmem:[%s1971 + $0xe0] sm:$0xff]
      %v2283 = vld [vmem:[%s1971 + $0xe8] sm:$0xff]
      %v2284 = vld [vmem:[%s1] sm:$0x1]
      %v2286 = vperm.slane %v2284, 0
      %v2288 = vmul.f32 %v2254, %v2286
      %v2289 = vmul.f32 %v2255, %v2286
      %v2290 = vmul.f32 %v2256, %v2286
      %v2291 = vmul.f32 %v2257, %v2286
      %v2292 = vmul.f32 %v2258, %v2286
      %v2293 = vmul.f32 %v2259, %v2286
      %v2294 = vmul.f32 %v2260, %v2286
      %v2295 = vmul.f32 %v2261, %v2286
      %v2296 = vmul.f32 %v2262, %v2286
      %v2297 = vmul.f32 %v2263, %v2286
      %v2298 = vmul.f32 %v2264, %v2286
      %v2299 = vmul.f32 %v2265, %v2286
      %v2300 = vmul.f32 %v2266, %v2286
      %v2301 = vmul.f32 %v2267, %v2286
      %v2302 = vmul.f32 %v2268, %v2286
      %v2303 = vmul.f32 %v2269, %v2286
      %v2304 = vmul.f32 %v2270, %v2286
      %v2305 = vmul.f32 %v2271, %v2286
      %v2306 = vmul.f32 %v2272, %v2286
      %v2307 = vmul.f32 %v2273, %v2286
      %v2308 = vmul.f32 %v2274, %v2286
      %v2309 = vmul.f32 %v2275, %v2286
      %v2310 = vmul.f32 %v2276, %v2286
      %v2311 = vmul.f32 %v2277, %v2286
      %v2312 = vmul.f32 %v2278, %v2286
      %v2313 = vmul.f32 %v2279, %v2286
      %v2314 = vmul.f32 %v2280, %v2286
      %v2315 = vmul.f32 %v2281, %v2286
      %v2316 = vmul.f32 %v2282, %v2286
      %v2317 = vmul.f32 %v2283, %v2286
      %v2318 = vld [vmem:[%s2] sm:$0x1]
      %v2320 = vperm.slane %v2318, 0
      %v2322 = vadd.f32 %v2288, %v2320
      %v2323 = vadd.f32 %v2289, %v2320
      %v2324 = vadd.f32 %v2290, %v2320
      %v2325 = vadd.f32 %v2291, %v2320
      %v2326 = vadd.f32 %v2292, %v2320
      %v2327 = vadd.f32 %v2293, %v2320
      %v2328 = vadd.f32 %v2294, %v2320
      %v2329 = vadd.f32 %v2295, %v2320
      %v2330 = vadd.f32 %v2296, %v2320
      %v2331 = vadd.f32 %v2297, %v2320
      %v2332 = vadd.f32 %v2298, %v2320
      %v2333 = vadd.f32 %v2299, %v2320
      %v2334 = vadd.f32 %v2300, %v2320
      %v2335 = vadd.f32 %v2301, %v2320
      %v2336 = vadd.f32 %v2302, %v2320
      %v2337 = vadd.f32 %v2303, %v2320
      %v2338 = vadd.f32 %v2304, %v2320
      %v2339 = vadd.f32 %v2305, %v2320
      %v2340 = vadd.f32 %v2306, %v2320
      %v2341 = vadd.f32 %v2307, %v2320
      %v2342 = vadd.f32 %v2308, %v2320
      %v2343 = vadd.f32 %v2309, %v2320
      %v2344 = vadd.f32 %v2310, %v2320
      %v2345 = vadd.f32 %v2311, %v2320
      %v2346 = vadd.f32 %v2312, %v2320
      %v2347 = vadd.f32 %v2313, %v2320
      %v2348 = vadd.f32 %v2314, %v2320
      %v2349 = vadd.f32 %v2315, %v2320
      %v2350 = vadd.f32 %v2316, %v2320
      %v2351 = vadd.f32 %v2317, %v2320
      %v2352 = vmax.f32 %v2322, 0.0
      %v2353 = vmax.f32 %v2323, 0.0
      %v2354 = vmax.f32 %v2324, 0.0
      %v2355 = vmax.f32 %v2325, 0.0
      %v2356 = vmax.f32 %v2326, 0.0
      %v2357 = vmax.f32 %v2327, 0.0
      %v2358 = vmax.f32 %v2328, 0.0
      %v2359 = vmax.f32 %v2329, 0.0
      %v2360 = vmax.f32 %v2330, 0.0
      %v2361 = vmax.f32 %v2331, 0.0
      %v2362 = vmax.f32 %v2332, 0.0
      %v2363 = vmax.f32 %v2333, 0.0
      %v2364 = vmax.f32 %v2334, 0.0
      %v2365 = vmax.f32 %v2335, 0.0
      %v2366 = vmax.f32 %v2336, 0.0
      %v2367 = vmax.f32 %v2337, 0.0
      %v2368 = vmax.f32 %v2338, 0.0
      %v2369 = vmax.f32 %v2339, 0.0
      %v2370 = vmax.f32 %v2340, 0.0
      %v2371 = vmax.f32 %v2341, 0.0
      %v2372 = vmax.f32 %v2342, 0.0
      %v2373 = vmax.f32 %v2343, 0.0
      %v2374 = vmax.f32 %v2344, 0.0
      %v2375 = vmax.f32 %v2345, 0.0
      %v2376 = vmax.f32 %v2346, 0.0
      %v2377 = vmax.f32 %v2347, 0.0
      %v2378 = vmax.f32 %v2348, 0.0
      %v2379 = vmax.f32 %v2349, 0.0
      %v2380 = vmax.f32 %v2350, 0.0
      %v2381 = vmax.f32 %v2351, 0.0
      %2412 = vrot.lane.b32.xlu0 %v2352, 28
      %v2413 = vpop.permute.xlu0 %2412
      %2414 = vrot.lane.b32.xlu0 %v2353, 28
      %v2415 = vpop.permute.xlu0 %2414
      %2416 = vrot.lane.b32.xlu0 %v2354, 28
      %v2417 = vpop.permute.xlu0 %2416
      %2418 = vrot.lane.b32.xlu0 %v2355, 28
      %v2419 = vpop.permute.xlu0 %2418
      %2420 = vrot.lane.b32.xlu0 %v2356, 28
      %v2421 = vpop.permute.xlu0 %2420
      %2422 = vrot.lane.b32.xlu0 %v2357, 28
      %v2423 = vpop.permute.xlu0 %2422
      %2424 = vrot.lane.b32.xlu0 %v2358, 28
      %v2425 = vpop.permute.xlu0 %2424
      %2426 = vrot.lane.b32.xlu0 %v2359, 28
      %v2427 = vpop.permute.xlu0 %2426
      %2428 = vrot.lane.b32.xlu0 %v2360, 28
      %v2429 = vpop.permute.xlu0 %2428
      %2430 = vrot.lane.b32.xlu0 %v2361, 28
      %v2431 = vpop.permute.xlu0 %2430
      %2432 = vrot.lane.b32.xlu0 %v2362, 28
      %v2433 = vpop.permute.xlu0 %2432
      %2434 = vrot.lane.b32.xlu0 %v2363, 28
      %v2435 = vpop.permute.xlu0 %2434
      %2436 = vrot.lane.b32.xlu0 %v2364, 28
      %v2437 = vpop.permute.xlu0 %2436
      %2438 = vrot.lane.b32.xlu0 %v2365, 28
      %v2439 = vpop.permute.xlu0 %2438
      %2440 = vrot.lane.b32.xlu0 %v2366, 28
      %v2441 = vpop.permute.xlu0 %2440
      %2442 = vrot.lane.b32.xlu0 %v2367, 28
      %v2443 = vpop.permute.xlu0 %2442
      %2444 = vrot.lane.b32.xlu0 %v2368, 28
      %v2445 = vpop.permute.xlu0 %2444
      %2446 = vrot.lane.b32.xlu0 %v2369, 28
      %v2447 = vpop.permute.xlu0 %2446
      %2448 = vrot.lane.b32.xlu0 %v2370, 28
      %v2449 = vpop.permute.xlu0 %2448
      %2450 = vrot.lane.b32.xlu0 %v2371, 28
      %v2451 = vpop.permute.xlu0 %2450
      %2452 = vrot.lane.b32.xlu0 %v2372, 28
      %v2453 = vpop.permute.xlu0 %2452
      %2454 = vrot.lane.b32.xlu0 %v2373, 28
      %v2455 = vpop.permute.xlu0 %2454
      %2456 = vrot.lane.b32.xlu0 %v2374, 28
      %v2457 = vpop.permute.xlu0 %2456
      %2458 = vrot.lane.b32.xlu0 %v2375, 28
      %v2459 = vpop.permute.xlu0 %2458
      %2460 = vrot.lane.b32.xlu0 %v2376, 28
      %v2461 = vpop.permute.xlu0 %2460
      %2462 = vrot.lane.b32.xlu0 %v2377, 28
      %v2463 = vpop.permute.xlu0 %2462
      %2464 = vrot.lane.b32.xlu0 %v2378, 28
      %v2465 = vpop.permute.xlu0 %2464
      %2466 = vrot.lane.b32.xlu0 %v2379, 28
      %v2467 = vpop.permute.xlu0 %2466
      %2468 = vrot.lane.b32.xlu0 %v2380, 28
      %v2469 = vpop.permute.xlu0 %2468
      %2470 = vrot.lane.b32.xlu0 %v2381, 28
      %v2471 = vpop.permute.xlu0 %2470
      %2502 = vst.msk [vmem:[#allocation2] sm:$0xff] %vm2251, %v2413
      %2503 = vst.msk [vmem:[#allocation2 + $0x8] sm:$0xff] %vm2251, %v2415
      %2504 = vst.msk [vmem:[#allocation2 + $0x10] sm:$0xff] %vm2251, %v2417
      %2505 = vst.msk [vmem:[#allocation2 + $0x18] sm:$0xff] %vm2251, %v2419
      %2506 = vst.msk [vmem:[#allocation2 + $0x20] sm:$0xff] %vm2251, %v2421
      %2507 = vst.msk [vmem:[#allocation2 + $0x28] sm:$0xff] %vm2251, %v2423
      %2508 = vst.msk [vmem:[#allocation2 + $0x30] sm:$0xff] %vm2251, %v2425
      %2509 = vst.msk [vmem:[#allocation2 + $0x38] sm:$0xff] %vm2251, %v2427
      %2510 = vst.msk [vmem:[#allocation2 + $0x40] sm:$0xff] %vm2251, %v2429
      %2511 = vst.msk [vmem:[#allocation2 + $0x48] sm:$0xff] %vm2251, %v2431
      %2512 = vst.msk [vmem:[#allocation2 + $0x50] sm:$0xff] %vm2251, %v2433
      %2513 = vst.msk [vmem:[#allocation2 + $0x58] sm:$0xff] %vm2251, %v2435
      %2514 = vst.msk [vmem:[#allocation2 + $0x60] sm:$0xff] %vm2251, %v2437
      %2515 = vst.msk [vmem:[#allocation2 + $0x68] sm:$0xff] %vm2251, %v2439
      %2516 = vst.msk [vmem:[#allocation2 + $0x70] sm:$0xff] %vm2251, %v2441
      %2517 = vst.msk [vmem:[#allocation2 + $0x78] sm:$0xff] %vm2251, %v2443
      %2518 = vst.msk [vmem:[#allocation2 + $0x80] sm:$0xff] %vm2251, %v2445
      %2519 = vst.msk [vmem:[#allocation2 + $0x88] sm:$0xff] %vm2251, %v2447
      %2520 = vst.msk [vmem:[#allocation2 + $0x90] sm:$0xff] %vm2251, %v2449
      %2521 = vst.msk [vmem:[#allocation2 + $0x98] sm:$0xff] %vm2251, %v2451
      %2522 = vst.msk [vmem:[#allocation2 + $0xa0] sm:$0xff] %vm2251, %v2453
      %2523 = vst.msk [vmem:[#allocation2 + $0xa8] sm:$0xff] %vm2251, %v2455
      %2524 = vst.msk [vmem:[#allocation2 + $0xb0] sm:$0xff] %vm2251, %v2457
      %2525 = vst.msk [vmem:[#allocation2 + $0xb8] sm:$0xff] %vm2251, %v2459
      %2526 = vst.msk [vmem:[#allocation2 + $0xc0] sm:$0xff] %vm2251, %v2461
      %2527 = vst.msk [vmem:[#allocation2 + $0xc8] sm:$0xff] %vm2251, %v2463
      %2528 = vst.msk [vmem:[#allocation2 + $0xd0] sm:$0xff] %vm2251, %v2465
      %2529 = vst.msk [vmem:[#allocation2 + $0xd8] sm:$0xff] %vm2251, %v2467
      %2530 = vst.msk [vmem:[#allocation2 + $0xe0] sm:$0xff] %vm2251, %v2469
      %2531 = vst.msk [vmem:[#allocation2 + $0xe8] sm:$0xff] %vm2251, %v2471
      %vm2532 = vcmask 294144
      %2533 = vst.msk [vmem:[%s1950] sm:$0xff] %vm2532, 0.0
      %2534 = vst.msk [vmem:[%s1950 + $0x8] sm:$0xff] %vm2532, 0.0
      %vm2535 = vcmask 286976
      %2536 = vst.msk [vmem:[#allocation2 + $0xf] sm:$0x1] %vm2535, 0.0
      %2537 = vst.msk [vmem:[#allocation2 + $0x1f] sm:$0x1] %vm2535, 0.0
      %2538 = vst.msk [vmem:[#allocation2 + $0x2f] sm:$0x1] %vm2535, 0.0
      %2539 = vst.msk [vmem:[#allocation2 + $0x3f] sm:$0x1] %vm2535, 0.0
      %2540 = vst.msk [vmem:[#allocation2 + $0x4f] sm:$0x1] %vm2535, 0.0
      %2541 = vst.msk [vmem:[#allocation2 + $0x5f] sm:$0x1] %vm2535, 0.0
      %2542 = vst.msk [vmem:[#allocation2 + $0x6f] sm:$0x1] %vm2535, 0.0
      %2543 = vst.msk [vmem:[#allocation2 + $0x7f] sm:$0x1] %vm2535, 0.0
      %2544 = vst.msk [vmem:[#allocation2 + $0x8f] sm:$0x1] %vm2535, 0.0
      %2545 = vst.msk [vmem:[#allocation2 + $0x9f] sm:$0x1] %vm2535, 0.0
      %2546 = vst.msk [vmem:[#allocation2 + $0xaf] sm:$0x1] %vm2535, 0.0
      %2547 = vst.msk [vmem:[#allocation2 + $0xbf] sm:$0x1] %vm2535, 0.0
      %2548 = vst.msk [vmem:[#allocation2 + $0xcf] sm:$0x1] %vm2535, 0.0
      %2549 = vst.msk [vmem:[#allocation2 + $0xdf] sm:$0x1] %vm2535, 0.0
      %2550 = vst.msk [vmem:[#allocation2 + $0xef] sm:$0x1] %vm2535, 0.0
      %2551 = vst.msk [vmem:[#allocation2 + $0xff] sm:$0x1] %vm2535, 0.0
      %v2552 = vld [vmem:[%s1971 + $0x1] sm:$0xff]
      %v2553 = vld [vmem:[%s1971 + $0x9] sm:$0x7f]
      %v2554 = vld [vmem:[%s1971 + $0x11] sm:$0xff]
      %v2555 = vld [vmem:[%s1971 + $0x19] sm:$0x7f]
      %v2556 = vld [vmem:[%s1971 + $0x21] sm:$0xff]
      %v2557 = vld [vmem:[%s1971 + $0x29] sm:$0x7f]
      %v2558 = vld [vmem:[%s1971 + $0x31] sm:$0xff]
      %v2559 = vld [vmem:[%s1971 + $0x39] sm:$0x7f]
      %v2560 = vld [vmem:[%s1971 + $0x41] sm:$0xff]
      %v2561 = vld [vmem:[%s1971 + $0x49] sm:$0x7f]
      %v2562 = vld [vmem:[%s1971 + $0x51] sm:$0xff]
      %v2563 = vld [vmem:[%s1971 + $0x59] sm:$0x7f]
      %v2564 = vld [vmem:[%s1971 + $0x61] sm:$0xff]
      %v2565 = vld [vmem:[%s1971 + $0x69] sm:$0x7f]
      %v2566 = vld [vmem:[%s1971 + $0x71] sm:$0xff]
      %v2567 = vld [vmem:[%s1971 + $0x79] sm:$0x7f]
      %v2568 = vld [vmem:[%s1971 + $0x81] sm:$0xff]
      %v2569 = vld [vmem:[%s1971 + $0x89] sm:$0x7f]
      %v2570 = vld [vmem:[%s1971 + $0x91] sm:$0xff]
      %v2571 = vld [vmem:[%s1971 + $0x99] sm:$0x7f]
      %v2572 = vld [vmem:[%s1971 + $0xa1] sm:$0xff]
      %v2573 = vld [vmem:[%s1971 + $0xa9] sm:$0x7f]
      %v2574 = vld [vmem:[%s1971 + $0xb1] sm:$0xff]
      %v2575 = vld [vmem:[%s1971 + $0xb9] sm:$0x7f]
      %v2576 = vld [vmem:[%s1971 + $0xc1] sm:$0xff]
      %v2577 = vld [vmem:[%s1971 + $0xc9] sm:$0x7f]
      %v2578 = vld [vmem:[%s1971 + $0xd1] sm:$0xff]
      %v2579 = vld [vmem:[%s1971 + $0xd9] sm:$0x7f]
      %v2580 = vld [vmem:[%s1971 + $0xe1] sm:$0xff]
      %v2581 = vld [vmem:[%s1971 + $0xe9] sm:$0x7f]
      %v2582 = vld [vmem:[%s1] sm:$0x1]
      %v2584 = vperm.slane %v2582, 0
      %v2586 = vmul.f32 %v2552, %v2584
      %v2587 = vmul.f32 %v2553, %v2584
      %v2588 = vmul.f32 %v2554, %v2584
      %v2589 = vmul.f32 %v2555, %v2584
      %v2590 = vmul.f32 %v2556, %v2584
      %v2591 = vmul.f32 %v2557, %v2584
      %v2592 = vmul.f32 %v2558, %v2584
      %v2593 = vmul.f32 %v2559, %v2584
      %v2594 = vmul.f32 %v2560, %v2584
      %v2595 = vmul.f32 %v2561, %v2584
      %v2596 = vmul.f32 %v2562, %v2584
      %v2597 = vmul.f32 %v2563, %v2584
      %v2598 = vmul.f32 %v2564, %v2584
      %v2599 = vmul.f32 %v2565, %v2584
      %v2600 = vmul.f32 %v2566, %v2584
      %v2601 = vmul.f32 %v2567, %v2584
      %v2602 = vmul.f32 %v2568, %v2584
      %v2603 = vmul.f32 %v2569, %v2584
      %v2604 = vmul.f32 %v2570, %v2584
      %v2605 = vmul.f32 %v2571, %v2584
      %v2606 = vmul.f32 %v2572, %v2584
      %v2607 = vmul.f32 %v2573, %v2584
      %v2608 = vmul.f32 %v2574, %v2584
      %v2609 = vmul.f32 %v2575, %v2584
      %v2610 = vmul.f32 %v2576, %v2584
      %v2611 = vmul.f32 %v2577, %v2584
      %v2612 = vmul.f32 %v2578, %v2584
      %v2613 = vmul.f32 %v2579, %v2584
      %v2614 = vmul.f32 %v2580, %v2584
      %v2615 = vmul.f32 %v2581, %v2584
      %v2616 = vld [vmem:[%s2] sm:$0x1]
      %v2618 = vperm.slane %v2616, 0
      %v2620 = vadd.f32 %v2586, %v2618
      %v2621 = vadd.f32 %v2587, %v2618
      %v2622 = vadd.f32 %v2588, %v2618
      %v2623 = vadd.f32 %v2589, %v2618
      %v2624 = vadd.f32 %v2590, %v2618
      %v2625 = vadd.f32 %v2591, %v2618
      %v2626 = vadd.f32 %v2592, %v2618
      %v2627 = vadd.f32 %v2593, %v2618
      %v2628 = vadd.f32 %v2594, %v2618
      %v2629 = vadd.f32 %v2595, %v2618
      %v2630 = vadd.f32 %v2596, %v2618
      %v2631 = vadd.f32 %v2597, %v2618
      %v2632 = vadd.f32 %v2598, %v2618
      %v2633 = vadd.f32 %v2599, %v2618
      %v2634 = vadd.f32 %v2600, %v2618
      %v2635 = vadd.f32 %v2601, %v2618
      %v2636 = vadd.f32 %v2602, %v2618
      %v2637 = vadd.f32 %v2603, %v2618
      %v2638 = vadd.f32 %v2604, %v2618
      %v2639 = vadd.f32 %v2605, %v2618
      %v2640 = vadd.f32 %v2606, %v2618
      %v2641 = vadd.f32 %v2607, %v2618
      %v2642 = vadd.f32 %v2608, %v2618
      %v2643 = vadd.f32 %v2609, %v2618
      %v2644 = vadd.f32 %v2610, %v2618
      %v2645 = vadd.f32 %v2611, %v2618
      %v2646 = vadd.f32 %v2612, %v2618
      %v2647 = vadd.f32 %v2613, %v2618
      %v2648 = vadd.f32 %v2614, %v2618
      %v2649 = vadd.f32 %v2615, %v2618
      %v2650 = vmax.f32 %v2620, 0.0
      %v2651 = vmax.f32 %v2621, 0.0
      %v2652 = vmax.f32 %v2622, 0.0
      %v2653 = vmax.f32 %v2623, 0.0
      %v2654 = vmax.f32 %v2624, 0.0
      %v2655 = vmax.f32 %v2625, 0.0
      %v2656 = vmax.f32 %v2626, 0.0
      %v2657 = vmax.f32 %v2627, 0.0
      %v2658 = vmax.f32 %v2628, 0.0
      %v2659 = vmax.f32 %v2629, 0.0
      %v2660 = vmax.f32 %v2630, 0.0
      %v2661 = vmax.f32 %v2631, 0.0
      %v2662 = vmax.f32 %v2632, 0.0
      %v2663 = vmax.f32 %v2633, 0.0
      %v2664 = vmax.f32 %v2634, 0.0
      %v2665 = vmax.f32 %v2635, 0.0
      %v2666 = vmax.f32 %v2636, 0.0
      %v2667 = vmax.f32 %v2637, 0.0
      %v2668 = vmax.f32 %v2638, 0.0
      %v2669 = vmax.f32 %v2639, 0.0
      %v2670 = vmax.f32 %v2640, 0.0
      %v2671 = vmax.f32 %v2641, 0.0
      %v2672 = vmax.f32 %v2642, 0.0
      %v2673 = vmax.f32 %v2643, 0.0
      %v2674 = vmax.f32 %v2644, 0.0
      %v2675 = vmax.f32 %v2645, 0.0
      %v2676 = vmax.f32 %v2646, 0.0
      %v2677 = vmax.f32 %v2647, 0.0
      %v2678 = vmax.f32 %v2648, 0.0
      %v2679 = vmax.f32 %v2649, 0.0
      %2710 = vrot.lane.b32.xlu0 %v2650, 32
      %v2711 = vpop.permute.xlu0 %2710
      %2712 = vrot.lane.b32.xlu0 %v2651, 32
      %v2713 = vpop.permute.xlu0 %2712
      %2714 = vrot.lane.b32.xlu0 %v2652, 32
      %v2715 = vpop.permute.xlu0 %2714
      %2716 = vrot.lane.b32.xlu0 %v2653, 32
      %v2717 = vpop.permute.xlu0 %2716
      %2718 = vrot.lane.b32.xlu0 %v2654, 32
      %v2719 = vpop.permute.xlu0 %2718
      %2720 = vrot.lane.b32.xlu0 %v2655, 32
      %v2721 = vpop.permute.xlu0 %2720
      %2722 = vrot.lane.b32.xlu0 %v2656, 32
      %v2723 = vpop.permute.xlu0 %2722
      %2724 = vrot.lane.b32.xlu0 %v2657, 32
      %v2725 = vpop.permute.xlu0 %2724
      %2726 = vrot.lane.b32.xlu0 %v2658, 32
      %v2727 = vpop.permute.xlu0 %2726
      %2728 = vrot.lane.b32.xlu0 %v2659, 32
      %v2729 = vpop.permute.xlu0 %2728
      %2730 = vrot.lane.b32.xlu0 %v2660, 32
      %v2731 = vpop.permute.xlu0 %2730
      %2732 = vrot.lane.b32.xlu0 %v2661, 32
      %v2733 = vpop.permute.xlu0 %2732
      %2734 = vrot.lane.b32.xlu0 %v2662, 32
      %v2735 = vpop.permute.xlu0 %2734
      %2736 = vrot.lane.b32.xlu0 %v2663, 32
      %v2737 = vpop.permute.xlu0 %2736
      %2738 = vrot.lane.b32.xlu0 %v2664, 32
      %v2739 = vpop.permute.xlu0 %2738
      %2740 = vrot.lane.b32.xlu0 %v2665, 32
      %v2741 = vpop.permute.xlu0 %2740
      %2742 = vrot.lane.b32.xlu0 %v2666, 32
      %v2743 = vpop.permute.xlu0 %2742
      %2744 = vrot.lane.b32.xlu0 %v2667, 32
      %v2745 = vpop.permute.xlu0 %2744
      %2746 = vrot.lane.b32.xlu0 %v2668, 32
      %v2747 = vpop.permute.xlu0 %2746
      %2748 = vrot.lane.b32.xlu0 %v2669, 32
      %v2749 = vpop.permute.xlu0 %2748
      %2750 = vrot.lane.b32.xlu0 %v2670, 32
      %v2751 = vpop.permute.xlu0 %2750
      %2752 = vrot.lane.b32.xlu0 %v2671, 32
      %v2753 = vpop.permute.xlu0 %2752
      %2754 = vrot.lane.b32.xlu0 %v2672, 32
      %v2755 = vpop.permute.xlu0 %2754
      %2756 = vrot.lane.b32.xlu0 %v2673, 32
      %v2757 = vpop.permute.xlu0 %2756
      %2758 = vrot.lane.b32.xlu0 %v2674, 32
      %v2759 = vpop.permute.xlu0 %2758
      %2760 = vrot.lane.b32.xlu0 %v2675, 32
      %v2761 = vpop.permute.xlu0 %2760
      %2762 = vrot.lane.b32.xlu0 %v2676, 32
      %v2763 = vpop.permute.xlu0 %2762
      %2764 = vrot.lane.b32.xlu0 %v2677, 32
      %v2765 = vpop.permute.xlu0 %2764
      %2766 = vrot.lane.b32.xlu0 %v2678, 32
      %v2767 = vpop.permute.xlu0 %2766
      %2768 = vrot.lane.b32.xlu0 %v2679, 32
      %v2769 = vpop.permute.xlu0 %2768
      %2800 = vst.msk [vmem:[#allocation2] sm:$0xff] %vm2532, %v2711
      %vm2801 = vcmask 293120
      %2802 = vst.msk [vmem:[#allocation2 + $0x8] sm:$0x7f] %vm2801, %v2713
      %2803 = vst.msk [vmem:[#allocation2 + $0x10] sm:$0xff] %vm2532, %v2715
      %2804 = vst.msk [vmem:[#allocation2 + $0x18] sm:$0x7f] %vm2801, %v2717
      %2805 = vst.msk [vmem:[#allocation2 + $0x20] sm:$0xff] %vm2532, %v2719
      %2806 = vst.msk [vmem:[#allocation2 + $0x28] sm:$0x7f] %vm2801, %v2721
      %2807 = vst.msk [vmem:[#allocation2 + $0x30] sm:$0xff] %vm2532, %v2723
      %2808 = vst.msk [vmem:[#allocation2 + $0x38] sm:$0x7f] %vm2801, %v2725
      %2809 = vst.msk [vmem:[#allocation2 + $0x40] sm:$0xff] %vm2532, %v2727
      %2810 = vst.msk [vmem:[#allocation2 + $0x48] sm:$0x7f] %vm2801, %v2729
      %2811 = vst.msk [vmem:[#allocation2 + $0x50] sm:$0xff] %vm2532, %v2731
      %2812 = vst.msk [vmem:[#allocation2 + $0x58] sm:$0x7f] %vm2801, %v2733
      %2813 = vst.msk [vmem:[#allocation2 + $0x60] sm:$0xff] %vm2532, %v2735
      %2814 = vst.msk [vmem:[#allocation2 + $0x68] sm:$0x7f] %vm2801, %v2737
      %2815 = vst.msk [vmem:[#allocation2 + $0x70] sm:$0xff] %vm2532, %v2739
      %2816 = vst.msk [vmem:[#allocation2 + $0x78] sm:$0x7f] %vm2801, %v2741
      %2817 = vst.msk [vmem:[#allocation2 + $0x80] sm:$0xff] %vm2532, %v2743
      %2818 = vst.msk [vmem:[#allocation2 + $0x88] sm:$0x7f] %vm2801, %v2745
      %2819 = vst.msk [vmem:[#allocation2 + $0x90] sm:$0xff] %vm2532, %v2747
      %2820 = vst.msk [vmem:[#allocation2 + $0x98] sm:$0x7f] %vm2801, %v2749
      %2821 = vst.msk [vmem:[#allocation2 + $0xa0] sm:$0xff] %vm2532, %v2751
      %2822 = vst.msk [vmem:[#allocation2 + $0xa8] sm:$0x7f] %vm2801, %v2753
      %2823 = vst.msk [vmem:[#allocation2 + $0xb0] sm:$0xff] %vm2532, %v2755
      %2824 = vst.msk [vmem:[#allocation2 + $0xb8] sm:$0x7f] %vm2801, %v2757
      %2825 = vst.msk [vmem:[#allocation2 + $0xc0] sm:$0xff] %vm2532, %v2759
      %2826 = vst.msk [vmem:[#allocation2 + $0xc8] sm:$0x7f] %vm2801, %v2761
      %2827 = vst.msk [vmem:[#allocation2 + $0xd0] sm:$0xff] %vm2532, %v2763
      %2828 = vst.msk [vmem:[#allocation2 + $0xd8] sm:$0x7f] %vm2801, %v2765
      %2829 = vst.msk [vmem:[#allocation2 + $0xe0] sm:$0xff] %vm2532, %v2767
      %2830 = vst.msk [vmem:[#allocation2 + $0xe8] sm:$0x7f] %vm2801, %v2769
      %v2831 = vld [vmem:[#allocation2] sm:$0xff]
      %v2832 = vld [vmem:[#allocation2 + $0x8] sm:$0xff]
      %v2833 = vld [vmem:[#allocation2 + $0x10] sm:$0xff]
      %v2834 = vld [vmem:[#allocation2 + $0x18] sm:$0xff]
      %v2835 = vld [vmem:[#allocation2 + $0x20] sm:$0xff]
      %v2836 = vld [vmem:[#allocation2 + $0x28] sm:$0xff]
      %v2837 = vld [vmem:[#allocation2 + $0x30] sm:$0xff]
      %v2838 = vld [vmem:[#allocation2 + $0x38] sm:$0xff]
      %v2839 = vld [vmem:[#allocation2 + $0x40] sm:$0xff]
      %v2840 = vld [vmem:[#allocation2 + $0x48] sm:$0xff]
      %v2841 = vld [vmem:[#allocation2 + $0x50] sm:$0xff]
      %v2842 = vld [vmem:[#allocation2 + $0x58] sm:$0xff]
      %v2843 = vld [vmem:[#allocation2 + $0x60] sm:$0xff]
      %v2844 = vld [vmem:[#allocation2 + $0x68] sm:$0xff]
      %v2845 = vld [vmem:[#allocation2 + $0x70] sm:$0xff]
      %v2846 = vld [vmem:[#allocation2 + $0x78] sm:$0xff]
      %v2847 = vld [vmem:[#allocation2 + $0x80] sm:$0xff]
      %v2848 = vld [vmem:[#allocation2 + $0x88] sm:$0xff]
      %v2849 = vld [vmem:[#allocation2 + $0x90] sm:$0xff]
      %v2850 = vld [vmem:[#allocation2 + $0x98] sm:$0xff]
      %v2851 = vld [vmem:[#allocation2 + $0xa0] sm:$0xff]
      %v2852 = vld [vmem:[#allocation2 + $0xa8] sm:$0xff]
      %v2853 = vld [vmem:[#allocation2 + $0xb0] sm:$0xff]
      %v2854 = vld [vmem:[#allocation2 + $0xb8] sm:$0xff]
      %v2855 = vld [vmem:[#allocation2 + $0xc0] sm:$0xff]
      %v2856 = vld [vmem:[#allocation2 + $0xc8] sm:$0xff]
      %v2857 = vld [vmem:[#allocation2 + $0xd0] sm:$0xff]
      %v2858 = vld [vmem:[#allocation2 + $0xd8] sm:$0xff]
      %v2859 = vld [vmem:[#allocation2 + $0xe0] sm:$0xff]
      %v2860 = vld [vmem:[#allocation2 + $0xe8] sm:$0xff]
      %v2861 = vld [vmem:[#allocation2 + $0xf0] sm:$0xff]
      %v2862 = vld [vmem:[#allocation2 + $0xf8] sm:$0xff]
      %v2863 = vld [vmem:[%s3] sm:$0xff]
      %v2864 = vld [vmem:[%s3 + $0x8] sm:$0xff]
      %v2865 = vld [vmem:[%s3 + $0x10] sm:$0xff]
      %v2866 = vld [vmem:[%s3 + $0x18] sm:$0xff]
      %v2867 = vld [vmem:[%s3 + $0x20] sm:$0xf]
      %v2868 = vld [vmem:[%s4] sm:$0x1]
      %v2870 = vperm.slane %v2868, 0
      %vm2872 = vcmask 293888
      %v2874 = vsel %vm2872, %v2831, 0
      %v2877 = vsel %vm2872, %v2832, 0
      %v2880 = vsel %vm2872, %v2833, 0
      %v2883 = vsel %vm2872, %v2834, 0
      %v2886 = vsel %vm2872, %v2835, 0
      %v2889 = vsel %vm2872, %v2836, 0
      %v2892 = vsel %vm2872, %v2837, 0
      %v2895 = vsel %vm2872, %v2838, 0
      %v2898 = vsel %vm2872, %v2839, 0
      %v2901 = vsel %vm2872, %v2840, 0
      %v2904 = vsel %vm2872, %v2841, 0
      %v2907 = vsel %vm2872, %v2842, 0
      %v2910 = vsel %vm2872, %v2843, 0
      %v2913 = vsel %vm2872, %v2844, 0
      %v2916 = vsel %vm2872, %v2845, 0
      %v2919 = vsel %vm2872, %v2846, 0
      %v2922 = vsel %vm2872, %v2847, 0
      %v2925 = vsel %vm2872, %v2848, 0
      %v2928 = vsel %vm2872, %v2849, 0
      %v2931 = vsel %vm2872, %v2850, 0
      %v2934 = vsel %vm2872, %v2851, 0
      %v2937 = vsel %vm2872, %v2852, 0
      %v2940 = vsel %vm2872, %v2853, 0
      %v2943 = vsel %vm2872, %v2854, 0
      %v2946 = vsel %vm2872, %v2855, 0
      %v2949 = vsel %vm2872, %v2856, 0
      %v2952 = vsel %vm2872, %v2857, 0
      %v2955 = vsel %vm2872, %v2858, 0
      %v2958 = vsel %vm2872, %v2859, 0
      %v2961 = vsel %vm2872, %v2860, 0
      %v2964 = vsel %vm2872, %v2861, 0
      %v2967 = vsel %vm2872, %v2862, 0
      %vm2969 = vcmask 1043456
      %v2971 = vsel %vm2969, %v2867, 0
      %2973 = vmatpush.msra.mxu0 0.0
      %2974 = vmatpush.msra.mxu0 0.0
      %2975 = vmatpush.msra.mxu0 0.0
      %2976 = vmatpush.msra.mxu0 0.0
      %2977 = vmatpush.msra.mxu0 0.0
      %2978 = vmatpush.msra.mxu0 0.0
      %2979 = vmatpush.msra.mxu0 0.0
      %2980 = vmatpush.msra.mxu0 0.0
      %2981 = vmatpush.msra.mxu0 0.0
      %2982 = vmatpush.msra.mxu0 0.0
      %2983 = vmatpush.msra.mxu0 0.0
      %2984 = vmatpush.msra.mxu0 %v2971
      %2985 = vmatpush.msra.mxu0 %v2866
      %2986 = vmatpush.msra.mxu0 %v2865
      %2987 = vmatpush.msra.mxu0 %v2864
      %2988 = vmatpush.msra.mxu0 %v2863
      %2989 = vmatmul.f32.gmra.mxu0 %v2874
      %v2990 = vpop.f32.mrf.mxu0
      %v2991 = vadd.f32 %v2870, %v2990
      %2992 = vmatmul.f32.gmra.mxu0 %v2877
      %v2993 = vpop.f32.mrf.mxu0
      %v2994 = vadd.f32 %v2870, %v2993
      %2995 = vmatmul.f32.gmra.mxu0 %v2880
      %v2996 = vpop.f32.mrf.mxu0
      %v2997 = vadd.f32 %v2870, %v2996
      %2998 = vmatmul.f32.gmra.mxu0 %v2883
      %v2999 = vpop.f32.mrf.mxu0
      %v3000 = vadd.f32 %v2870, %v2999
      %3001 = vmatmul.f32.gmra.mxu0 %v2886
      %v3002 = vpop.f32.mrf.mxu0
      %v3003 = vadd.f32 %v2870, %v3002
      %3004 = vmatmul.f32.gmra.mxu0 %v2889
      %v3005 = vpop.f32.mrf.mxu0
      %v3006 = vadd.f32 %v2870, %v3005
      %3007 = vmatmul.f32.gmra.mxu0 %v2892
      %v3008 = vpop.f32.mrf.mxu0
      %v3009 = vadd.f32 %v2870, %v3008
      %3010 = vmatmul.f32.gmra.mxu0 %v2895
      %v3011 = vpop.f32.mrf.mxu0
      %v3012 = vadd.f32 %v2870, %v3011
      %3013 = vmatmul.f32.gmra.mxu0 %v2898
      %v3014 = vpop.f32.mrf.mxu0
      %v3015 = vadd.f32 %v2870, %v3014
      %3016 = vmatmul.f32.gmra.mxu0 %v2901
      %v3017 = vpop.f32.mrf.mxu0
      %v3018 = vadd.f32 %v2870, %v3017
      %3019 = vmatmul.f32.gmra.mxu0 %v2904
      %v3020 = vpop.f32.mrf.mxu0
      %v3021 = vadd.f32 %v2870, %v3020
      %3022 = vmatmul.f32.gmra.mxu0 %v2907
      %v3023 = vpop.f32.mrf.mxu0
      %v3024 = vadd.f32 %v2870, %v3023
      %3025 = vmatmul.f32.gmra.mxu0 %v2910
      %v3026 = vpop.f32.mrf.mxu0
      %v3027 = vadd.f32 %v2870, %v3026
      %3028 = vmatmul.f32.gmra.mxu0 %v2913
      %v3029 = vpop.f32.mrf.mxu0
      %v3030 = vadd.f32 %v2870, %v3029
      %3031 = vmatmul.f32.gmra.mxu0 %v2916
      %v3032 = vpop.f32.mrf.mxu0
      %v3033 = vadd.f32 %v2870, %v3032
      %3034 = vmatmul.f32.gmra.mxu0 %v2919
      %v3035 = vpop.f32.mrf.mxu0
      %v3036 = vadd.f32 %v2870, %v3035
      %3037 = vmatmul.f32.gmra.mxu0 %v2922
      %v3038 = vpop.f32.mrf.mxu0
      %v3039 = vadd.f32 %v2870, %v3038
      %3040 = vmatmul.f32.gmra.mxu0 %v2925
      %v3041 = vpop.f32.mrf.mxu0
      %v3042 = vadd.f32 %v2870, %v3041
      %3043 = vmatmul.f32.gmra.mxu0 %v2928
      %v3044 = vpop.f32.mrf.mxu0
      %v3045 = vadd.f32 %v2870, %v3044
      %3046 = vmatmul.f32.gmra.mxu0 %v2931
      %v3047 = vpop.f32.mrf.mxu0
      %v3048 = vadd.f32 %v2870, %v3047
      %3049 = vmatmul.f32.gmra.mxu0 %v2934
      %v3050 = vpop.f32.mrf.mxu0
      %v3051 = vadd.f32 %v2870, %v3050
      %3052 = vmatmul.f32.gmra.mxu0 %v2937
      %v3053 = vpop.f32.mrf.mxu0
      %v3054 = vadd.f32 %v2870, %v3053
      %3055 = vmatmul.f32.gmra.mxu0 %v2940
      %v3056 = vpop.f32.mrf.mxu0
      %v3057 = vadd.f32 %v2870, %v3056
      %3058 = vmatmul.f32.gmra.mxu0 %v2943
      %v3059 = vpop.f32.mrf.mxu0
      %v3060 = vadd.f32 %v2870, %v3059
      %3061 = vmatmul.f32.gmra.mxu0 %v2946
      %v3062 = vpop.f32.mrf.mxu0
      %v3063 = vadd.f32 %v2870, %v3062
      %3064 = vmatmul.f32.gmra.mxu0 %v2949
      %v3065 = vpop.f32.mrf.mxu0
      %v3066 = vadd.f32 %v2870, %v3065
      %3067 = vmatmul.f32.gmra.mxu0 %v2952
      %v3068 = vpop.f32.mrf.mxu0
      %v3069 = vadd.f32 %v2870, %v3068
      %3070 = vmatmul.f32.gmra.mxu0 %v2955
      %v3071 = vpop.f32.mrf.mxu0
      %v3072 = vadd.f32 %v2870, %v3071
      %3073 = vmatmul.f32.gmra.mxu0 %v2958
      %v3074 = vpop.f32.mrf.mxu0
      %v3075 = vadd.f32 %v2870, %v3074
      %3076 = vmatmul.f32.gmra.mxu0 %v2961
      %v3077 = vpop.f32.mrf.mxu0
      %v3078 = vadd.f32 %v2870, %v3077
      %3079 = vmatmul.f32.gmra.mxu0 %v2964
      %v3080 = vpop.f32.mrf.mxu0
      %v3081 = vadd.f32 %v2870, %v3080
      %3082 = vmatmul.f32.gmra.mxu0 %v2967
      %v3083 = vpop.f32.mrf.mxu0
      %v3084 = vadd.f32 %v2870, %v3083
      %3085 = vdwg.mxu0
      %3086 = vst.msk [vmem:[%s258] sm:$0xff] %vm263, %v2991
      %3087 = vst.msk [vmem:[%s258 + $0x8] sm:$0xff] %vm263, %v2994
      %3088 = vst.msk [vmem:[%s258 + $0x10] sm:$0xff] %vm263, %v2997
      %3089 = vst.msk [vmem:[%s258 + $0x18] sm:$0xff] %vm263, %v3000
      %3090 = vst.msk [vmem:[%s258 + $0x20] sm:$0xff] %vm263, %v3003
      %3091 = vst.msk [vmem:[%s258 + $0x28] sm:$0xff] %vm263, %v3006
      %3092 = vst.msk [vmem:[%s258 + $0x30] sm:$0xff] %vm263, %v3009
      %3093 = vst.msk [vmem:[%s258 + $0x38] sm:$0xff] %vm263, %v3012
      %3094 = vst.msk [vmem:[%s258 + $0x40] sm:$0xff] %vm263, %v3015
      %3095 = vst.msk [vmem:[%s258 + $0x48] sm:$0xff] %vm263, %v3018
      %3096 = vst.msk [vmem:[%s258 + $0x50] sm:$0xff] %vm263, %v3021
      %3097 = vst.msk [vmem:[%s258 + $0x58] sm:$0xff] %vm263, %v3024
      %3098 = vst.msk [vmem:[%s258 + $0x60] sm:$0xff] %vm263, %v3027
      %3099 = vst.msk [vmem:[%s258 + $0x68] sm:$0xff] %vm263, %v3030
      %3100 = vst.msk [vmem:[%s258 + $0x70] sm:$0xff] %vm263, %v3033
      %3101 = vst.msk [vmem:[%s258 + $0x78] sm:$0xff] %vm263, %v3036
      %3102 = vst.msk [vmem:[%s258 + $0x80] sm:$0xff] %vm263, %v3039
      %3103 = vst.msk [vmem:[%s258 + $0x88] sm:$0xff] %vm263, %v3042
      %3104 = vst.msk [vmem:[%s258 + $0x90] sm:$0xff] %vm263, %v3045
      %3105 = vst.msk [vmem:[%s258 + $0x98] sm:$0xff] %vm263, %v3048
      %3106 = vst.msk [vmem:[%s258 + $0xa0] sm:$0xff] %vm263, %v3051
      %3107 = vst.msk [vmem:[%s258 + $0xa8] sm:$0xff] %vm263, %v3054
      %3108 = vst.msk [vmem:[%s258 + $0xb0] sm:$0xff] %vm263, %v3057
      %3109 = vst.msk [vmem:[%s258 + $0xb8] sm:$0xff] %vm263, %v3060
      %3110 = vst.msk [vmem:[%s258 + $0xc0] sm:$0xff] %vm263, %v3063
      %3111 = vst.msk [vmem:[%s258 + $0xc8] sm:$0xff] %vm263, %v3066
      %3112 = vst.msk [vmem:[%s258 + $0xd0] sm:$0xff] %vm263, %v3069
      %3113 = vst.msk [vmem:[%s258 + $0xd8] sm:$0xff] %vm263, %v3072
      %3114 = vst.msk [vmem:[%s258 + $0xe0] sm:$0xff] %vm263, %v3075
      %3115 = vst.msk [vmem:[%s258 + $0xe8] sm:$0xff] %vm263, %v3078
      %3116 = vst.msk [vmem:[%s258 + $0xf0] sm:$0xff] %vm263, %v3081
      %3117 = vst.msk [vmem:[%s258 + $0xf8] sm:$0xff] %vm263, %v3084
      %v3118 = vsel %vm263, %v2991, 0.0
      %v3119 = vsel %vm263, %v2994, 0.0
      %v3120 = vadd.f32 %v3118, %v3119
      %v3121 = vsel %vm263, %v2997, 0.0
      %v3122 = vadd.f32 %v3120, %v3121
      %v3123 = vsel %vm263, %v3000, 0.0
      %v3124 = vadd.f32 %v3122, %v3123
      %v3125 = vsel %vm263, %v3003, 0.0
      %v3126 = vadd.f32 %v3124, %v3125
      %v3127 = vsel %vm263, %v3006, 0.0
      %v3128 = vadd.f32 %v3126, %v3127
      %v3129 = vsel %vm263, %v3009, 0.0
      %v3130 = vadd.f32 %v3128, %v3129
      %v3131 = vsel %vm263, %v3012, 0.0
      %v3132 = vadd.f32 %v3130, %v3131
      %v3133 = vsel %vm263, %v3015, 0.0
      %v3134 = vadd.f32 %v3132, %v3133
      %v3135 = vsel %vm263, %v3018, 0.0
      %v3136 = vadd.f32 %v3134, %v3135
      %v3137 = vsel %vm263, %v3021, 0.0
      %v3138 = vadd.f32 %v3136, %v3137
      %v3139 = vsel %vm263, %v3024, 0.0
      %v3140 = vadd.f32 %v3138, %v3139
      %v3141 = vsel %vm263, %v3027, 0.0
      %v3142 = vadd.f32 %v3140, %v3141
      %v3143 = vsel %vm263, %v3030, 0.0
      %v3144 = vadd.f32 %v3142, %v3143
      %v3145 = vsel %vm263, %v3033, 0.0
      %v3146 = vadd.f32 %v3144, %v3145
      %v3147 = vsel %vm263, %v3036, 0.0
      %v3148 = vadd.f32 %v3146, %v3147
      %v3149 = vsel %vm263, %v3039, 0.0
      %v3150 = vadd.f32 %v3148, %v3149
      %v3151 = vsel %vm263, %v3042, 0.0
      %v3152 = vadd.f32 %v3150, %v3151
      %v3153 = vsel %vm263, %v3045, 0.0
      %v3154 = vadd.f32 %v3152, %v3153
      %v3155 = vsel %vm263, %v3048, 0.0
      %v3156 = vadd.f32 %v3154, %v3155
      %v3157 = vsel %vm263, %v3051, 0.0
      %v3158 = vadd.f32 %v3156, %v3157
      %v3159 = vsel %vm263, %v3054, 0.0
      %v3160 = vadd.f32 %v3158, %v3159
      %v3161 = vsel %vm263, %v3057, 0.0
      %v3162 = vadd.f32 %v3160, %v3161
      %v3163 = vsel %vm263, %v3060, 0.0
      %v3164 = vadd.f32 %v3162, %v3163
      %v3165 = vsel %vm263, %v3063, 0.0
      %v3166 = vadd.f32 %v3164, %v3165
      %v3167 = vsel %vm263, %v3066, 0.0
      %v3168 = vadd.f32 %v3166, %v3167
      %v3169 = vsel %vm263, %v3069, 0.0
      %v3170 = vadd.f32 %v3168, %v3169
      %v3171 = vsel %vm263, %v3072, 0.0
      %v3172 = vadd.f32 %v3170, %v3171
      %v3173 = vsel %vm263, %v3075, 0.0
      %v3174 = vadd.f32 %v3172, %v3173
      %v3175 = vsel %vm263, %v3078, 0.0
      %v3176 = vadd.f32 %v3174, %v3175
      %v3177 = vsel %vm263, %v3081, 0.0
      %v3178 = vadd.f32 %v3176, %v3177
      %v3179 = vsel %vm263, %v3084, 0.0
      %v3180 = vadd.f32 %v3178, %v3179
      %v3181 = vrot.slane %v3180, 4
      %v3182 = vadd.f32 %v3180, %v3181
      %v3183 = vrot.slane %v3182, 2
      %v3184 = vadd.f32 %v3182, %v3183
      %v3185 = vrot.slane %v3184, 1
      %v3186 = vadd.f32 %v3184, %v3185
      %3187 = vst.msk [vmem:[%s262] sm:$0x1] %vm266, %v3186
      %v3188 = vmul.f32 %v2991, %v2991
      %v3189 = vmul.f32 %v2994, %v2994
      %v3190 = vmul.f32 %v2997, %v2997
      %v3191 = vmul.f32 %v3000, %v3000
      %v3192 = vmul.f32 %v3003, %v3003
      %v3193 = vmul.f32 %v3006, %v3006
      %v3194 = vmul.f32 %v3009, %v3009
      %v3195 = vmul.f32 %v3012, %v3012
      %v3196 = vmul.f32 %v3015, %v3015
      %v3197 = vmul.f32 %v3018, %v3018
      %v3198 = vmul.f32 %v3021, %v3021
      %v3199 = vmul.f32 %v3024, %v3024
      %v3200 = vmul.f32 %v3027, %v3027
      %v3201 = vmul.f32 %v3030, %v3030
      %v3202 = vmul.f32 %v3033, %v3033
      %v3203 = vmul.f32 %v3036, %v3036
      %v3204 = vmul.f32 %v3039, %v3039
      %v3205 = vmul.f32 %v3042, %v3042
      %v3206 = vmul.f32 %v3045, %v3045
      %v3207 = vmul.f32 %v3048, %v3048
      %v3208 = vmul.f32 %v3051, %v3051
      %v3209 = vmul.f32 %v3054, %v3054
      %v3210 = vmul.f32 %v3057, %v3057
      %v3211 = vmul.f32 %v3060, %v3060
      %v3212 = vmul.f32 %v3063, %v3063
      %v3213 = vmul.f32 %v3066, %v3066
      %v3214 = vmul.f32 %v3069, %v3069
      %v3215 = vmul.f32 %v3072, %v3072
      %v3216 = vmul.f32 %v3075, %v3075
      %v3217 = vmul.f32 %v3078, %v3078
      %v3218 = vmul.f32 %v3081, %v3081
      %v3219 = vmul.f32 %v3084, %v3084
      %v3220 = vsel %vm263, %v3188, 0.0
      %v3221 = vsel %vm263, %v3189, 0.0
      %v3222 = vadd.f32 %v3220, %v3221
      %v3223 = vsel %vm263, %v3190, 0.0
      %v3224 = vadd.f32 %v3222, %v3223
      %v3225 = vsel %vm263, %v3191, 0.0
      %v3226 = vadd.f32 %v3224, %v3225
      %v3227 = vsel %vm263, %v3192, 0.0
      %v3228 = vadd.f32 %v3226, %v3227
      %v3229 = vsel %vm263, %v3193, 0.0
      %v3230 = vadd.f32 %v3228, %v3229
      %v3231 = vsel %vm263, %v3194, 0.0
      %v3232 = vadd.f32 %v3230, %v3231
      %v3233 = vsel %vm263, %v3195, 0.0
      %v3234 = vadd.f32 %v3232, %v3233
      %v3235 = vsel %vm263, %v3196, 0.0
      %v3236 = vadd.f32 %v3234, %v3235
      %v3237 = vsel %vm263, %v3197, 0.0
      %v3238 = vadd.f32 %v3236, %v3237
      %v3239 = vsel %vm263, %v3198, 0.0
      %v3240 = vadd.f32 %v3238, %v3239
      %v3241 = vsel %vm263, %v3199, 0.0
      %v3242 = vadd.f32 %v3240, %v3241
      %v3243 = vsel %vm263, %v3200, 0.0
      %v3244 = vadd.f32 %v3242, %v3243
      %v3245 = vsel %vm263, %v3201, 0.0
      %v3246 = vadd.f32 %v3244, %v3245
      %v3247 = vsel %vm263, %v3202, 0.0
      %v3248 = vadd.f32 %v3246, %v3247
      %v3249 = vsel %vm263, %v3203, 0.0
      %v3250 = vadd.f32 %v3248, %v3249
      %v3251 = vsel %vm263, %v3204, 0.0
      %v3252 = vadd.f32 %v3250, %v3251
      %v3253 = vsel %vm263, %v3205, 0.0
      %v3254 = vadd.f32 %v3252, %v3253
      %v3255 = vsel %vm263, %v3206, 0.0
      %v3256 = vadd.f32 %v3254, %v3255
      %v3257 = vsel %vm263, %v3207, 0.0
      %v3258 = vadd.f32 %v3256, %v3257
      %v3259 = vsel %vm263, %v3208, 0.0
      %v3260 = vadd.f32 %v3258, %v3259
      %v3261 = vsel %vm263, %v3209, 0.0
      %v3262 = vadd.f32 %v3260, %v3261
      %v3263 = vsel %vm263, %v3210, 0.0
      %v3264 = vadd.f32 %v3262, %v3263
      %v3265 = vsel %vm263, %v3211, 0.0
      %v3266 = vadd.f32 %v3264, %v3265
      %v3267 = vsel %vm263, %v3212, 0.0
      %v3268 = vadd.f32 %v3266, %v3267
      %v3269 = vsel %vm263, %v3213, 0.0
      %v3270 = vadd.f32 %v3268, %v3269
      %v3271 = vsel %vm263, %v3214, 0.0
      %v3272 = vadd.f32 %v3270, %v3271
      %v3273 = vsel %vm263, %v3215, 0.0
      %v3274 = vadd.f32 %v3272, %v3273
      %v3275 = vsel %vm263, %v3216, 0.0
      %v3276 = vadd.f32 %v3274, %v3275
      %v3277 = vsel %vm263, %v3217, 0.0
      %v3278 = vadd.f32 %v3276, %v3277
      %v3279 = vsel %vm263, %v3218, 0.0
      %v3280 = vadd.f32 %v3278, %v3279
      %v3281 = vsel %vm263, %v3219, 0.0
      %v3282 = vadd.f32 %v3280, %v3281
      %v3283 = vrot.slane %v3282, 4
      %v3284 = vadd.f32 %v3282, %v3283
      %v3285 = vrot.slane %v3284, 2
      %v3286 = vadd.f32 %v3284, %v3285
      %v3287 = vrot.slane %v3286, 1
      %v3288 = vadd.f32 %v3286, %v3287
      %3289 = vst.msk [vmem:[%s262 + $0x1] sm:$0x1] %vm266, %v3288
      %p3290 = scmp.lt.s32.totalorder %s18, 1
      %s3291 = scalar_select %p3290, %s18, 1
      %s3292 = smul.addr %s3291, 32
      %s3293 = smul.addr %s3292, 8
      %s3294 = scalar_lea.vmem %s5, %s3293
      %p3295 = scmp.lt.s32.totalorder %s18, 1
      %s3296 = scalar_select %p3295, %s18, 1
      %s3297 = smul.addr %s3296, 2
      %s3298 = scalar_lea.vmem %s6, %s3297
      // Predicated region
      $region41: #{residual_forward_nhwc.4} parent=39 // pred_check
        %p3299 = pneg %p146
      $region42: #{residual_forward_nhwc.4} parent=39 // pred_check_branch
        %3301 = sbr.rel (%p3299) target = $region44
      $region43: #{residual_forward_nhwc.4} parent=39 // pred_region
        _
      $region44: #{residual_forward_nhwc.4} parent=39 // pred_fallthru
        _
      // Predicated region
      $region45: #{residual_forward_nhwc.4} parent=39 // pred_check
        %p3302 = pneg %p172
      $region46: #{residual_forward_nhwc.4} parent=39 // pred_check_branch
        %3304 = sbr.rel (%p3302) target = $region48
      $region47: #{residual_forward_nhwc.4} parent=39 // pred_region
        _
      $region48: #{residual_forward_nhwc.4} parent=39 // pred_fallthru
        _
    $region40: #{residual_forward_nhwc.4} parent=5 // pred_fallthru
      _
    %p3305 = scmp.le.s32.totalorder 2, %s13
    // Predicated region
    $region49: #{residual_forward_nhwc.4} parent=5 // pred_check
      %p3306 = pneg %p3305
    $region50: #{residual_forward_nhwc.4} parent=5 // pred_check_branch
      %3308 = sbr.rel (%p3306) target = $region52
    $region51: #{residual_forward_nhwc.4} parent=5 // pred_region
      %s3309 = ssub.s32 %s13, 2
      // Predicated region
      $region53: #{residual_forward_nhwc.4} parent=51 // pred_check
        %p3310 = pneg %p152
      $region54: #{residual_forward_nhwc.4} parent=51 // pred_check_branch
        %3312 = sbr.rel (%p3310) target = $region56
      $region55: #{residual_forward_nhwc.4} parent=51 // pred_region
        %p3313 = scmp.lt.s32.totalorder %s19, 1
        %s3314 = scalar_select %p3313, %s19, 1
        %s3315 = smul.addr %s3314, 32
        %s3316 = smul.addr %s3315, 8
        %s3317 = scalar_lea.vmem %s5, %s3316
      $region56: #{residual_forward_nhwc.4} parent=51 // pred_fallthru
        _
      // Predicated region
      $region57: #{residual_forward_nhwc.4} parent=51 // pred_check
        %p3318 = pneg %p178
      $region58: #{residual_forward_nhwc.4} parent=51 // pred_check_branch
        %3320 = sbr.rel (%p3318) target = $region60
      $region59: #{residual_forward_nhwc.4} parent=51 // pred_region
        %p3321 = scmp.lt.s32.totalorder %s19, 1
        %s3322 = scalar_select %p3321, %s19, 1
        %s3323 = smul.addr %s3322, 2
        %s3324 = scalar_lea.vmem %s6, %s3323
      $region60: #{residual_forward_nhwc.4} parent=51 // pred_fallthru
        _
    $region52: #{residual_forward_nhwc.4} parent=5 // pred_fallthru
      _
  $region6: #{residual_forward_nhwc.4} parent=0 // loop_footer
    %s17 = sadd.s32 1, %s13
  $region7: #{residual_forward_nhwc.4} parent=0 // loop_footer_branch
    %12 = sbr.rel target = $region3
  $region8: #{residual_forward_nhwc.4} parent=0 // loop_exit
    _

</llo_original>
